<compile_context>
chip_gen: v5e
topology: v5e:2x2
jax: 0.10.0
libtpu: 0.0.40
codegen_flags: <defaults>
</compile_context>

<pallas_src>
import numpy as np
import jax
import jax.numpy as jnp
from jax import lax
from jax.experimental import pallas as pl
from jax.experimental.pallas import tpu as pltpu


# ----------------------------------------------------------------------------
# Pallas kernel (shared by all (dilation, diff) blocks)
# ----------------------------------------------------------------------------
def make_hydra_kernel(L_pad, T, k, h):
    """xs_ref : (1, 1, 9, L_pad)  pre-shifted taps of one (block, example)
       w_ref  : (1, C, 9)         conv weights, kk-major channel order (r = kk*h + hh)
       o_ref  : (1, 1, 1, 2C)     [count_max (C) | count_min (C)], kk-major
       lval_ref (scalar prefetch, SMEM): (num_blocks,) valid time length per block."""
    C = k * h
    n_chunks = L_pad // T

    def kernel(lval_ref, xs_ref, w_ref, o_ref):
        b = pl.program_id(0)
        L_valid = lval_ref[b]                        # int32 valid time steps of this block
        w = w_ref[0]                                 # (C, 9) f32

        def chunk_body(c, carry):
            cm_acc, cn_acc = carry                   # (C,) f32 each, kk-major
            t0 = pl.multiple_of(c * T, T)
            xs_c = xs_ref[0, 0, :, pl.ds(t0, T)]     # (9, T) shifted taps

            # --- dilated conv on the MXU; full f32 accuracy (tie logic relies on it) ---
            conv = jnp.dot(w, xs_c,
                           preferred_element_type=jnp.float32,
                           precision=lax.Precision.HIGHEST)      # (C, T)

            # --- group max / min over the k kernels of each of the h groups ---
            s = [conv[kk * h:(kk + 1) * h, :] for kk in range(k)]   # k x (h, T)
            gmax = s[0]
            gmin = s[0]
            for kk in range(1, k):
                gmax = jnp.maximum(gmax, s[kk])
                gmin = jnp.minimum(gmin, s[kk])

            # mask padded time columns out of the reductions
            t_idx = t0 + lax.broadcasted_iota(jnp.int32, (h, T), 1)
            valid = t_idx < L_valid                   # (h, T) bool

            # --- scatter_add_ re-expressed with first-occurrence one-hot masks ---
            taken_max = jnp.zeros((h, T), dtype=jnp.bool_)
            taken_min = jnp.zeros((h, T), dtype=jnp.bool_)
            mx_parts = []     # masked max values per kk, each (h, T)
            mn_parts = []     # masked min hits   per kk, each (h, T)
            for kk in range(k):
                is_max = (s[kk] == gmax) & (~taken_max)
                is_min = (s[kk] == gmin) & (~taken_min)
                taken_max = taken_max | is_max
                taken_min = taken_min | is_min
                mx_parts.append(jnp.where(is_max & valid, s[kk], 0.0))
                mn_parts.append(jnp.where(is_min & valid, 1.0, 0.0))

            # single full-width lane reduction each (instead of 16 small ones)
            cm_part = jnp.sum(jnp.concatenate(mx_parts, axis=0), axis=-1)   # (C,)
            cn_part = jnp.sum(jnp.concatenate(mn_parts, axis=0), axis=-1)   # (C,)
            return (cm_acc + cm_part, cn_acc + cn_part)

        init = (jnp.zeros((C,), jnp.float32), jnp.zeros((C,), jnp.float32))
        cm, cn = lax.fori_loop(0, n_chunks, chunk_body, init)

        # one lane-dense (2C = 512)-wide store; (h, k) reorder happens in the wrapper
        o_ref[0, 0, 0, :] = jnp.concatenate([cm, cn], axis=0)

    return kernel


# ----------------------------------------------------------------------------
# Wrapper reproducing HydraFeatureExtractor.forward
# ----------------------------------------------------------------------------
def hydra_forward(X, W, dilations, k, h, time_chunk=256):
    """X: (N, 1, L) float32; W: (num_dil, divisor, k*h, 1, 9) float32."""
    N, _, L = X.shape
    num_dil, divisor = W.shape[0], W.shape[1]
    C = k * h
    diffX = X[:, :, 1:] - X[:, :, :-1]               # torch.diff along time

    L_pad = int(-(-L // time_chunk) * time_chunk)    # round time up to chunk multiple

    xs_blocks, w_blocks, lengths = [], [], []
    for i in range(num_dil):
        d = int(dilations[i])
        p = ((9 - 1) * d) // 2                       # = 4*d
        for j in range(divisor):
            inp = X if j == 0 else diffX             # (N, 1, L_in)
            L_out = inp.shape[-1]                    # 'same' length conv output
            xpad = jnp.pad(inp[:, 0, :], ((0, 0), (p, p)))            # (N, L_out + 8d)
            taps = [xpad[:, t * d: t * d + L_out] for t in range(9)]  # pre-shifted taps
            xs = jnp.stack(taps, axis=1)                              # (N, 9, L_out)
            xs = jnp.pad(xs, ((0, 0), (0, 0), (0, L_pad - L_out)))    # (N, 9, L_pad)
            xs_blocks.append(xs)
            # reorder channels (c = hh*k + kk) -> kk-major (r = kk*h + hh)
            w_kk = W[i, j, :, 0, :].reshape(h, k, 9).transpose(1, 0, 2).reshape(C, 9)
            w_blocks.append(w_kk)
            lengths.append(L_out)

    Xs_all = jnp.stack(xs_blocks, axis=0)            # (B, N, 9, L_pad)
    W_all = jnp.stack(w_blocks, axis=0)              # (B, C, 9)
    lval = jnp.asarray(lengths, dtype=jnp.int32)     # (B,)
    B = Xs_all.shape[0]

    out = pl.pallas_call(
        make_hydra_kernel(L_pad, time_chunk, k, h),
        out_shape=jax.ShapeDtypeStruct((B, N, 1, 2 * C), jnp.float32),
        grid_spec=pltpu.PrefetchScalarGridSpec(
            num_scalar_prefetch=1,
            grid=(B, N),
            in_specs=[
                pl.BlockSpec((1, 1, 9, L_pad), lambda b, n, lv: (b, n, 0, 0)),
                pl.BlockSpec((1, C, 9), lambda b, n, lv: (b, 0, 0)),
            ],
            out_specs=pl.BlockSpec((1, 1, 1, 2 * C), lambda b, n, lv: (b, n, 0, 0)),
        ),
        compiler_params=pltpu.CompilerParams(
            dimension_semantics=("parallel", "parallel")),
    )(lval, Xs_all, W_all)                           # (B, N, 1, 2C)

    # reorder kk-major rows back to the torch layout (hh-major) and assemble features
    feats = []
    for b in range(B):
        cm = out[b, :, 0, :C].reshape(N, k, h).transpose(0, 2, 1).reshape(N, C)
        cn = out[b, :, 0, C:].reshape(N, k, h).transpose(0, 2, 1).reshape(N, C)
        feats.append(cm)   # count_max
        feats.append(cn)   # count_min
    return jnp.concatenate(feats, axis=1)            # (N, B*2*C)


# ----------------------------------------------------------------------------
# Pure-JAX reference (mirrors the PyTorch forward) for a sanity check
# ----------------------------------------------------------------------------
def hydra_reference(X, W, dilations, k, h):
    N = X.shape[0]
    diffX = X[:, :, 1:] - X[:, :, :-1]
    outs = []
    for i in range(W.shape[0]):
        d = int(dilations[i])
        p = ((9 - 1) * d) // 2
        for j in range(W.shape[1]):
            inp = X if j == 0 else diffX
            w = W[i, j]                                           # (k*h, 1, 9)
            conv = jax.lax.conv_general_dilated(
                inp, w, window_strides=(1,), padding=[(p, p)],
                rhs_dilation=(d,), dimension_numbers=("NCH", "OIH", "NCH"),
                precision=jax.lax.Precision.HIGHEST)              # (N, k*h, Lo)
            Lo = conv.shape[-1]
            Zb = conv.reshape(N, h, k, Lo)
            maxv = Zb.max(axis=2)
            maxi = jnp.argmax(Zb, axis=2)
            mini = jnp.argmin(Zb, axis=2)
            oh_max = jax.nn.one_hot(maxi, k, dtype=jnp.float32)   # (N,h,Lo,k)
            oh_min = jax.nn.one_hot(mini, k, dtype=jnp.float32)
            cm = jnp.sum(maxv[..., None] * oh_max, axis=2)        # (N,h,k)
            cn = jnp.sum(oh_min, axis=2)                          # (N,h,k)
            outs.append(cm)
            outs.append(cn)
    return jnp.concatenate(outs, axis=1).reshape(N, -1)


# ----------------------------------------------------------------------------
# Main
# ----------------------------------------------------------------------------
if __name__ == "__main__":
    # Module hyper-parameters (same as HydraFeatureExtractor(k=8, g=64))
    k_, g = 8, 64
    divisor = min(2, g)
    h = g // divisor                               # 32
    input_length = 1008
    max_exponent = int(np.log2((input_length - 1) / (9 - 1)))
    dilations = (2 ** np.arange(max_exponent + 1)).astype(np.int32)   # [1,2,...,64]
    num_dil = len(dilations)

    # Deterministic parameter init (replicates the randn + center + L1-normalize)
    key = jax.random.PRNGKey(0)
    kW, kX = jax.random.split(key)
    W = jax.random.normal(kW, (num_dil, divisor, k_ * h, 1, 9), dtype=jnp.float32)
    W = W - W.mean(axis=-1, keepdims=True)
    W = W / jnp.abs(W).sum(axis=-1, keepdims=True)

    # Small example input (N, C=1, L)
    N, L = 2, 1008
    X = jax.random.normal(kX, (N, 1, L), dtype=jnp.float32)

    Z = hydra_forward(X, W, dilations, k_, h)
    Z = jax.block_until_ready(Z)

    expected_feats = num_dil * divisor * 2 * h * k_        # 7168
    assert Z.shape == (N, expected_feats), Z.shape
    assert bool(jnp.all(jnp.isfinite(Z)))

    # Sanity check against the pure-JAX reference.  Tolerate a tiny fraction of
    # elements differing (argmax/argmin tie flips on near-equal conv values).
    Z_ref = hydra_reference(X, W, dilations, k_, h)
    ok = jnp.abs(Z - Z_ref) <= (1e-3 + 1e-3 * jnp.abs(Z_ref))
    frac_ok = float(jnp.mean(ok.astype(jnp.float32)))
    assert frac_ok > 0.995, f"too many mismatches vs reference: {1.0 - frac_ok:.4f}"

    print("KERNEL_OK")
</pallas_src>

<mosaic_0001>
module attributes {stable_mosaic.version = 11 : i64} {
  func.func @kernel(%arg0: i32, %arg1: i32, %arg2: memref<14xi32, #tpu.memory_space<smem>>, %arg3: memref<1x1x9x1024xf32, #tpu.memory_space<vmem>>, %arg4: memref<1x256x9xf32, #tpu.memory_space<vmem>>, %arg5: memref<1x1x1x512xf32, #tpu.memory_space<vmem>>) attributes {dimension_semantics = [#tpu.dimension_semantics<parallel>, #tpu.dimension_semantics<parallel>], iteration_bounds = array<i64: 14, 2>, scalar_prefetch = 1 : i64, scratch_operands = 0 : i64, tpu.core_type = #tpu.core_type<tc>, window_params = [{transform_indices = @transform_0, window_bounds = array<i64: 1, 1, 9, 1024>}, {transform_indices = @transform_1, window_bounds = array<i64: 1, 256, 9>}, {transform_indices = @transform_2, window_bounds = array<i64: 1, 1, 1, 512>}]} {
    %0 = arith.index_cast %arg0 : i32 to index
    %1 = memref.load %arg2[%0] : memref<14xi32, #tpu.memory_space<smem>>
    %c0 = arith.constant 0 : index
    %c0_0 = arith.constant 0 : index
    %c0_1 = arith.constant 0 : index
    %2 = vector.load %arg4[%c0, %c0_0, %c0_1] : memref<1x256x9xf32, #tpu.memory_space<vmem>>, vector<1x256x9xf32>
    %3 = vector.shape_cast %2 : vector<1x256x9xf32> to vector<256x9xf32>
    %cst = arith.constant 0.000000e+00 : f32
    %4 = vector.broadcast %cst : f32 to vector<256xf32>
    %cst_2 = arith.constant 0.000000e+00 : f32
    %5 = vector.broadcast %cst_2 : f32 to vector<256xf32>
    %c0_i32 = arith.constant 0 : i32
    %c4_i32 = arith.constant 4 : i32
    %6 = arith.addi %c0_i32, %c4_i32 : i32
    %c1_i32 = arith.constant 1 : i32
    %7:2 = scf.for %arg6 = %c0_i32 to %6 step %c1_i32 iter_args(%arg7 = %4, %arg8 = %5) -> (vector<256xf32>, vector<256xf32>)  : i32 {
      %c256_i32 = arith.constant 256 : i32
      %12 = arith.muli %arg6, %c256_i32 : i32
      %13 = tpu.assume_multiple %12, 256 : i32
      %c0_8 = arith.constant 0 : index
      %c0_9 = arith.constant 0 : index
      %c0_10 = arith.constant 0 : index
      %14 = arith.index_cast %13 : i32 to index
      %15 = vector.load %arg3[%c0_8, %c0_9, %c0_10, %14] : memref<1x1x9x1024xf32, #tpu.memory_space<vmem>>, vector<1x1x9x256xf32>
      %16 = vector.shape_cast %15 : vector<1x1x9x256xf32> to vector<9x256xf32>
      %cst_11 = arith.constant dense<0.000000e+00> : vector<256x256xf32>
      %17 = tpu.matmul %3, %16, %cst_11 {dimension_numbers = #tpu.dot_dimension_numbers<[1], [0], [0], [1], [0, 0, 1, 1], [], []>, precision = #tpu.contract_precision<fp32>} : vector<256x9xf32>, vector<9x256xf32>, vector<256x256xf32> -> vector<256x256xf32>
      %18 = vector.extract_strided_slice %17 {offsets = [0, 0], sizes = [32, 256], strides = [1, 1]} : vector<256x256xf32> to vector<32x256xf32>
      %19 = vector.extract_strided_slice %17 {offsets = [32, 0], sizes = [32, 256], strides = [1, 1]} : vector<256x256xf32> to vector<32x256xf32>
      %20 = vector.extract_strided_slice %17 {offsets = [64, 0], sizes = [32, 256], strides = [1, 1]} : vector<256x256xf32> to vector<32x256xf32>
      %21 = vector.extract_strided_slice %17 {offsets = [96, 0], sizes = [32, 256], strides = [1, 1]} : vector<256x256xf32> to vector<32x256xf32>
      %22 = vector.extract_strided_slice %17 {offsets = [128, 0], sizes = [32, 256], strides = [1, 1]} : vector<256x256xf32> to vector<32x256xf32>
      %23 = vector.extract_strided_slice %17 {offsets = [160, 0], sizes = [32, 256], strides = [1, 1]} : vector<256x256xf32> to vector<32x256xf32>
      %24 = vector.extract_strided_slice %17 {offsets = [192, 0], sizes = [32, 256], strides = [1, 1]} : vector<256x256xf32> to vector<32x256xf32>
      %25 = vector.extract_strided_slice %17 {offsets = [224, 0], sizes = [32, 256], strides = [1, 1]} : vector<256x256xf32> to vector<32x256xf32>
      %26 = arith.maximumf %18, %19 : vector<32x256xf32>
      %27 = arith.minimumf %18, %19 : vector<32x256xf32>
      %28 = arith.maximumf %26, %20 : vector<32x256xf32>
      %29 = arith.minimumf %27, %20 : vector<32x256xf32>
      %30 = arith.maximumf %28, %21 : vector<32x256xf32>
      %31 = arith.minimumf %29, %21 : vector<32x256xf32>
      %32 = arith.maximumf %30, %22 : vector<32x256xf32>
      %33 = arith.minimumf %31, %22 : vector<32x256xf32>
      %34 = arith.maximumf %32, %23 : vector<32x256xf32>
      %35 = arith.minimumf %33, %23 : vector<32x256xf32>
      %36 = arith.maximumf %34, %24 : vector<32x256xf32>
      %37 = arith.minimumf %35, %24 : vector<32x256xf32>
      %38 = arith.maximumf %36, %25 : vector<32x256xf32>
      %39 = arith.minimumf %37, %25 : vector<32x256xf32>
      %40 = tpu.iota {dimensions = array<i32: 1>} : vector<32x256xi32>
      %41 = vector.broadcast %13 : i32 to vector<32x256xi32>
      %42 = arith.addi %41, %40 : vector<32x256xi32>
      %43 = vector.broadcast %1 : i32 to vector<32x256xi32>
      %44 = arith.cmpi slt, %42, %43 : vector<32x256xi32>
      %false = arith.constant false
      %45 = vector.broadcast %false : i1 to vector<32x256xi1>
      %false_12 = arith.constant false
      %46 = vector.broadcast %false_12 : i1 to vector<32x256xi1>
      %47 = arith.cmpf oeq, %18, %38 : vector<32x256xf32>
      %cst_13 = arith.constant dense<true> : vector<32x256xi1>
      %48 = arith.xori %45, %cst_13 : vector<32x256xi1>
      %49 = arith.andi %47, %48 : vector<32x256xi1>
      %50 = arith.cmpf oeq, %18, %39 : vector<32x256xf32>
      %cst_14 = arith.constant dense<true> : vector<32x256xi1>
      %51 = arith.xori %46, %cst_14 : vector<32x256xi1>
      %52 = arith.andi %50, %51 : vector<32x256xi1>
      %53 = arith.ori %45, %49 : vector<32x256xi1>
      %54 = arith.ori %46, %52 : vector<32x256xi1>
      %55 = arith.andi %49, %44 : vector<32x256xi1>
      %cst_15 = arith.constant 0.000000e+00 : f32
      %56 = vector.broadcast %cst_15 : f32 to vector<32x256xf32>
      %57 = arith.select %55, %18, %56 : vector<32x256xi1>, vector<32x256xf32>
      %58 = arith.andi %52, %44 : vector<32x256xi1>
      %cst_16 = arith.constant 1.000000e+00 : f32
      %cst_17 = arith.constant 0.000000e+00 : f32
      %59 = vector.broadcast %cst_16 : f32 to vector<32x256xf32>
      %60 = vector.broadcast %cst_17 : f32 to vector<32x256xf32>
      %61 = arith.select %58, %59, %60 : vector<32x256xi1>, vector<32x256xf32>
      %62 = arith.cmpf oeq, %19, %38 : vector<32x256xf32>
      %cst_18 = arith.constant dense<true> : vector<32x256xi1>
      %63 = arith.xori %53, %cst_18 : vector<32x256xi1>
      %64 = arith.andi %62, %63 : vector<32x256xi1>
      %65 = arith.cmpf oeq, %19, %39 : vector<32x256xf32>
      %cst_19 = arith.constant dense<true> : vector<32x256xi1>
      %66 = arith.xori %54, %cst_19 : vector<32x256xi1>
      %67 = arith.andi %65, %66 : vector<32x256xi1>
      %68 = arith.ori %53, %64 : vector<32x256xi1>
      %69 = arith.ori %54, %67 : vector<32x256xi1>
      %70 = arith.andi %64, %44 : vector<32x256xi1>
      %cst_20 = arith.constant 0.000000e+00 : f32
      %71 = vector.broadcast %cst_20 : f32 to vector<32x256xf32>
      %72 = arith.select %70, %19, %71 : vector<32x256xi1>, vector<32x256xf32>
      %73 = arith.andi %67, %44 : vector<32x256xi1>
      %cst_21 = arith.constant 1.000000e+00 : f32
      %cst_22 = arith.constant 0.000000e+00 : f32
      %74 = vector.broadcast %cst_21 : f32 to vector<32x256xf32>
      %75 = vector.broadcast %cst_22 : f32 to vector<32x256xf32>
      %76 = arith.select %73, %74, %75 : vector<32x256xi1>, vector<32x256xf32>
      %77 = arith.cmpf oeq, %20, %38 : vector<32x256xf32>
      %cst_23 = arith.constant dense<true> : vector<32x256xi1>
      %78 = arith.xori %68, %cst_23 : vector<32x256xi1>
      %79 = arith.andi %77, %78 : vector<32x256xi1>
      %80 = arith.cmpf oeq, %20, %39 : vector<32x256xf32>
      %cst_24 = arith.constant dense<true> : vector<32x256xi1>
      %81 = arith.xori %69, %cst_24 : vector<32x256xi1>
      %82 = arith.andi %80, %81 : vector<32x256xi1>
      %83 = arith.ori %68, %79 : vector<32x256xi1>
      %84 = arith.ori %69, %82 : vector<32x256xi1>
      %85 = arith.andi %79, %44 : vector<32x256xi1>
      %cst_25 = arith.constant 0.000000e+00 : f32
      %86 = vector.broadcast %cst_25 : f32 to vector<32x256xf32>
      %87 = arith.select %85, %20, %86 : vector<32x256xi1>, vector<32x256xf32>
      %88 = arith.andi %82, %44 : vector<32x256xi1>
      %cst_26 = arith.constant 1.000000e+00 : f32
      %cst_27 = arith.constant 0.000000e+00 : f32
      %89 = vector.broadcast %cst_26 : f32 to vector<32x256xf32>
      %90 = vector.broadcast %cst_27 : f32 to vector<32x256xf32>
      %91 = arith.select %88, %89, %90 : vector<32x256xi1>, vector<32x256xf32>
      %92 = arith.cmpf oeq, %21, %38 : vector<32x256xf32>
      %cst_28 = arith.constant dense<true> : vector<32x256xi1>
      %93 = arith.xori %83, %cst_28 : vector<32x256xi1>
      %94 = arith.andi %92, %93 : vector<32x256xi1>
      %95 = arith.cmpf oeq, %21, %39 : vector<32x256xf32>
      %cst_29 = arith.constant dense<true> : vector<32x256xi1>
      %96 = arith.xori %84, %cst_29 : vector<32x256xi1>
      %97 = arith.andi %95, %96 : vector<32x256xi1>
      %98 = arith.ori %83, %94 : vector<32x256xi1>
      %99 = arith.ori %84, %97 : vector<32x256xi1>
      %100 = arith.andi %94, %44 : vector<32x256xi1>
      %cst_30 = arith.constant 0.000000e+00 : f32
      %101 = vector.broadcast %cst_30 : f32 to vector<32x256xf32>
      %102 = arith.select %100, %21, %101 : vector<32x256xi1>, vector<32x256xf32>
      %103 = arith.andi %97, %44 : vector<32x256xi1>
      %cst_31 = arith.constant 1.000000e+00 : f32
      %cst_32 = arith.constant 0.000000e+00 : f32
      %104 = vector.broadcast %cst_31 : f32 to vector<32x256xf32>
      %105 = vector.broadcast %cst_32 : f32 to vector<32x256xf32>
      %106 = arith.select %103, %104, %105 : vector<32x256xi1>, vector<32x256xf32>
      %107 = arith.cmpf oeq, %22, %38 : vector<32x256xf32>
      %cst_33 = arith.constant dense<true> : vector<32x256xi1>
      %108 = arith.xori %98, %cst_33 : vector<32x256xi1>
      %109 = arith.andi %107, %108 : vector<32x256xi1>
      %110 = arith.cmpf oeq, %22, %39 : vector<32x256xf32>
      %cst_34 = arith.constant dense<true> : vector<32x256xi1>
      %111 = arith.xori %99, %cst_34 : vector<32x256xi1>
      %112 = arith.andi %110, %111 : vector<32x256xi1>
      %113 = arith.ori %98, %109 : vector<32x256xi1>
      %114 = arith.ori %99, %112 : vector<32x256xi1>
      %115 = arith.andi %109, %44 : vector<32x256xi1>
      %cst_35 = arith.constant 0.000000e+00 : f32
      %116 = vector.broadcast %cst_35 : f32 to vector<32x256xf32>
      %117 = arith.select %115, %22, %116 : vector<32x256xi1>, vector<32x256xf32>
      %118 = arith.andi %112, %44 : vector<32x256xi1>
      %cst_36 = arith.constant 1.000000e+00 : f32
      %cst_37 = arith.constant 0.000000e+00 : f32
      %119 = vector.broadcast %cst_36 : f32 to vector<32x256xf32>
      %120 = vector.broadcast %cst_37 : f32 to vector<32x256xf32>
      %121 = arith.select %118, %119, %120 : vector<32x256xi1>, vector<32x256xf32>
      %122 = arith.cmpf oeq, %23, %38 : vector<32x256xf32>
      %cst_38 = arith.constant dense<true> : vector<32x256xi1>
      %123 = arith.xori %113, %cst_38 : vector<32x256xi1>
      %124 = arith.andi %122, %123 : vector<32x256xi1>
      %125 = arith.cmpf oeq, %23, %39 : vector<32x256xf32>
      %cst_39 = arith.constant dense<true> : vector<32x256xi1>
      %126 = arith.xori %114, %cst_39 : vector<32x256xi1>
      %127 = arith.andi %125, %126 : vector<32x256xi1>
      %128 = arith.ori %113, %124 : vector<32x256xi1>
      %129 = arith.ori %114, %127 : vector<32x256xi1>
      %130 = arith.andi %124, %44 : vector<32x256xi1>
      %cst_40 = arith.constant 0.000000e+00 : f32
      %131 = vector.broadcast %cst_40 : f32 to vector<32x256xf32>
      %132 = arith.select %130, %23, %131 : vector<32x256xi1>, vector<32x256xf32>
      %133 = arith.andi %127, %44 : vector<32x256xi1>
      %cst_41 = arith.constant 1.000000e+00 : f32
      %cst_42 = arith.constant 0.000000e+00 : f32
      %134 = vector.broadcast %cst_41 : f32 to vector<32x256xf32>
      %135 = vector.broadcast %cst_42 : f32 to vector<32x256xf32>
      %136 = arith.select %133, %134, %135 : vector<32x256xi1>, vector<32x256xf32>
      %137 = arith.cmpf oeq, %24, %38 : vector<32x256xf32>
      %cst_43 = arith.constant dense<true> : vector<32x256xi1>
      %138 = arith.xori %128, %cst_43 : vector<32x256xi1>
      %139 = arith.andi %137, %138 : vector<32x256xi1>
      %140 = arith.cmpf oeq, %24, %39 : vector<32x256xf32>
      %cst_44 = arith.constant dense<true> : vector<32x256xi1>
      %141 = arith.xori %129, %cst_44 : vector<32x256xi1>
      %142 = arith.andi %140, %141 : vector<32x256xi1>
      %143 = arith.ori %128, %139 : vector<32x256xi1>
      %144 = arith.ori %129, %142 : vector<32x256xi1>
      %145 = arith.andi %139, %44 : vector<32x256xi1>
      %cst_45 = arith.constant 0.000000e+00 : f32
      %146 = vector.broadcast %cst_45 : f32 to vector<32x256xf32>
      %147 = arith.select %145, %24, %146 : vector<32x256xi1>, vector<32x256xf32>
      %148 = arith.andi %142, %44 : vector<32x256xi1>
      %cst_46 = arith.constant 1.000000e+00 : f32
      %cst_47 = arith.constant 0.000000e+00 : f32
      %149 = vector.broadcast %cst_46 : f32 to vector<32x256xf32>
      %150 = vector.broadcast %cst_47 : f32 to vector<32x256xf32>
      %151 = arith.select %148, %149, %150 : vector<32x256xi1>, vector<32x256xf32>
      %152 = arith.cmpf oeq, %25, %38 : vector<32x256xf32>
      %cst_48 = arith.constant dense<true> : vector<32x256xi1>
      %153 = arith.xori %143, %cst_48 : vector<32x256xi1>
      %154 = arith.andi %152, %153 : vector<32x256xi1>
      %155 = arith.cmpf oeq, %25, %39 : vector<32x256xf32>
      %cst_49 = arith.constant dense<true> : vector<32x256xi1>
      %156 = arith.xori %144, %cst_49 : vector<32x256xi1>
      %157 = arith.andi %155, %156 : vector<32x256xi1>
      %158 = arith.andi %154, %44 : vector<32x256xi1>
      %cst_50 = arith.constant 0.000000e+00 : f32
      %159 = vector.broadcast %cst_50 : f32 to vector<32x256xf32>
      %160 = arith.select %158, %25, %159 : vector<32x256xi1>, vector<32x256xf32>
      %161 = arith.andi %157, %44 : vector<32x256xi1>
      %cst_51 = arith.constant 1.000000e+00 : f32
      %cst_52 = arith.constant 0.000000e+00 : f32
      %162 = vector.broadcast %cst_51 : f32 to vector<32x256xf32>
      %163 = vector.broadcast %cst_52 : f32 to vector<32x256xf32>
      %164 = arith.select %161, %162, %163 : vector<32x256xi1>, vector<32x256xf32>
      %165 = tpu.concatenate %57, %72, %87, %102, %117, %132, %147, %160 in 0 : vector<32x256xf32>, vector<32x256xf32>, vector<32x256xf32>, vector<32x256xf32>, vector<32x256xf32>, vector<32x256xf32>, vector<32x256xf32>, vector<32x256xf32> -> vector<256x256xf32>
      %cst_53 = arith.constant dense<0.000000e+00> : vector<256xf32>
      %166 = vector.multi_reduction <add>, %165, %cst_53 [1] : vector<256x256xf32> to vector<256xf32>
      %167 = tpu.concatenate %61, %76, %91, %106, %121, %136, %151, %164 in 0 : vector<32x256xf32>, vector<32x256xf32>, vector<32x256xf32>, vector<32x256xf32>, vector<32x256xf32>, vector<32x256xf32>, vector<32x256xf32>, vector<32x256xf32> -> vector<256x256xf32>
      %cst_54 = arith.constant dense<0.000000e+00> : vector<256xf32>
      %168 = vector.multi_reduction <add>, %167, %cst_54 [1] : vector<256x256xf32> to vector<256xf32>
      %169 = arith.addf %arg7, %166 : vector<256xf32>
      %170 = arith.addf %arg8, %168 : vector<256xf32>
      scf.yield %169, %170 : vector<256xf32>, vector<256xf32>
    }
    %c4_i32_3 = arith.constant 4 : i32
    %8 = tpu.concatenate %7#0, %7#1 in 0 : vector<256xf32>, vector<256xf32> -> vector<512xf32>
    %c0_4 = arith.constant 0 : index
    %c0_5 = arith.constant 0 : index
    %c0_6 = arith.constant 0 : index
    %c0_7 = arith.constant 0 : index
    %9 = vector.load %arg5[%c0_4, %c0_5, %c0_6, %c0_7] : memref<1x1x1x512xf32, #tpu.memory_space<vmem>>, vector<1x1x1x512xf32>
    %10 = vector.shape_cast %9 : vector<1x1x1x512xf32> to vector<512xf32>
    %11 = vector.shape_cast %8 : vector<512xf32> to vector<1x1x1x512xf32>
    tpu.vector_store %arg5[%c0_4, %c0_5, %c0_6, %c0_7], %11 {strides = array<i32>} : memref<1x1x1x512xf32, #tpu.memory_space<vmem>>, vector<1x1x1x512xf32>,
    return
  }
  func.func @transform_0(%arg0: i32, %arg1: i32, %arg2: memref<14xi32, #tpu.memory_space<smem>>) -> (i32, i32, i32, i32) {
    %c0_i32 = arith.constant 0 : i32
    %c0_i32_0 = arith.constant 0 : i32
    %c0_i32_1 = arith.constant 0 : i32
    return %arg0, %arg1, %c0_i32, %c0_i32_0 : i32, i32, i32, i32
  }
  func.func @transform_1(%arg0: i32, %arg1: i32, %arg2: memref<14xi32, #tpu.memory_space<smem>>) -> (i32, i32, i32) {
    %c0_i32 = arith.constant 0 : i32
    %c0_i32_0 = arith.constant 0 : i32
    %c0_i32_1 = arith.constant 0 : i32
    return %arg0, %c0_i32, %c0_i32_0 : i32, i32, i32
  }
  func.func @transform_2(%arg0: i32, %arg1: i32, %arg2: memref<14xi32, #tpu.memory_space<smem>>) -> (i32, i32, i32, i32) {
    %c0_i32 = arith.constant 0 : i32
    %c0_i32_0 = arith.constant 0 : i32
    %c0_i32_1 = arith.constant 0 : i32
    return %arg0, %arg1, %c0_i32, %c0_i32_0 : i32, i32, i32, i32
  }
}

</mosaic_0001>

<llo_original>
// kernel: tpu_custom_call.1
$region0: #{tpu_custom_call.1}
  #allocation0 [shape = 'u32[]', space=smem, size = 0x4, offset = 0x4, fixed_abs, tag = 'smem constant byte address 0x4 - core index']
  #allocation1 [shape = 'u32[72,128]{1,0:T(1,128)}', space=vmem, size = 0x9000, scoped, tag = 'internal scratch']
  #allocation2 [shape = 's32[1]{0}', space=sflag, size = 0x4, scoped, tag = 'scoped memory for tpu_custom_call.1']
  #allocation3 [shape = 'u8[512]{0}', space=smem, size = 0x200, scoped, tag = 'prefetched SMEM operand 0']
  %s0 = inlined_call_operand.vmem [shape: s32[14], index: 0, kind: input, shape index: {}]
  %s1 = inlined_call_operand.vmem [shape: f32[14,2,9,1024], index: 1, kind: input, shape index: {}]
  %s2 = inlined_call_operand.vmem [shape: f32[14,256,9], index: 2, kind: input, shape index: {}]
  %s3 = inlined_call_operand.hbm [shape: f32[14,2,1,512], index: 3, kind: output, shape index: {}]
  %s4 = sld [smem:[#allocation0]]
  $region48: #{tpu_custom_call.1} parent=0
    _
  %s6 = ssub.s32 1, %s4
  %s7 = scalar_select 0, %s6, %s4
  %s9 = sshll.u32 %s0, 4
  %s10 = int_to_ptr.vmem [resolvable:$true] %s9
  %12 = dma.vmem_to_smem %s10, 16, [#allocation3], [#allocation2]
  %14 = dma.done [#allocation2], 16
  %15 = sfence
  $region1: #{tpu_custom_call.1} parent=0
    #allocation4 [shape = 'u8[4096]{0}', space=vmem, size = 0x1000, scoped, tag = 'output window, operand 0']
    #allocation5 [shape = 's32[2]{0}', space=sflag, size = 0x8, scoped, tag = 'scoped memory for tpu_custom_call.1']
    %16 = vsyncpa [#allocation5], 0
    %s17 = scalar_lea.sflag [#allocation5], 1
    %18 = vsyncpa %s17, 0
    loop: start=0, step=1, limit=30
    $region2: #{tpu_custom_call.1} parent=1 // loop_pre_header
      _
    $region3: #{tpu_custom_call.1} parent=1 // loop_header
      %s20 = sphi 0, %s24
      %p21 = scmp.ge.s32.totalorder %s20, 30
      %s27 = sphi 0, %s39
      %s28 = sphi 0, %s35
      %s29 = sphi 0, %s27
      %s30 = sphi 0, %s28
      %s31 = sphi 0, %s29
      %s32 = sphi 0, %s30
      %s44 = sphi 0, %s46
      %s47 = sphi 0, %s44
      %s48 = sphi 0, %s47
      %s64 = sphi 0, %s48
      %s70 = sphi 0, %s72
      %s73 = sphi 0, %s70
      %s74 = sphi 0, %s73
      %s90 = sphi 0, %s74
      %s98 = sphi 0, %s100
      %s101 = sphi 0, %s98
      %s102 = sphi 0, %s101
      %s118 = sphi 0, %s102
    $region4: #{tpu_custom_call.1} parent=1 // loop_header_branch
      %23 = sbr.rel (%p21) target = $region8
    $region5: #{tpu_custom_call.1} parent=1 // loop_body
      %s25 = ssub.s32 %s20, 1
      %s26 = ssub.s32 %s20, 2
      %s33 = sadd.s32 1, %s28
      %p34 = scmp.ge.s32.totalorder %s33, 2
      %s35 = scalar_select %p34, 0, %s33
      %s36 = sadd.s32 1, %s27
      %s37 = scalar_select %p34, %s36, %s27
      %p38 = scmp.ge.s32.totalorder %s37, 14
      %s39 = scalar_select %p38, 0, %s37
      %s40 = ssub.s32 %s27, %s39
      %s41 = ssub.s32 %s28, %s35
      %s42 = sor.u32 %s40, %s41
      %p43 = scmp.eq.s32.totalorder %s42, 0
      %s45 = sadd.s32 %s44, 1
      %s46 = scalar_select %p43, %s44, %s45
      %p49 = pneg %p43
      %p50 = scmp.eq.s32.totalorder %s20, 27
      %p51 = por %p49, %p50
      %p52 = scmp.ne.s32.totalorder %s44, %s47
      %p53 = scmp.eq.s32.totalorder %s20, 0
      %p54 = por %p52, %p53
      %p55 = scmp.ne.s32.totalorder %s44, %s47
      %p56 = scmp.eq.s32.totalorder %s25, 27
      %p57 = por %p55, %p56
      %p58 = scmp.ne.s32.totalorder %s47, %s48
      %p59 = scmp.eq.s32.totalorder %s25, 0
      %p60 = por %p58, %p59
      %p61 = scmp.ne.s32.totalorder %s47, %s48
      %p62 = scmp.eq.s32.totalorder %s26, 27
      %p63 = por %p61, %p62
      %p65 = scmp.ne.s32.totalorder %s48, %s64
      %p66 = scmp.eq.s32.totalorder %s26, 0
      %p67 = por %p65, %p66
      %s68 = ssub.s32 %s27, %s39
      %p69 = scmp.eq.s32.totalorder %s68, 0
      %s71 = sadd.s32 %s70, 1
      %s72 = scalar_select %p69, %s70, %s71
      %p75 = pneg %p69
      %p76 = scmp.eq.s32.totalorder %s20, 27
      %p77 = por %p75, %p76
      %p78 = scmp.ne.s32.totalorder %s70, %s73
      %p79 = scmp.eq.s32.totalorder %s20, 0
      %p80 = por %p78, %p79
      %p81 = scmp.ne.s32.totalorder %s70, %s73
      %p82 = scmp.eq.s32.totalorder %s25, 27
      %p83 = por %p81, %p82
      %p84 = scmp.ne.s32.totalorder %s73, %s74
      %p85 = scmp.eq.s32.totalorder %s25, 0
      %p86 = por %p84, %p85
      %p87 = scmp.ne.s32.totalorder %s73, %s74
      %p88 = scmp.eq.s32.totalorder %s26, 27
      %p89 = por %p87, %p88
      %p91 = scmp.ne.s32.totalorder %s74, %s90
      %p92 = scmp.eq.s32.totalorder %s26, 0
      %p93 = por %p91, %p92
      %s94 = ssub.s32 %s27, %s39
      %s95 = ssub.s32 %s28, %s35
      %s96 = sor.u32 %s94, %s95
      %p97 = scmp.eq.s32.totalorder %s96, 0
      %s99 = sadd.s32 %s98, 1
      %s100 = scalar_select %p97, %s98, %s99
      %p103 = pneg %p97
      %p104 = scmp.eq.s32.totalorder %s20, 27
      %p105 = por %p103, %p104
      %p106 = scmp.ne.s32.totalorder %s98, %s101
      %p107 = scmp.eq.s32.totalorder %s20, 0
      %p108 = por %p106, %p107
      %p109 = scmp.ne.s32.totalorder %s98, %s101
      %p110 = scmp.eq.s32.totalorder %s25, 27
      %p111 = por %p109, %p110
      %p112 = scmp.ne.s32.totalorder %s101, %s102
      %p113 = scmp.eq.s32.totalorder %s25, 0
      %p114 = por %p112, %p113
      %p115 = scmp.ne.s32.totalorder %s101, %s102
      %p116 = scmp.eq.s32.totalorder %s26, 27
      %p117 = por %p115, %p116
      %p119 = scmp.ne.s32.totalorder %s102, %s118
      %p120 = scmp.eq.s32.totalorder %s26, 0
      %p121 = por %p119, %p120
      %p122 = scmp.le.s32.totalorder 1, %s20
      %p123 = scmp.lt.s32.totalorder %s20, 29
      %p124 = pnand %p122, %p123
      %p125 = pneg %p124
      // Predicated region
      $region9: #{tpu_custom_call.1} parent=5 // pred_check
        _
      $region10: #{tpu_custom_call.1} parent=5 // pred_check_branch
        %127 = sbr.rel (%p124) target = $region12
      $region11: #{tpu_custom_call.1} parent=5 // pred_region
        %s128 = ssub.s32 %s20, 1
      $region12: #{tpu_custom_call.1} parent=5 // pred_fallthru
        _
      %p129 = scmp.lt.s32.totalorder %s20, 28
      // Predicated region
      $region13: #{tpu_custom_call.1} parent=5 // pred_check
        %p130 = pneg %p129
      $region14: #{tpu_custom_call.1} parent=5 // pred_check_branch
        %132 = sbr.rel (%p130) target = $region16
      $region15: #{tpu_custom_call.1} parent=5 // pred_region
        // Predicated region
        $region17: #{tpu_custom_call.1} parent=15 // pred_check
          %p133 = pneg %p54
        $region18: #{tpu_custom_call.1} parent=15 // pred_check_branch
          %135 = sbr.rel (%p133) target = $region20
        $region19: #{tpu_custom_call.1} parent=15 // pred_region
          %p136 = scmp.lt.s32.totalorder %s27, 13
          %s137 = scalar_select %p136, %s27, 13
          %p138 = scmp.lt.s32.totalorder %s28, 1
          %s139 = scalar_select %p138, %s28, 1
          %s140 = smul.addr %s139, 16
          %s141 = smul.addr %s137, 32
          %s142 = sadd.s32 %s140, %s141
          %s143 = smul.addr %s142, 8
          %s144 = scalar_lea.vmem %s1, %s143
        $region20: #{tpu_custom_call.1} parent=15 // pred_fallthru
          _
        // Predicated region
        $region21: #{tpu_custom_call.1} parent=15 // pred_check
          %p145 = pneg %p80
        $region22: #{tpu_custom_call.1} parent=15 // pred_check_branch
          %147 = sbr.rel (%p145) target = $region24
        $region23: #{tpu_custom_call.1} parent=15 // pred_region
          %p148 = scmp.lt.s32.totalorder %s27, 13
          %s149 = scalar_select %p148, %s27, 13
          %s150 = smul.addr %s149, 32
          %s151 = smul.addr %s150, 8
          %s152 = scalar_lea.vmem %s2, %s151
        $region24: #{tpu_custom_call.1} parent=15 // pred_fallthru
          _
      $region16: #{tpu_custom_call.1} parent=5 // pred_fallthru
        _
      %p153 = scmp.le.s32.totalorder 1, %s20
      %p154 = scmp.lt.s32.totalorder %s20, 29
      %p155 = pnand %p153, %p154
      %p156 = pneg %p155
      // Predicated region
      $region25: #{tpu_custom_call.1} parent=5 // pred_check
        _
      $region26: #{tpu_custom_call.1} parent=5 // pred_check_branch
        %158 = sbr.rel (%p155) target = $region28
      $region27: #{tpu_custom_call.1} parent=5 // pred_region
        %s159 = ssub.s32 %s20, 1
        %p160 = scmp.lt.s32.totalorder %s29, 13
        %s161 = scalar_select %p160, %s29, 13
        %p162 = scmp.lt.s32.totalorder %s30, 1
        %s163 = scalar_select %p162, %s30, 1
        %s164 = smul.addr %s163, 16
        %s165 = smul.addr %s161, 32
        %s166 = sadd.s32 %s164, %s165
        %s167 = smul.addr %s166, 8
        %s168 = scalar_lea.vmem %s1, %s167
        %p169 = pneg %p60
        %p170 = pneg %p57
        %p171 = scmp.lt.s32.totalorder %s29, 13
        %s172 = scalar_select %p171, %s29, 13
        %s173 = smul.addr %s172, 32
        %s174 = smul.addr %s173, 8
        %s175 = scalar_lea.vmem %s2, %s174
        %p176 = pneg %p86
        %p177 = pneg %p83
        %p178 = pneg %p114
        %p179 = pneg %p111
        %s180 = sand.u32 %s101, 1
        %s181 = scalar_lea.sflag [#allocation5], %s180
        %s182 = sand.u32 %s101, 1
        %s183 = smul.addr %s182, 4
        %s184 = scalar_lea.vmem [#allocation4], %s183
        %p185 = scmp.lt.s32.totalorder %s29, 13
        %s186 = scalar_select %p185, %s29, 13
        %p187 = scmp.lt.s32.totalorder %s30, 1
        %s188 = scalar_select %p187, %s30, 1
        %s189 = smul.addr %s188, 16
        %s190 = smul.addr %s186, 32
        %s191 = sadd.s32 %s189, %s190
        %s192 = smul.addr %s191, 8
        %s193 = scalar_lea.vmem %s1, %s192
        %p194 = scmp.lt.s32.totalorder %s29, 13
        %s195 = scalar_select %p194, %s29, 13
        %s196 = smul.addr %s195, 32
        %s197 = smul.addr %s196, 8
        %s198 = scalar_lea.vmem %s2, %s197
        %s199 = sld [smem:[#allocation3 + %s29]]
        %v200 = vld [vmem:[%s198] sm:$0xff]
        %v201 = vld [vmem:[%s198 + $0x8] sm:$0xff]
        %v202 = vld [vmem:[%s198 + $0x10] sm:$0xff]
        %v203 = vld [vmem:[%s198 + $0x18] sm:$0xff]
        %v204 = vld [vmem:[%s198 + $0x20] sm:$0xff]
        %v205 = vld [vmem:[%s198 + $0x28] sm:$0xff]
        %v206 = vld [vmem:[%s198 + $0x30] sm:$0xff]
        %v207 = vld [vmem:[%s198 + $0x38] sm:$0xff]
        %v208 = vld [vmem:[%s198 + $0x40] sm:$0xff]
        %v209 = vld [vmem:[%s198 + $0x48] sm:$0xff]
        %v210 = vld [vmem:[%s198 + $0x50] sm:$0xff]
        %v211 = vld [vmem:[%s198 + $0x58] sm:$0xff]
        %v212 = vld [vmem:[%s198 + $0x60] sm:$0xff]
        %v213 = vld [vmem:[%s198 + $0x68] sm:$0xff]
        %v214 = vld [vmem:[%s198 + $0x70] sm:$0xff]
        %v215 = vld [vmem:[%s198 + $0x78] sm:$0xff]
        %v216 = vld [vmem:[%s198 + $0x80] sm:$0xff]
        %v217 = vld [vmem:[%s198 + $0x88] sm:$0xff]
        %v218 = vld [vmem:[%s198 + $0x90] sm:$0xff]
        %v219 = vld [vmem:[%s198 + $0x98] sm:$0xff]
        %v220 = vld [vmem:[%s198 + $0xa0] sm:$0xff]
        %v221 = vld [vmem:[%s198 + $0xa8] sm:$0xff]
        %v222 = vld [vmem:[%s198 + $0xb0] sm:$0xff]
        %v223 = vld [vmem:[%s198 + $0xb8] sm:$0xff]
        %v224 = vld [vmem:[%s198 + $0xc0] sm:$0xff]
        %v225 = vld [vmem:[%s198 + $0xc8] sm:$0xff]
        %v226 = vld [vmem:[%s198 + $0xd0] sm:$0xff]
        %v227 = vld [vmem:[%s198 + $0xd8] sm:$0xff]
        %v228 = vld [vmem:[%s198 + $0xe0] sm:$0xff]
        %v229 = vld [vmem:[%s198 + $0xe8] sm:$0xff]
        %v230 = vld [vmem:[%s198 + $0xf0] sm:$0xff]
        %v231 = vld [vmem:[%s198 + $0xf8] sm:$0xff]
        loop: start=0, step=1, limit=4
        $region29: #{tpu_custom_call.1} parent=27 // loop_pre_header
          _
        $region30: #{tpu_custom_call.1} parent=27 // loop_header
          %s233 = sphi 0, %s237
          %p234 = scmp.ge.s32.totalorder %s233, 4
          %v238 = vphi 0.0, %v3672
          %v239 = vphi 0.0, %v3673
          %v240 = vphi 0.0, %v3674
          %v241 = vphi 0.0, %v3675
          %v242 = vphi 0.0, %v3676
          %v243 = vphi 0.0, %v3677
          %v244 = vphi 0.0, %v3678
          %v245 = vphi 0.0, %v3679
          %v246 = vphi 0.0, %v3680
          %v247 = vphi 0.0, %v3681
          %v248 = vphi 0.0, %v3682
          %v249 = vphi 0.0, %v3683
          %v250 = vphi 0.0, %v3684
          %v251 = vphi 0.0, %v3685
          %v252 = vphi 0.0, %v3686
          %v253 = vphi 0.0, %v3687
          %v254 = vphi 0.0, %v3688
          %v255 = vphi 0.0, %v3689
          %v256 = vphi 0.0, %v3690
          %v257 = vphi 0.0, %v3691
          %v258 = vphi 0.0, %v3692
          %v259 = vphi 0.0, %v3693
          %v260 = vphi 0.0, %v3694
          %v261 = vphi 0.0, %v3695
          %v262 = vphi 0.0, %v3696
          %v263 = vphi 0.0, %v3697
          %v264 = vphi 0.0, %v3698
          %v265 = vphi 0.0, %v3699
          %v266 = vphi 0.0, %v3700
          %v267 = vphi 0.0, %v3701
          %v268 = vphi 0.0, %v3702
          %v269 = vphi 0.0, %v3703
          %v270 = vphi 0.0, %v3704
          %v271 = vphi 0.0, %v3705
          %v272 = vphi 0.0, %v3706
          %v273 = vphi 0.0, %v3707
          %v274 = vphi 0.0, %v3708
          %v275 = vphi 0.0, %v3709
          %v276 = vphi 0.0, %v3710
          %v277 = vphi 0.0, %v3711
          %v278 = vphi 0.0, %v3712
          %v279 = vphi 0.0, %v3713
          %v280 = vphi 0.0, %v3714
          %v281 = vphi 0.0, %v3715
          %v282 = vphi 0.0, %v3716
          %v283 = vphi 0.0, %v3717
          %v284 = vphi 0.0, %v3718
          %v285 = vphi 0.0, %v3719
          %v286 = vphi 0.0, %v3720
          %v287 = vphi 0.0, %v3721
          %v288 = vphi 0.0, %v3722
          %v289 = vphi 0.0, %v3723
          %v290 = vphi 0.0, %v3724
          %v291 = vphi 0.0, %v3725
          %v292 = vphi 0.0, %v3726
          %v293 = vphi 0.0, %v3727
          %v294 = vphi 0.0, %v3728
          %v295 = vphi 0.0, %v3729
          %v296 = vphi 0.0, %v3730
          %v297 = vphi 0.0, %v3731
          %v298 = vphi 0.0, %v3732
          %v299 = vphi 0.0, %v3733
          %v300 = vphi 0.0, %v3734
          %v301 = vphi 0.0, %v3735
        $region31: #{tpu_custom_call.1} parent=27 // loop_header_branch
          %236 = sbr.rel (%p234) target = $region35
        $region32: #{tpu_custom_call.1} parent=27 // loop_body
          %s302 = smul.u32 %s233, 256
          %s303 = sshra.s32 %s302, 7
          %s304 = sand.u32 %s302, 127
          %s305 = smul.addr %s303, 8
          %s306 = scalar_lea.vmem %s193, %s305
          %v307 = vld [vmem:[%s306] sm:$0xff]
          %v308 = vld [vmem:[%s306 + $0x8] sm:$0xff]
          %v309 = vld [vmem:[%s306 + $0x40] sm:$0x1]
          %v310 = vld [vmem:[%s306 + $0x48] sm:$0x1]
          %vm311 = vcmask 72704
          %v313 = vsel %vm311, %v200, 0
          %v316 = vsel %vm311, %v201, 0
          %v319 = vsel %vm311, %v202, 0
          %v322 = vsel %vm311, %v203, 0
          %v325 = vsel %vm311, %v204, 0
          %v328 = vsel %vm311, %v205, 0
          %v331 = vsel %vm311, %v206, 0
          %v334 = vsel %vm311, %v207, 0
          %v337 = vsel %vm311, %v208, 0
          %v340 = vsel %vm311, %v209, 0
          %v343 = vsel %vm311, %v210, 0
          %v346 = vsel %vm311, %v211, 0
          %v349 = vsel %vm311, %v212, 0
          %v352 = vsel %vm311, %v213, 0
          %v355 = vsel %vm311, %v214, 0
          %v358 = vsel %vm311, %v215, 0
          %v361 = vsel %vm311, %v216, 0
          %v364 = vsel %vm311, %v217, 0
          %v367 = vsel %vm311, %v218, 0
          %v370 = vsel %vm311, %v219, 0
          %v373 = vsel %vm311, %v220, 0
          %v376 = vsel %vm311, %v221, 0
          %v379 = vsel %vm311, %v222, 0
          %v382 = vsel %vm311, %v223, 0
          %v385 = vsel %vm311, %v224, 0
          %v388 = vsel %vm311, %v225, 0
          %v391 = vsel %vm311, %v226, 0
          %v394 = vsel %vm311, %v227, 0
          %v397 = vsel %vm311, %v228, 0
          %v400 = vsel %vm311, %v229, 0
          %v403 = vsel %vm311, %v230, 0
          %v406 = vsel %vm311, %v231, 0
          %vm408 = vcmask 1040384
          %v410 = vsel %vm408, %v309, 0
          %v413 = vsel %vm408, %v310, 0
          %415 = vmatpush.msra.mxu0 0.0
          %416 = vmatpush.msra.mxu0 0.0
          %417 = vmatpush.msra.mxu0 0.0
          %418 = vmatpush.msra.mxu0 0.0
          %419 = vmatpush.msra.mxu0 0.0
          %420 = vmatpush.msra.mxu0 0.0
          %421 = vmatpush.msra.mxu0 0.0
          %422 = vmatpush.msra.mxu0 0.0
          %423 = vmatpush.msra.mxu0 0.0
          %424 = vmatpush.msra.mxu0 0.0
          %425 = vmatpush.msra.mxu0 0.0
          %426 = vmatpush.msra.mxu0 0.0
          %427 = vmatpush.msra.mxu0 0.0
          %428 = vmatpush.msra.mxu0 0.0
          %v429 = vand.u32 %v410, 4294901760
          %430 = vmatpush.msra.mxu0 %v429
          %v431 = vand.u32 %v307, 4294901760
          %432 = vmatpush.msra.mxu0 %v431
          %v433 = vand.u32 %v313, 4294901760
          %v434 = vsub.f32 %v313, %v433
          %v435 = vand.u32 %v434, 4294901760
          %v436 = vsub.f32 %v434, %v435
          %v437 = vand.u32 %v436, 4294901760
          %438 = vmatmul.f32.gmra.mxu0 %v437
          %v439 = vpop.f32.mrf.mxu0
          %v440 = vadd.f32 0.0, %v439
          %v441 = vand.u32 %v316, 4294901760
          %v442 = vsub.f32 %v316, %v441
          %v443 = vand.u32 %v442, 4294901760
          %v444 = vsub.f32 %v442, %v443
          %v445 = vand.u32 %v444, 4294901760
          %446 = vmatmul.f32.gmra.mxu0 %v445
          %v447 = vpop.f32.mrf.mxu0
          %v448 = vadd.f32 0.0, %v447
          %v449 = vand.u32 %v319, 4294901760
          %v450 = vsub.f32 %v319, %v449
          %v451 = vand.u32 %v450, 4294901760
          %v452 = vsub.f32 %v450, %v451
          %v453 = vand.u32 %v452, 4294901760
          %454 = vmatmul.f32.gmra.mxu0 %v453
          %v455 = vpop.f32.mrf.mxu0
          %v456 = vadd.f32 0.0, %v455
          %v457 = vand.u32 %v322, 4294901760
          %v458 = vsub.f32 %v322, %v457
          %v459 = vand.u32 %v458, 4294901760
          %v460 = vsub.f32 %v458, %v459
          %v461 = vand.u32 %v460, 4294901760
          %462 = vmatmul.f32.gmra.mxu0 %v461
          %v463 = vpop.f32.mrf.mxu0
          %v464 = vadd.f32 0.0, %v463
          %v465 = vand.u32 %v325, 4294901760
          %v466 = vsub.f32 %v325, %v465
          %v467 = vand.u32 %v466, 4294901760
          %v468 = vsub.f32 %v466, %v467
          %v469 = vand.u32 %v468, 4294901760
          %470 = vmatmul.f32.gmra.mxu0 %v469
          %v471 = vpop.f32.mrf.mxu0
          %v472 = vadd.f32 0.0, %v471
          %v473 = vand.u32 %v328, 4294901760
          %v474 = vsub.f32 %v328, %v473
          %v475 = vand.u32 %v474, 4294901760
          %v476 = vsub.f32 %v474, %v475
          %v477 = vand.u32 %v476, 4294901760
          %478 = vmatmul.f32.gmra.mxu0 %v477
          %v479 = vpop.f32.mrf.mxu0
          %v480 = vadd.f32 0.0, %v479
          %v481 = vand.u32 %v331, 4294901760
          %v482 = vsub.f32 %v331, %v481
          %v483 = vand.u32 %v482, 4294901760
          %v484 = vsub.f32 %v482, %v483
          %v485 = vand.u32 %v484, 4294901760
          %486 = vmatmul.f32.gmra.mxu0 %v485
          %v487 = vpop.f32.mrf.mxu0
          %v488 = vadd.f32 0.0, %v487
          %v489 = vand.u32 %v334, 4294901760
          %v490 = vsub.f32 %v334, %v489
          %v491 = vand.u32 %v490, 4294901760
          %v492 = vsub.f32 %v490, %v491
          %v493 = vand.u32 %v492, 4294901760
          %494 = vmatmul.f32.gmra.mxu0 %v493
          %v495 = vpop.f32.mrf.mxu0
          %v496 = vadd.f32 0.0, %v495
          %v497 = vand.u32 %v337, 4294901760
          %v498 = vsub.f32 %v337, %v497
          %v499 = vand.u32 %v498, 4294901760
          %v500 = vsub.f32 %v498, %v499
          %v501 = vand.u32 %v500, 4294901760
          %502 = vmatmul.f32.gmra.mxu0 %v501
          %v503 = vpop.f32.mrf.mxu0
          %v504 = vadd.f32 0.0, %v503
          %v505 = vand.u32 %v340, 4294901760
          %v506 = vsub.f32 %v340, %v505
          %v507 = vand.u32 %v506, 4294901760
          %v508 = vsub.f32 %v506, %v507
          %v509 = vand.u32 %v508, 4294901760
          %510 = vmatmul.f32.gmra.mxu0 %v509
          %v511 = vpop.f32.mrf.mxu0
          %v512 = vadd.f32 0.0, %v511
          %v513 = vand.u32 %v343, 4294901760
          %v514 = vsub.f32 %v343, %v513
          %v515 = vand.u32 %v514, 4294901760
          %v516 = vsub.f32 %v514, %v515
          %v517 = vand.u32 %v516, 4294901760
          %518 = vmatmul.f32.gmra.mxu0 %v517
          %v519 = vpop.f32.mrf.mxu0
          %v520 = vadd.f32 0.0, %v519
          %v521 = vand.u32 %v346, 4294901760
          %v522 = vsub.f32 %v346, %v521
          %v523 = vand.u32 %v522, 4294901760
          %v524 = vsub.f32 %v522, %v523
          %v525 = vand.u32 %v524, 4294901760
          %526 = vmatmul.f32.gmra.mxu0 %v525
          %v527 = vpop.f32.mrf.mxu0
          %v528 = vadd.f32 0.0, %v527
          %v529 = vand.u32 %v349, 4294901760
          %v530 = vsub.f32 %v349, %v529
          %v531 = vand.u32 %v530, 4294901760
          %v532 = vsub.f32 %v530, %v531
          %v533 = vand.u32 %v532, 4294901760
          %534 = vmatmul.f32.gmra.mxu0 %v533
          %v535 = vpop.f32.mrf.mxu0
          %v536 = vadd.f32 0.0, %v535
          %v537 = vand.u32 %v352, 4294901760
          %v538 = vsub.f32 %v352, %v537
          %v539 = vand.u32 %v538, 4294901760
          %v540 = vsub.f32 %v538, %v539
          %v541 = vand.u32 %v540, 4294901760
          %542 = vmatmul.f32.gmra.mxu0 %v541
          %v543 = vpop.f32.mrf.mxu0
          %v544 = vadd.f32 0.0, %v543
          %v545 = vand.u32 %v355, 4294901760
          %v546 = vsub.f32 %v355, %v545
          %v547 = vand.u32 %v546, 4294901760
          %v548 = vsub.f32 %v546, %v547
          %v549 = vand.u32 %v548, 4294901760
          %550 = vmatmul.f32.gmra.mxu0 %v549
          %v551 = vpop.f32.mrf.mxu0
          %v552 = vadd.f32 0.0, %v551
          %v553 = vand.u32 %v358, 4294901760
          %v554 = vsub.f32 %v358, %v553
          %v555 = vand.u32 %v554, 4294901760
          %v556 = vsub.f32 %v554, %v555
          %v557 = vand.u32 %v556, 4294901760
          %558 = vmatmul.f32.gmra.mxu0 %v557
          %v559 = vpop.f32.mrf.mxu0
          %v560 = vadd.f32 0.0, %v559
          %v561 = vand.u32 %v361, 4294901760
          %v562 = vsub.f32 %v361, %v561
          %v563 = vand.u32 %v562, 4294901760
          %v564 = vsub.f32 %v562, %v563
          %v565 = vand.u32 %v564, 4294901760
          %566 = vmatmul.f32.gmra.mxu0 %v565
          %v567 = vpop.f32.mrf.mxu0
          %v568 = vadd.f32 0.0, %v567
          %v569 = vand.u32 %v364, 4294901760
          %v570 = vsub.f32 %v364, %v569
          %v571 = vand.u32 %v570, 4294901760
          %v572 = vsub.f32 %v570, %v571
          %v573 = vand.u32 %v572, 4294901760
          %574 = vmatmul.f32.gmra.mxu0 %v573
          %v575 = vpop.f32.mrf.mxu0
          %v576 = vadd.f32 0.0, %v575
          %v577 = vand.u32 %v367, 4294901760
          %v578 = vsub.f32 %v367, %v577
          %v579 = vand.u32 %v578, 4294901760
          %v580 = vsub.f32 %v578, %v579
          %v581 = vand.u32 %v580, 4294901760
          %582 = vmatmul.f32.gmra.mxu0 %v581
          %v583 = vpop.f32.mrf.mxu0
          %v584 = vadd.f32 0.0, %v583
          %v585 = vand.u32 %v370, 4294901760
          %v586 = vsub.f32 %v370, %v585
          %v587 = vand.u32 %v586, 4294901760
          %v588 = vsub.f32 %v586, %v587
          %v589 = vand.u32 %v588, 4294901760
          %590 = vmatmul.f32.gmra.mxu0 %v589
          %v591 = vpop.f32.mrf.mxu0
          %v592 = vadd.f32 0.0, %v591
          %v593 = vand.u32 %v373, 4294901760
          %v594 = vsub.f32 %v373, %v593
          %v595 = vand.u32 %v594, 4294901760
          %v596 = vsub.f32 %v594, %v595
          %v597 = vand.u32 %v596, 4294901760
          %598 = vmatmul.f32.gmra.mxu0 %v597
          %v599 = vpop.f32.mrf.mxu0
          %v600 = vadd.f32 0.0, %v599
          %v601 = vand.u32 %v376, 4294901760
          %v602 = vsub.f32 %v376, %v601
          %v603 = vand.u32 %v602, 4294901760
          %v604 = vsub.f32 %v602, %v603
          %v605 = vand.u32 %v604, 4294901760
          %606 = vmatmul.f32.gmra.mxu0 %v605
          %v607 = vpop.f32.mrf.mxu0
          %v608 = vadd.f32 0.0, %v607
          %v609 = vand.u32 %v379, 4294901760
          %v610 = vsub.f32 %v379, %v609
          %v611 = vand.u32 %v610, 4294901760
          %v612 = vsub.f32 %v610, %v611
          %v613 = vand.u32 %v612, 4294901760
          %614 = vmatmul.f32.gmra.mxu0 %v613
          %v615 = vpop.f32.mrf.mxu0
          %v616 = vadd.f32 0.0, %v615
          %v617 = vand.u32 %v382, 4294901760
          %v618 = vsub.f32 %v382, %v617
          %v619 = vand.u32 %v618, 4294901760
          %v620 = vsub.f32 %v618, %v619
          %v621 = vand.u32 %v620, 4294901760
          %622 = vmatmul.f32.gmra.mxu0 %v621
          %v623 = vpop.f32.mrf.mxu0
          %v624 = vadd.f32 0.0, %v623
          %v625 = vand.u32 %v385, 4294901760
          %v626 = vsub.f32 %v385, %v625
          %v627 = vand.u32 %v626, 4294901760
          %v628 = vsub.f32 %v626, %v627
          %v629 = vand.u32 %v628, 4294901760
          %630 = vmatmul.f32.gmra.mxu0 %v629
          %v631 = vpop.f32.mrf.mxu0
          %v632 = vadd.f32 0.0, %v631
          %v633 = vand.u32 %v388, 4294901760
          %v634 = vsub.f32 %v388, %v633
          %v635 = vand.u32 %v634, 4294901760
          %v636 = vsub.f32 %v634, %v635
          %v637 = vand.u32 %v636, 4294901760
          %638 = vmatmul.f32.gmra.mxu0 %v637
          %v639 = vpop.f32.mrf.mxu0
          %v640 = vadd.f32 0.0, %v639
          %v641 = vand.u32 %v391, 4294901760
          %v642 = vsub.f32 %v391, %v641
          %v643 = vand.u32 %v642, 4294901760
          %v644 = vsub.f32 %v642, %v643
          %v645 = vand.u32 %v644, 4294901760
          %646 = vmatmul.f32.gmra.mxu0 %v645
          %v647 = vpop.f32.mrf.mxu0
          %v648 = vadd.f32 0.0, %v647
          %v649 = vand.u32 %v394, 4294901760
          %v650 = vsub.f32 %v394, %v649
          %v651 = vand.u32 %v650, 4294901760
          %v652 = vsub.f32 %v650, %v651
          %v653 = vand.u32 %v652, 4294901760
          %654 = vmatmul.f32.gmra.mxu0 %v653
          %v655 = vpop.f32.mrf.mxu0
          %v656 = vadd.f32 0.0, %v655
          %v657 = vand.u32 %v397, 4294901760
          %v658 = vsub.f32 %v397, %v657
          %v659 = vand.u32 %v658, 4294901760
          %v660 = vsub.f32 %v658, %v659
          %v661 = vand.u32 %v660, 4294901760
          %662 = vmatmul.f32.gmra.mxu0 %v661
          %v663 = vpop.f32.mrf.mxu0
          %v664 = vadd.f32 0.0, %v663
          %v665 = vand.u32 %v400, 4294901760
          %v666 = vsub.f32 %v400, %v665
          %v667 = vand.u32 %v666, 4294901760
          %v668 = vsub.f32 %v666, %v667
          %v669 = vand.u32 %v668, 4294901760
          %670 = vmatmul.f32.gmra.mxu0 %v669
          %v671 = vpop.f32.mrf.mxu0
          %v672 = vadd.f32 0.0, %v671
          %v673 = vand.u32 %v403, 4294901760
          %v674 = vsub.f32 %v403, %v673
          %v675 = vand.u32 %v674, 4294901760
          %v676 = vsub.f32 %v674, %v675
          %v677 = vand.u32 %v676, 4294901760
          %678 = vmatmul.f32.gmra.mxu0 %v677
          %v679 = vpop.f32.mrf.mxu0
          %v680 = vadd.f32 0.0, %v679
          %v681 = vand.u32 %v406, 4294901760
          %v682 = vsub.f32 %v406, %v681
          %v683 = vand.u32 %v682, 4294901760
          %v684 = vsub.f32 %v682, %v683
          %v685 = vand.u32 %v684, 4294901760
          %686 = vmatmul.f32.gmra.mxu0 %v685
          %v687 = vpop.f32.mrf.mxu0
          %v688 = vadd.f32 0.0, %v687
          %689 = vdwg.mxu0
          %690 = vmatpush.msra.mxu0 0.0
          %691 = vmatpush.msra.mxu0 0.0
          %692 = vmatpush.msra.mxu0 0.0
          %693 = vmatpush.msra.mxu0 0.0
          %694 = vmatpush.msra.mxu0 0.0
          %695 = vmatpush.msra.mxu0 0.0
          %696 = vmatpush.msra.mxu0 0.0
          %697 = vmatpush.msra.mxu0 0.0
          %698 = vmatpush.msra.mxu0 0.0
          %699 = vmatpush.msra.mxu0 0.0
          %700 = vmatpush.msra.mxu0 0.0
          %701 = vmatpush.msra.mxu0 0.0
          %702 = vmatpush.msra.mxu0 0.0
          %703 = vmatpush.msra.mxu0 0.0
          %v704 = vand.u32 %v410, 4294901760
          %v705 = vsub.f32 %v410, %v704
          %v706 = vand.u32 %v705, 4294901760
          %v707 = vsub.f32 %v705, %v706
          %v708 = vand.u32 %v707, 4294901760
          %709 = vmatpush.msra.mxu0 %v708
          %v710 = vand.u32 %v307, 4294901760
          %v711 = vsub.f32 %v307, %v710
          %v712 = vand.u32 %v711, 4294901760
          %v713 = vsub.f32 %v711, %v712
          %v714 = vand.u32 %v713, 4294901760
          %715 = vmatpush.msra.mxu0 %v714
          %v716 = vand.u32 %v313, 4294901760
          %717 = vmatmul.f32.gmra.mxu0 %v716
          %v718 = vpop.f32.mrf.mxu0
          %v719 = vadd.f32 %v440, %v718
          %v720 = vand.u32 %v316, 4294901760
          %721 = vmatmul.f32.gmra.mxu0 %v720
          %v722 = vpop.f32.mrf.mxu0
          %v723 = vadd.f32 %v448, %v722
          %v724 = vand.u32 %v319, 4294901760
          %725 = vmatmul.f32.gmra.mxu0 %v724
          %v726 = vpop.f32.mrf.mxu0
          %v727 = vadd.f32 %v456, %v726
          %v728 = vand.u32 %v322, 4294901760
          %729 = vmatmul.f32.gmra.mxu0 %v728
          %v730 = vpop.f32.mrf.mxu0
          %v731 = vadd.f32 %v464, %v730
          %v732 = vand.u32 %v325, 4294901760
          %733 = vmatmul.f32.gmra.mxu0 %v732
          %v734 = vpop.f32.mrf.mxu0
          %v735 = vadd.f32 %v472, %v734
          %v736 = vand.u32 %v328, 4294901760
          %737 = vmatmul.f32.gmra.mxu0 %v736
          %v738 = vpop.f32.mrf.mxu0
          %v739 = vadd.f32 %v480, %v738
          %v740 = vand.u32 %v331, 4294901760
          %741 = vmatmul.f32.gmra.mxu0 %v740
          %v742 = vpop.f32.mrf.mxu0
          %v743 = vadd.f32 %v488, %v742
          %v744 = vand.u32 %v334, 4294901760
          %745 = vmatmul.f32.gmra.mxu0 %v744
          %v746 = vpop.f32.mrf.mxu0
          %v747 = vadd.f32 %v496, %v746
          %v748 = vand.u32 %v337, 4294901760
          %749 = vmatmul.f32.gmra.mxu0 %v748
          %v750 = vpop.f32.mrf.mxu0
          %v751 = vadd.f32 %v504, %v750
          %v752 = vand.u32 %v340, 4294901760
          %753 = vmatmul.f32.gmra.mxu0 %v752
          %v754 = vpop.f32.mrf.mxu0
          %v755 = vadd.f32 %v512, %v754
          %v756 = vand.u32 %v343, 4294901760
          %757 = vmatmul.f32.gmra.mxu0 %v756
          %v758 = vpop.f32.mrf.mxu0
          %v759 = vadd.f32 %v520, %v758
          %v760 = vand.u32 %v346, 4294901760
          %761 = vmatmul.f32.gmra.mxu0 %v760
          %v762 = vpop.f32.mrf.mxu0
          %v763 = vadd.f32 %v528, %v762
          %v764 = vand.u32 %v349, 4294901760
          %765 = vmatmul.f32.gmra.mxu0 %v764
          %v766 = vpop.f32.mrf.mxu0
          %v767 = vadd.f32 %v536, %v766
          %v768 = vand.u32 %v352, 4294901760
          %769 = vmatmul.f32.gmra.mxu0 %v768
          %v770 = vpop.f32.mrf.mxu0
          %v771 = vadd.f32 %v544, %v770
          %v772 = vand.u32 %v355, 4294901760
          %773 = vmatmul.f32.gmra.mxu0 %v772
          %v774 = vpop.f32.mrf.mxu0
          %v775 = vadd.f32 %v552, %v774
          %v776 = vand.u32 %v358, 4294901760
          %777 = vmatmul.f32.gmra.mxu0 %v776
          %v778 = vpop.f32.mrf.mxu0
          %v779 = vadd.f32 %v560, %v778
          %v780 = vand.u32 %v361, 4294901760
          %781 = vmatmul.f32.gmra.mxu0 %v780
          %v782 = vpop.f32.mrf.mxu0
          %v783 = vadd.f32 %v568, %v782
          %v784 = vand.u32 %v364, 4294901760
          %785 = vmatmul.f32.gmra.mxu0 %v784
          %v786 = vpop.f32.mrf.mxu0
          %v787 = vadd.f32 %v576, %v786
          %v788 = vand.u32 %v367, 4294901760
          %789 = vmatmul.f32.gmra.mxu0 %v788
          %v790 = vpop.f32.mrf.mxu0
          %v791 = vadd.f32 %v584, %v790
          %v792 = vand.u32 %v370, 4294901760
          %793 = vmatmul.f32.gmra.mxu0 %v792
          %v794 = vpop.f32.mrf.mxu0
          %v795 = vadd.f32 %v592, %v794
          %v796 = vand.u32 %v373, 4294901760
          %797 = vmatmul.f32.gmra.mxu0 %v796
          %v798 = vpop.f32.mrf.mxu0
          %v799 = vadd.f32 %v600, %v798
          %v800 = vand.u32 %v376, 4294901760
          %801 = vmatmul.f32.gmra.mxu0 %v800
          %v802 = vpop.f32.mrf.mxu0
          %v803 = vadd.f32 %v608, %v802
          %v804 = vand.u32 %v379, 4294901760
          %805 = vmatmul.f32.gmra.mxu0 %v804
          %v806 = vpop.f32.mrf.mxu0
          %v807 = vadd.f32 %v616, %v806
          %v808 = vand.u32 %v382, 4294901760
          %809 = vmatmul.f32.gmra.mxu0 %v808
          %v810 = vpop.f32.mrf.mxu0
          %v811 = vadd.f32 %v624, %v810
          %v812 = vand.u32 %v385, 4294901760
          %813 = vmatmul.f32.gmra.mxu0 %v812
          %v814 = vpop.f32.mrf.mxu0
          %v815 = vadd.f32 %v632, %v814
          %v816 = vand.u32 %v388, 4294901760
          %817 = vmatmul.f32.gmra.mxu0 %v816
          %v818 = vpop.f32.mrf.mxu0
          %v819 = vadd.f32 %v640, %v818
          %v820 = vand.u32 %v391, 4294901760
          %821 = vmatmul.f32.gmra.mxu0 %v820
          %v822 = vpop.f32.mrf.mxu0
          %v823 = vadd.f32 %v648, %v822
          %v824 = vand.u32 %v394, 4294901760
          %825 = vmatmul.f32.gmra.mxu0 %v824
          %v826 = vpop.f32.mrf.mxu0
          %v827 = vadd.f32 %v656, %v826
          %v828 = vand.u32 %v397, 4294901760
          %829 = vmatmul.f32.gmra.mxu0 %v828
          %v830 = vpop.f32.mrf.mxu0
          %v831 = vadd.f32 %v664, %v830
          %v832 = vand.u32 %v400, 4294901760
          %833 = vmatmul.f32.gmra.mxu0 %v832
          %v834 = vpop.f32.mrf.mxu0
          %v835 = vadd.f32 %v672, %v834
          %v836 = vand.u32 %v403, 4294901760
          %837 = vmatmul.f32.gmra.mxu0 %v836
          %v838 = vpop.f32.mrf.mxu0
          %v839 = vadd.f32 %v680, %v838
          %v840 = vand.u32 %v406, 4294901760
          %841 = vmatmul.f32.gmra.mxu0 %v840
          %v842 = vpop.f32.mrf.mxu0
          %v843 = vadd.f32 %v688, %v842
          %844 = vdwg.mxu0
          %845 = vmatpush.msra.mxu0 0.0
          %846 = vmatpush.msra.mxu0 0.0
          %847 = vmatpush.msra.mxu0 0.0
          %848 = vmatpush.msra.mxu0 0.0
          %849 = vmatpush.msra.mxu0 0.0
          %850 = vmatpush.msra.mxu0 0.0
          %851 = vmatpush.msra.mxu0 0.0
          %852 = vmatpush.msra.mxu0 0.0
          %853 = vmatpush.msra.mxu0 0.0
          %854 = vmatpush.msra.mxu0 0.0
          %855 = vmatpush.msra.mxu0 0.0
          %856 = vmatpush.msra.mxu0 0.0
          %857 = vmatpush.msra.mxu0 0.0
          %858 = vmatpush.msra.mxu0 0.0
          %v859 = vand.u32 %v410, 4294901760
          %v860 = vsub.f32 %v410, %v859
          %861 = vmatpush.msra.mxu0 %v860
          %v862 = vand.u32 %v307, 4294901760
          %v863 = vsub.f32 %v307, %v862
          %864 = vmatpush.msra.mxu0 %v863
          %v865 = vand.u32 %v313, 4294901760
          %v866 = vsub.f32 %v313, %v865
          %867 = vmatmul.f32.gmra.mxu0 %v866
          %v868 = vpop.f32.mrf.mxu0
          %v869 = vadd.f32 %v719, %v868
          %v870 = vand.u32 %v316, 4294901760
          %v871 = vsub.f32 %v316, %v870
          %872 = vmatmul.f32.gmra.mxu0 %v871
          %v873 = vpop.f32.mrf.mxu0
          %v874 = vadd.f32 %v723, %v873
          %v875 = vand.u32 %v319, 4294901760
          %v876 = vsub.f32 %v319, %v875
          %877 = vmatmul.f32.gmra.mxu0 %v876
          %v878 = vpop.f32.mrf.mxu0
          %v879 = vadd.f32 %v727, %v878
          %v880 = vand.u32 %v322, 4294901760
          %v881 = vsub.f32 %v322, %v880
          %882 = vmatmul.f32.gmra.mxu0 %v881
          %v883 = vpop.f32.mrf.mxu0
          %v884 = vadd.f32 %v731, %v883
          %v885 = vand.u32 %v325, 4294901760
          %v886 = vsub.f32 %v325, %v885
          %887 = vmatmul.f32.gmra.mxu0 %v886
          %v888 = vpop.f32.mrf.mxu0
          %v889 = vadd.f32 %v735, %v888
          %v890 = vand.u32 %v328, 4294901760
          %v891 = vsub.f32 %v328, %v890
          %892 = vmatmul.f32.gmra.mxu0 %v891
          %v893 = vpop.f32.mrf.mxu0
          %v894 = vadd.f32 %v739, %v893
          %v895 = vand.u32 %v331, 4294901760
          %v896 = vsub.f32 %v331, %v895
          %897 = vmatmul.f32.gmra.mxu0 %v896
          %v898 = vpop.f32.mrf.mxu0
          %v899 = vadd.f32 %v743, %v898
          %v900 = vand.u32 %v334, 4294901760
          %v901 = vsub.f32 %v334, %v900
          %902 = vmatmul.f32.gmra.mxu0 %v901
          %v903 = vpop.f32.mrf.mxu0
          %v904 = vadd.f32 %v747, %v903
          %v905 = vand.u32 %v337, 4294901760
          %v906 = vsub.f32 %v337, %v905
          %907 = vmatmul.f32.gmra.mxu0 %v906
          %v908 = vpop.f32.mrf.mxu0
          %v909 = vadd.f32 %v751, %v908
          %v910 = vand.u32 %v340, 4294901760
          %v911 = vsub.f32 %v340, %v910
          %912 = vmatmul.f32.gmra.mxu0 %v911
          %v913 = vpop.f32.mrf.mxu0
          %v914 = vadd.f32 %v755, %v913
          %v915 = vand.u32 %v343, 4294901760
          %v916 = vsub.f32 %v343, %v915
          %917 = vmatmul.f32.gmra.mxu0 %v916
          %v918 = vpop.f32.mrf.mxu0
          %v919 = vadd.f32 %v759, %v918
          %v920 = vand.u32 %v346, 4294901760
          %v921 = vsub.f32 %v346, %v920
          %922 = vmatmul.f32.gmra.mxu0 %v921
          %v923 = vpop.f32.mrf.mxu0
          %v924 = vadd.f32 %v763, %v923
          %v925 = vand.u32 %v349, 4294901760
          %v926 = vsub.f32 %v349, %v925
          %927 = vmatmul.f32.gmra.mxu0 %v926
          %v928 = vpop.f32.mrf.mxu0
          %v929 = vadd.f32 %v767, %v928
          %v930 = vand.u32 %v352, 4294901760
          %v931 = vsub.f32 %v352, %v930
          %932 = vmatmul.f32.gmra.mxu0 %v931
          %v933 = vpop.f32.mrf.mxu0
          %v934 = vadd.f32 %v771, %v933
          %v935 = vand.u32 %v355, 4294901760
          %v936 = vsub.f32 %v355, %v935
          %937 = vmatmul.f32.gmra.mxu0 %v936
          %v938 = vpop.f32.mrf.mxu0
          %v939 = vadd.f32 %v775, %v938
          %v940 = vand.u32 %v358, 4294901760
          %v941 = vsub.f32 %v358, %v940
          %942 = vmatmul.f32.gmra.mxu0 %v941
          %v943 = vpop.f32.mrf.mxu0
          %v944 = vadd.f32 %v779, %v943
          %v945 = vand.u32 %v361, 4294901760
          %v946 = vsub.f32 %v361, %v945
          %947 = vmatmul.f32.gmra.mxu0 %v946
          %v948 = vpop.f32.mrf.mxu0
          %v949 = vadd.f32 %v783, %v948
          %v950 = vand.u32 %v364, 4294901760
          %v951 = vsub.f32 %v364, %v950
          %952 = vmatmul.f32.gmra.mxu0 %v951
          %v953 = vpop.f32.mrf.mxu0
          %v954 = vadd.f32 %v787, %v953
          %v955 = vand.u32 %v367, 4294901760
          %v956 = vsub.f32 %v367, %v955
          %957 = vmatmul.f32.gmra.mxu0 %v956
          %v958 = vpop.f32.mrf.mxu0
          %v959 = vadd.f32 %v791, %v958
          %v960 = vand.u32 %v370, 4294901760
          %v961 = vsub.f32 %v370, %v960
          %962 = vmatmul.f32.gmra.mxu0 %v961
          %v963 = vpop.f32.mrf.mxu0
          %v964 = vadd.f32 %v795, %v963
          %v965 = vand.u32 %v373, 4294901760
          %v966 = vsub.f32 %v373, %v965
          %967 = vmatmul.f32.gmra.mxu0 %v966
          %v968 = vpop.f32.mrf.mxu0
          %v969 = vadd.f32 %v799, %v968
          %v970 = vand.u32 %v376, 4294901760
          %v971 = vsub.f32 %v376, %v970
          %972 = vmatmul.f32.gmra.mxu0 %v971
          %v973 = vpop.f32.mrf.mxu0
          %v974 = vadd.f32 %v803, %v973
          %v975 = vand.u32 %v379, 4294901760
          %v976 = vsub.f32 %v379, %v975
          %977 = vmatmul.f32.gmra.mxu0 %v976
          %v978 = vpop.f32.mrf.mxu0
          %v979 = vadd.f32 %v807, %v978
          %v980 = vand.u32 %v382, 4294901760
          %v981 = vsub.f32 %v382, %v980
          %982 = vmatmul.f32.gmra.mxu0 %v981
          %v983 = vpop.f32.mrf.mxu0
          %v984 = vadd.f32 %v811, %v983
          %v985 = vand.u32 %v385, 4294901760
          %v986 = vsub.f32 %v385, %v985
          %987 = vmatmul.f32.gmra.mxu0 %v986
          %v988 = vpop.f32.mrf.mxu0
          %v989 = vadd.f32 %v815, %v988
          %v990 = vand.u32 %v388, 4294901760
          %v991 = vsub.f32 %v388, %v990
          %992 = vmatmul.f32.gmra.mxu0 %v991
          %v993 = vpop.f32.mrf.mxu0
          %v994 = vadd.f32 %v819, %v993
          %v995 = vand.u32 %v391, 4294901760
          %v996 = vsub.f32 %v391, %v995
          %997 = vmatmul.f32.gmra.mxu0 %v996
          %v998 = vpop.f32.mrf.mxu0
          %v999 = vadd.f32 %v823, %v998
          %v1000 = vand.u32 %v394, 4294901760
          %v1001 = vsub.f32 %v394, %v1000
          %1002 = vmatmul.f32.gmra.mxu0 %v1001
          %v1003 = vpop.f32.mrf.mxu0
          %v1004 = vadd.f32 %v827, %v1003
          %v1005 = vand.u32 %v397, 4294901760
          %v1006 = vsub.f32 %v397, %v1005
          %1007 = vmatmul.f32.gmra.mxu0 %v1006
          %v1008 = vpop.f32.mrf.mxu0
          %v1009 = vadd.f32 %v831, %v1008
          %v1010 = vand.u32 %v400, 4294901760
          %v1011 = vsub.f32 %v400, %v1010
          %1012 = vmatmul.f32.gmra.mxu0 %v1011
          %v1013 = vpop.f32.mrf.mxu0
          %v1014 = vadd.f32 %v835, %v1013
          %v1015 = vand.u32 %v403, 4294901760
          %v1016 = vsub.f32 %v403, %v1015
          %1017 = vmatmul.f32.gmra.mxu0 %v1016
          %v1018 = vpop.f32.mrf.mxu0
          %v1019 = vadd.f32 %v839, %v1018
          %v1020 = vand.u32 %v406, 4294901760
          %v1021 = vsub.f32 %v406, %v1020
          %1022 = vmatmul.f32.gmra.mxu0 %v1021
          %v1023 = vpop.f32.mrf.mxu0
          %v1024 = vadd.f32 %v843, %v1023
          %1025 = vdwg.mxu0
          %1026 = vmatpush.msra.mxu0 0.0
          %1027 = vmatpush.msra.mxu0 0.0
          %1028 = vmatpush.msra.mxu0 0.0
          %1029 = vmatpush.msra.mxu0 0.0
          %1030 = vmatpush.msra.mxu0 0.0
          %1031 = vmatpush.msra.mxu0 0.0
          %1032 = vmatpush.msra.mxu0 0.0
          %1033 = vmatpush.msra.mxu0 0.0
          %1034 = vmatpush.msra.mxu0 0.0
          %1035 = vmatpush.msra.mxu0 0.0
          %1036 = vmatpush.msra.mxu0 0.0
          %1037 = vmatpush.msra.mxu0 0.0
          %1038 = vmatpush.msra.mxu0 0.0
          %1039 = vmatpush.msra.mxu0 0.0
          %v1040 = vand.u32 %v410, 4294901760
          %1041 = vmatpush.msra.mxu0 %v1040
          %v1042 = vand.u32 %v307, 4294901760
          %1043 = vmatpush.msra.mxu0 %v1042
          %v1044 = vand.u32 %v313, 4294901760
          %v1045 = vsub.f32 %v313, %v1044
          %v1046 = vand.u32 %v1045, 4294901760
          %1047 = vmatmul.f32.gmra.mxu0 %v1046
          %v1048 = vpop.f32.mrf.mxu0
          %v1049 = vadd.f32 %v869, %v1048
          %v1050 = vand.u32 %v316, 4294901760
          %v1051 = vsub.f32 %v316, %v1050
          %v1052 = vand.u32 %v1051, 4294901760
          %1053 = vmatmul.f32.gmra.mxu0 %v1052
          %v1054 = vpop.f32.mrf.mxu0
          %v1055 = vadd.f32 %v874, %v1054
          %v1056 = vand.u32 %v319, 4294901760
          %v1057 = vsub.f32 %v319, %v1056
          %v1058 = vand.u32 %v1057, 4294901760
          %1059 = vmatmul.f32.gmra.mxu0 %v1058
          %v1060 = vpop.f32.mrf.mxu0
          %v1061 = vadd.f32 %v879, %v1060
          %v1062 = vand.u32 %v322, 4294901760
          %v1063 = vsub.f32 %v322, %v1062
          %v1064 = vand.u32 %v1063, 4294901760
          %1065 = vmatmul.f32.gmra.mxu0 %v1064
          %v1066 = vpop.f32.mrf.mxu0
          %v1067 = vadd.f32 %v884, %v1066
          %v1068 = vand.u32 %v325, 4294901760
          %v1069 = vsub.f32 %v325, %v1068
          %v1070 = vand.u32 %v1069, 4294901760
          %1071 = vmatmul.f32.gmra.mxu0 %v1070
          %v1072 = vpop.f32.mrf.mxu0
          %v1073 = vadd.f32 %v889, %v1072
          %v1074 = vand.u32 %v328, 4294901760
          %v1075 = vsub.f32 %v328, %v1074
          %v1076 = vand.u32 %v1075, 4294901760
          %1077 = vmatmul.f32.gmra.mxu0 %v1076
          %v1078 = vpop.f32.mrf.mxu0
          %v1079 = vadd.f32 %v894, %v1078
          %v1080 = vand.u32 %v331, 4294901760
          %v1081 = vsub.f32 %v331, %v1080
          %v1082 = vand.u32 %v1081, 4294901760
          %1083 = vmatmul.f32.gmra.mxu0 %v1082
          %v1084 = vpop.f32.mrf.mxu0
          %v1085 = vadd.f32 %v899, %v1084
          %v1086 = vand.u32 %v334, 4294901760
          %v1087 = vsub.f32 %v334, %v1086
          %v1088 = vand.u32 %v1087, 4294901760
          %1089 = vmatmul.f32.gmra.mxu0 %v1088
          %v1090 = vpop.f32.mrf.mxu0
          %v1091 = vadd.f32 %v904, %v1090
          %v1092 = vand.u32 %v337, 4294901760
          %v1093 = vsub.f32 %v337, %v1092
          %v1094 = vand.u32 %v1093, 4294901760
          %1095 = vmatmul.f32.gmra.mxu0 %v1094
          %v1096 = vpop.f32.mrf.mxu0
          %v1097 = vadd.f32 %v909, %v1096
          %v1098 = vand.u32 %v340, 4294901760
          %v1099 = vsub.f32 %v340, %v1098
          %v1100 = vand.u32 %v1099, 4294901760
          %1101 = vmatmul.f32.gmra.mxu0 %v1100
          %v1102 = vpop.f32.mrf.mxu0
          %v1103 = vadd.f32 %v914, %v1102
          %v1104 = vand.u32 %v343, 4294901760
          %v1105 = vsub.f32 %v343, %v1104
          %v1106 = vand.u32 %v1105, 4294901760
          %1107 = vmatmul.f32.gmra.mxu0 %v1106
          %v1108 = vpop.f32.mrf.mxu0
          %v1109 = vadd.f32 %v919, %v1108
          %v1110 = vand.u32 %v346, 4294901760
          %v1111 = vsub.f32 %v346, %v1110
          %v1112 = vand.u32 %v1111, 4294901760
          %1113 = vmatmul.f32.gmra.mxu0 %v1112
          %v1114 = vpop.f32.mrf.mxu0
          %v1115 = vadd.f32 %v924, %v1114
          %v1116 = vand.u32 %v349, 4294901760
          %v1117 = vsub.f32 %v349, %v1116
          %v1118 = vand.u32 %v1117, 4294901760
          %1119 = vmatmul.f32.gmra.mxu0 %v1118
          %v1120 = vpop.f32.mrf.mxu0
          %v1121 = vadd.f32 %v929, %v1120
          %v1122 = vand.u32 %v352, 4294901760
          %v1123 = vsub.f32 %v352, %v1122
          %v1124 = vand.u32 %v1123, 4294901760
          %1125 = vmatmul.f32.gmra.mxu0 %v1124
          %v1126 = vpop.f32.mrf.mxu0
          %v1127 = vadd.f32 %v934, %v1126
          %v1128 = vand.u32 %v355, 4294901760
          %v1129 = vsub.f32 %v355, %v1128
          %v1130 = vand.u32 %v1129, 4294901760
          %1131 = vmatmul.f32.gmra.mxu0 %v1130
          %v1132 = vpop.f32.mrf.mxu0
          %v1133 = vadd.f32 %v939, %v1132
          %v1134 = vand.u32 %v358, 4294901760
          %v1135 = vsub.f32 %v358, %v1134
          %v1136 = vand.u32 %v1135, 4294901760
          %1137 = vmatmul.f32.gmra.mxu0 %v1136
          %v1138 = vpop.f32.mrf.mxu0
          %v1139 = vadd.f32 %v944, %v1138
          %v1140 = vand.u32 %v361, 4294901760
          %v1141 = vsub.f32 %v361, %v1140
          %v1142 = vand.u32 %v1141, 4294901760
          %1143 = vmatmul.f32.gmra.mxu0 %v1142
          %v1144 = vpop.f32.mrf.mxu0
          %v1145 = vadd.f32 %v949, %v1144
          %v1146 = vand.u32 %v364, 4294901760
          %v1147 = vsub.f32 %v364, %v1146
          %v1148 = vand.u32 %v1147, 4294901760
          %1149 = vmatmul.f32.gmra.mxu0 %v1148
          %v1150 = vpop.f32.mrf.mxu0
          %v1151 = vadd.f32 %v954, %v1150
          %v1152 = vand.u32 %v367, 4294901760
          %v1153 = vsub.f32 %v367, %v1152
          %v1154 = vand.u32 %v1153, 4294901760
          %1155 = vmatmul.f32.gmra.mxu0 %v1154
          %v1156 = vpop.f32.mrf.mxu0
          %v1157 = vadd.f32 %v959, %v1156
          %v1158 = vand.u32 %v370, 4294901760
          %v1159 = vsub.f32 %v370, %v1158
          %v1160 = vand.u32 %v1159, 4294901760
          %1161 = vmatmul.f32.gmra.mxu0 %v1160
          %v1162 = vpop.f32.mrf.mxu0
          %v1163 = vadd.f32 %v964, %v1162
          %v1164 = vand.u32 %v373, 4294901760
          %v1165 = vsub.f32 %v373, %v1164
          %v1166 = vand.u32 %v1165, 4294901760
          %1167 = vmatmul.f32.gmra.mxu0 %v1166
          %v1168 = vpop.f32.mrf.mxu0
          %v1169 = vadd.f32 %v969, %v1168
          %v1170 = vand.u32 %v376, 4294901760
          %v1171 = vsub.f32 %v376, %v1170
          %v1172 = vand.u32 %v1171, 4294901760
          %1173 = vmatmul.f32.gmra.mxu0 %v1172
          %v1174 = vpop.f32.mrf.mxu0
          %v1175 = vadd.f32 %v974, %v1174
          %v1176 = vand.u32 %v379, 4294901760
          %v1177 = vsub.f32 %v379, %v1176
          %v1178 = vand.u32 %v1177, 4294901760
          %1179 = vmatmul.f32.gmra.mxu0 %v1178
          %v1180 = vpop.f32.mrf.mxu0
          %v1181 = vadd.f32 %v979, %v1180
          %v1182 = vand.u32 %v382, 4294901760
          %v1183 = vsub.f32 %v382, %v1182
          %v1184 = vand.u32 %v1183, 4294901760
          %1185 = vmatmul.f32.gmra.mxu0 %v1184
          %v1186 = vpop.f32.mrf.mxu0
          %v1187 = vadd.f32 %v984, %v1186
          %v1188 = vand.u32 %v385, 4294901760
          %v1189 = vsub.f32 %v385, %v1188
          %v1190 = vand.u32 %v1189, 4294901760
          %1191 = vmatmul.f32.gmra.mxu0 %v1190
          %v1192 = vpop.f32.mrf.mxu0
          %v1193 = vadd.f32 %v989, %v1192
          %v1194 = vand.u32 %v388, 4294901760
          %v1195 = vsub.f32 %v388, %v1194
          %v1196 = vand.u32 %v1195, 4294901760
          %1197 = vmatmul.f32.gmra.mxu0 %v1196
          %v1198 = vpop.f32.mrf.mxu0
          %v1199 = vadd.f32 %v994, %v1198
          %v1200 = vand.u32 %v391, 4294901760
          %v1201 = vsub.f32 %v391, %v1200
          %v1202 = vand.u32 %v1201, 4294901760
          %1203 = vmatmul.f32.gmra.mxu0 %v1202
          %v1204 = vpop.f32.mrf.mxu0
          %v1205 = vadd.f32 %v999, %v1204
          %v1206 = vand.u32 %v394, 4294901760
          %v1207 = vsub.f32 %v394, %v1206
          %v1208 = vand.u32 %v1207, 4294901760
          %1209 = vmatmul.f32.gmra.mxu0 %v1208
          %v1210 = vpop.f32.mrf.mxu0
          %v1211 = vadd.f32 %v1004, %v1210
          %v1212 = vand.u32 %v397, 4294901760
          %v1213 = vsub.f32 %v397, %v1212
          %v1214 = vand.u32 %v1213, 4294901760
          %1215 = vmatmul.f32.gmra.mxu0 %v1214
          %v1216 = vpop.f32.mrf.mxu0
          %v1217 = vadd.f32 %v1009, %v1216
          %v1218 = vand.u32 %v400, 4294901760
          %v1219 = vsub.f32 %v400, %v1218
          %v1220 = vand.u32 %v1219, 4294901760
          %1221 = vmatmul.f32.gmra.mxu0 %v1220
          %v1222 = vpop.f32.mrf.mxu0
          %v1223 = vadd.f32 %v1014, %v1222
          %v1224 = vand.u32 %v403, 4294901760
          %v1225 = vsub.f32 %v403, %v1224
          %v1226 = vand.u32 %v1225, 4294901760
          %1227 = vmatmul.f32.gmra.mxu0 %v1226
          %v1228 = vpop.f32.mrf.mxu0
          %v1229 = vadd.f32 %v1019, %v1228
          %v1230 = vand.u32 %v406, 4294901760
          %v1231 = vsub.f32 %v406, %v1230
          %v1232 = vand.u32 %v1231, 4294901760
          %1233 = vmatmul.f32.gmra.mxu0 %v1232
          %v1234 = vpop.f32.mrf.mxu0
          %v1235 = vadd.f32 %v1024, %v1234
          %1236 = vdwg.mxu0
          %1237 = vmatpush.msra.mxu0 0.0
          %1238 = vmatpush.msra.mxu0 0.0
          %1239 = vmatpush.msra.mxu0 0.0
          %1240 = vmatpush.msra.mxu0 0.0
          %1241 = vmatpush.msra.mxu0 0.0
          %1242 = vmatpush.msra.mxu0 0.0
          %1243 = vmatpush.msra.mxu0 0.0
          %1244 = vmatpush.msra.mxu0 0.0
          %1245 = vmatpush.msra.mxu0 0.0
          %1246 = vmatpush.msra.mxu0 0.0
          %1247 = vmatpush.msra.mxu0 0.0
          %1248 = vmatpush.msra.mxu0 0.0
          %1249 = vmatpush.msra.mxu0 0.0
          %1250 = vmatpush.msra.mxu0 0.0
          %v1251 = vand.u32 %v410, 4294901760
          %v1252 = vsub.f32 %v410, %v1251
          %v1253 = vand.u32 %v1252, 4294901760
          %1254 = vmatpush.msra.mxu0 %v1253
          %v1255 = vand.u32 %v307, 4294901760
          %v1256 = vsub.f32 %v307, %v1255
          %v1257 = vand.u32 %v1256, 4294901760
          %1258 = vmatpush.msra.mxu0 %v1257
          %v1259 = vand.u32 %v313, 4294901760
          %1260 = vmatmul.f32.gmra.mxu0 %v1259
          %v1261 = vpop.f32.mrf.mxu0
          %v1262 = vadd.f32 %v1049, %v1261
          %v1263 = vand.u32 %v316, 4294901760
          %1264 = vmatmul.f32.gmra.mxu0 %v1263
          %v1265 = vpop.f32.mrf.mxu0
          %v1266 = vadd.f32 %v1055, %v1265
          %v1267 = vand.u32 %v319, 4294901760
          %1268 = vmatmul.f32.gmra.mxu0 %v1267
          %v1269 = vpop.f32.mrf.mxu0
          %v1270 = vadd.f32 %v1061, %v1269
          %v1271 = vand.u32 %v322, 4294901760
          %1272 = vmatmul.f32.gmra.mxu0 %v1271
          %v1273 = vpop.f32.mrf.mxu0
          %v1274 = vadd.f32 %v1067, %v1273
          %v1275 = vand.u32 %v325, 4294901760
          %1276 = vmatmul.f32.gmra.mxu0 %v1275
          %v1277 = vpop.f32.mrf.mxu0
          %v1278 = vadd.f32 %v1073, %v1277
          %v1279 = vand.u32 %v328, 4294901760
          %1280 = vmatmul.f32.gmra.mxu0 %v1279
          %v1281 = vpop.f32.mrf.mxu0
          %v1282 = vadd.f32 %v1079, %v1281
          %v1283 = vand.u32 %v331, 4294901760
          %1284 = vmatmul.f32.gmra.mxu0 %v1283
          %v1285 = vpop.f32.mrf.mxu0
          %v1286 = vadd.f32 %v1085, %v1285
          %v1287 = vand.u32 %v334, 4294901760
          %1288 = vmatmul.f32.gmra.mxu0 %v1287
          %v1289 = vpop.f32.mrf.mxu0
          %v1290 = vadd.f32 %v1091, %v1289
          %v1291 = vand.u32 %v337, 4294901760
          %1292 = vmatmul.f32.gmra.mxu0 %v1291
          %v1293 = vpop.f32.mrf.mxu0
          %v1294 = vadd.f32 %v1097, %v1293
          %v1295 = vand.u32 %v340, 4294901760
          %1296 = vmatmul.f32.gmra.mxu0 %v1295
          %v1297 = vpop.f32.mrf.mxu0
          %v1298 = vadd.f32 %v1103, %v1297
          %v1299 = vand.u32 %v343, 4294901760
          %1300 = vmatmul.f32.gmra.mxu0 %v1299
          %v1301 = vpop.f32.mrf.mxu0
          %v1302 = vadd.f32 %v1109, %v1301
          %v1303 = vand.u32 %v346, 4294901760
          %1304 = vmatmul.f32.gmra.mxu0 %v1303
          %v1305 = vpop.f32.mrf.mxu0
          %v1306 = vadd.f32 %v1115, %v1305
          %v1307 = vand.u32 %v349, 4294901760
          %1308 = vmatmul.f32.gmra.mxu0 %v1307
          %v1309 = vpop.f32.mrf.mxu0
          %v1310 = vadd.f32 %v1121, %v1309
          %v1311 = vand.u32 %v352, 4294901760
          %1312 = vmatmul.f32.gmra.mxu0 %v1311
          %v1313 = vpop.f32.mrf.mxu0
          %v1314 = vadd.f32 %v1127, %v1313
          %v1315 = vand.u32 %v355, 4294901760
          %1316 = vmatmul.f32.gmra.mxu0 %v1315
          %v1317 = vpop.f32.mrf.mxu0
          %v1318 = vadd.f32 %v1133, %v1317
          %v1319 = vand.u32 %v358, 4294901760
          %1320 = vmatmul.f32.gmra.mxu0 %v1319
          %v1321 = vpop.f32.mrf.mxu0
          %v1322 = vadd.f32 %v1139, %v1321
          %v1323 = vand.u32 %v361, 4294901760
          %1324 = vmatmul.f32.gmra.mxu0 %v1323
          %v1325 = vpop.f32.mrf.mxu0
          %v1326 = vadd.f32 %v1145, %v1325
          %v1327 = vand.u32 %v364, 4294901760
          %1328 = vmatmul.f32.gmra.mxu0 %v1327
          %v1329 = vpop.f32.mrf.mxu0
          %v1330 = vadd.f32 %v1151, %v1329
          %v1331 = vand.u32 %v367, 4294901760
          %1332 = vmatmul.f32.gmra.mxu0 %v1331
          %v1333 = vpop.f32.mrf.mxu0
          %v1334 = vadd.f32 %v1157, %v1333
          %v1335 = vand.u32 %v370, 4294901760
          %1336 = vmatmul.f32.gmra.mxu0 %v1335
          %v1337 = vpop.f32.mrf.mxu0
          %v1338 = vadd.f32 %v1163, %v1337
          %v1339 = vand.u32 %v373, 4294901760
          %1340 = vmatmul.f32.gmra.mxu0 %v1339
          %v1341 = vpop.f32.mrf.mxu0
          %v1342 = vadd.f32 %v1169, %v1341
          %v1343 = vand.u32 %v376, 4294901760
          %1344 = vmatmul.f32.gmra.mxu0 %v1343
          %v1345 = vpop.f32.mrf.mxu0
          %v1346 = vadd.f32 %v1175, %v1345
          %v1347 = vand.u32 %v379, 4294901760
          %1348 = vmatmul.f32.gmra.mxu0 %v1347
          %v1349 = vpop.f32.mrf.mxu0
          %v1350 = vadd.f32 %v1181, %v1349
          %v1351 = vand.u32 %v382, 4294901760
          %1352 = vmatmul.f32.gmra.mxu0 %v1351
          %v1353 = vpop.f32.mrf.mxu0
          %v1354 = vadd.f32 %v1187, %v1353
          %v1355 = vand.u32 %v385, 4294901760
          %1356 = vmatmul.f32.gmra.mxu0 %v1355
          %v1357 = vpop.f32.mrf.mxu0
          %v1358 = vadd.f32 %v1193, %v1357
          %v1359 = vand.u32 %v388, 4294901760
          %1360 = vmatmul.f32.gmra.mxu0 %v1359
          %v1361 = vpop.f32.mrf.mxu0
          %v1362 = vadd.f32 %v1199, %v1361
          %v1363 = vand.u32 %v391, 4294901760
          %1364 = vmatmul.f32.gmra.mxu0 %v1363
          %v1365 = vpop.f32.mrf.mxu0
          %v1366 = vadd.f32 %v1205, %v1365
          %v1367 = vand.u32 %v394, 4294901760
          %1368 = vmatmul.f32.gmra.mxu0 %v1367
          %v1369 = vpop.f32.mrf.mxu0
          %v1370 = vadd.f32 %v1211, %v1369
          %v1371 = vand.u32 %v397, 4294901760
          %1372 = vmatmul.f32.gmra.mxu0 %v1371
          %v1373 = vpop.f32.mrf.mxu0
          %v1374 = vadd.f32 %v1217, %v1373
          %v1375 = vand.u32 %v400, 4294901760
          %1376 = vmatmul.f32.gmra.mxu0 %v1375
          %v1377 = vpop.f32.mrf.mxu0
          %v1378 = vadd.f32 %v1223, %v1377
          %v1379 = vand.u32 %v403, 4294901760
          %1380 = vmatmul.f32.gmra.mxu0 %v1379
          %v1381 = vpop.f32.mrf.mxu0
          %v1382 = vadd.f32 %v1229, %v1381
          %v1383 = vand.u32 %v406, 4294901760
          %1384 = vmatmul.f32.gmra.mxu0 %v1383
          %v1385 = vpop.f32.mrf.mxu0
          %v1386 = vadd.f32 %v1235, %v1385
          %1387 = vdwg.mxu0
          %1388 = vmatpush.msra.mxu0 0.0
          %1389 = vmatpush.msra.mxu0 0.0
          %1390 = vmatpush.msra.mxu0 0.0
          %1391 = vmatpush.msra.mxu0 0.0
          %1392 = vmatpush.msra.mxu0 0.0
          %1393 = vmatpush.msra.mxu0 0.0
          %1394 = vmatpush.msra.mxu0 0.0
          %1395 = vmatpush.msra.mxu0 0.0
          %1396 = vmatpush.msra.mxu0 0.0
          %1397 = vmatpush.msra.mxu0 0.0
          %1398 = vmatpush.msra.mxu0 0.0
          %1399 = vmatpush.msra.mxu0 0.0
          %1400 = vmatpush.msra.mxu0 0.0
          %1401 = vmatpush.msra.mxu0 0.0
          %v1402 = vand.u32 %v410, 4294901760
          %1403 = vmatpush.msra.mxu0 %v1402
          %v1404 = vand.u32 %v307, 4294901760
          %1405 = vmatpush.msra.mxu0 %v1404
          %v1406 = vand.u32 %v313, 4294901760
          %1407 = vmatmul.f32.gmra.mxu0 %v1406
          %v1408 = vpop.f32.mrf.mxu0
          %v1409 = vadd.f32 %v1262, %v1408
          %v1410 = vand.u32 %v316, 4294901760
          %1411 = vmatmul.f32.gmra.mxu0 %v1410
          %v1412 = vpop.f32.mrf.mxu0
          %v1413 = vadd.f32 %v1266, %v1412
          %v1414 = vand.u32 %v319, 4294901760
          %1415 = vmatmul.f32.gmra.mxu0 %v1414
          %v1416 = vpop.f32.mrf.mxu0
          %v1417 = vadd.f32 %v1270, %v1416
          %v1418 = vand.u32 %v322, 4294901760
          %1419 = vmatmul.f32.gmra.mxu0 %v1418
          %v1420 = vpop.f32.mrf.mxu0
          %v1421 = vadd.f32 %v1274, %v1420
          %v1422 = vand.u32 %v325, 4294901760
          %1423 = vmatmul.f32.gmra.mxu0 %v1422
          %v1424 = vpop.f32.mrf.mxu0
          %v1425 = vadd.f32 %v1278, %v1424
          %v1426 = vand.u32 %v328, 4294901760
          %1427 = vmatmul.f32.gmra.mxu0 %v1426
          %v1428 = vpop.f32.mrf.mxu0
          %v1429 = vadd.f32 %v1282, %v1428
          %v1430 = vand.u32 %v331, 4294901760
          %1431 = vmatmul.f32.gmra.mxu0 %v1430
          %v1432 = vpop.f32.mrf.mxu0
          %v1433 = vadd.f32 %v1286, %v1432
          %v1434 = vand.u32 %v334, 4294901760
          %1435 = vmatmul.f32.gmra.mxu0 %v1434
          %v1436 = vpop.f32.mrf.mxu0
          %v1437 = vadd.f32 %v1290, %v1436
          %v1438 = vand.u32 %v337, 4294901760
          %1439 = vmatmul.f32.gmra.mxu0 %v1438
          %v1440 = vpop.f32.mrf.mxu0
          %v1441 = vadd.f32 %v1294, %v1440
          %v1442 = vand.u32 %v340, 4294901760
          %1443 = vmatmul.f32.gmra.mxu0 %v1442
          %v1444 = vpop.f32.mrf.mxu0
          %v1445 = vadd.f32 %v1298, %v1444
          %v1446 = vand.u32 %v343, 4294901760
          %1447 = vmatmul.f32.gmra.mxu0 %v1446
          %v1448 = vpop.f32.mrf.mxu0
          %v1449 = vadd.f32 %v1302, %v1448
          %v1450 = vand.u32 %v346, 4294901760
          %1451 = vmatmul.f32.gmra.mxu0 %v1450
          %v1452 = vpop.f32.mrf.mxu0
          %v1453 = vadd.f32 %v1306, %v1452
          %v1454 = vand.u32 %v349, 4294901760
          %1455 = vmatmul.f32.gmra.mxu0 %v1454
          %v1456 = vpop.f32.mrf.mxu0
          %v1457 = vadd.f32 %v1310, %v1456
          %v1458 = vand.u32 %v352, 4294901760
          %1459 = vmatmul.f32.gmra.mxu0 %v1458
          %v1460 = vpop.f32.mrf.mxu0
          %v1461 = vadd.f32 %v1314, %v1460
          %v1462 = vand.u32 %v355, 4294901760
          %1463 = vmatmul.f32.gmra.mxu0 %v1462
          %v1464 = vpop.f32.mrf.mxu0
          %v1465 = vadd.f32 %v1318, %v1464
          %v1466 = vand.u32 %v358, 4294901760
          %1467 = vmatmul.f32.gmra.mxu0 %v1466
          %v1468 = vpop.f32.mrf.mxu0
          %v1469 = vadd.f32 %v1322, %v1468
          %v1470 = vand.u32 %v361, 4294901760
          %1471 = vmatmul.f32.gmra.mxu0 %v1470
          %v1472 = vpop.f32.mrf.mxu0
          %v1473 = vadd.f32 %v1326, %v1472
          %v1474 = vand.u32 %v364, 4294901760
          %1475 = vmatmul.f32.gmra.mxu0 %v1474
          %v1476 = vpop.f32.mrf.mxu0
          %v1477 = vadd.f32 %v1330, %v1476
          %v1478 = vand.u32 %v367, 4294901760
          %1479 = vmatmul.f32.gmra.mxu0 %v1478
          %v1480 = vpop.f32.mrf.mxu0
          %v1481 = vadd.f32 %v1334, %v1480
          %v1482 = vand.u32 %v370, 4294901760
          %1483 = vmatmul.f32.gmra.mxu0 %v1482
          %v1484 = vpop.f32.mrf.mxu0
          %v1485 = vadd.f32 %v1338, %v1484
          %v1486 = vand.u32 %v373, 4294901760
          %1487 = vmatmul.f32.gmra.mxu0 %v1486
          %v1488 = vpop.f32.mrf.mxu0
          %v1489 = vadd.f32 %v1342, %v1488
          %v1490 = vand.u32 %v376, 4294901760
          %1491 = vmatmul.f32.gmra.mxu0 %v1490
          %v1492 = vpop.f32.mrf.mxu0
          %v1493 = vadd.f32 %v1346, %v1492
          %v1494 = vand.u32 %v379, 4294901760
          %1495 = vmatmul.f32.gmra.mxu0 %v1494
          %v1496 = vpop.f32.mrf.mxu0
          %v1497 = vadd.f32 %v1350, %v1496
          %v1498 = vand.u32 %v382, 4294901760
          %1499 = vmatmul.f32.gmra.mxu0 %v1498
          %v1500 = vpop.f32.mrf.mxu0
          %v1501 = vadd.f32 %v1354, %v1500
          %v1502 = vand.u32 %v385, 4294901760
          %1503 = vmatmul.f32.gmra.mxu0 %v1502
          %v1504 = vpop.f32.mrf.mxu0
          %v1505 = vadd.f32 %v1358, %v1504
          %v1506 = vand.u32 %v388, 4294901760
          %1507 = vmatmul.f32.gmra.mxu0 %v1506
          %v1508 = vpop.f32.mrf.mxu0
          %v1509 = vadd.f32 %v1362, %v1508
          %v1510 = vand.u32 %v391, 4294901760
          %1511 = vmatmul.f32.gmra.mxu0 %v1510
          %v1512 = vpop.f32.mrf.mxu0
          %v1513 = vadd.f32 %v1366, %v1512
          %v1514 = vand.u32 %v394, 4294901760
          %1515 = vmatmul.f32.gmra.mxu0 %v1514
          %v1516 = vpop.f32.mrf.mxu0
          %v1517 = vadd.f32 %v1370, %v1516
          %v1518 = vand.u32 %v397, 4294901760
          %1519 = vmatmul.f32.gmra.mxu0 %v1518
          %v1520 = vpop.f32.mrf.mxu0
          %v1521 = vadd.f32 %v1374, %v1520
          %v1522 = vand.u32 %v400, 4294901760
          %1523 = vmatmul.f32.gmra.mxu0 %v1522
          %v1524 = vpop.f32.mrf.mxu0
          %v1525 = vadd.f32 %v1378, %v1524
          %v1526 = vand.u32 %v403, 4294901760
          %1527 = vmatmul.f32.gmra.mxu0 %v1526
          %v1528 = vpop.f32.mrf.mxu0
          %v1529 = vadd.f32 %v1382, %v1528
          %v1530 = vand.u32 %v406, 4294901760
          %1531 = vmatmul.f32.gmra.mxu0 %v1530
          %v1532 = vpop.f32.mrf.mxu0
          %v1533 = vadd.f32 %v1386, %v1532
          %1534 = vdwg.mxu0
          %1535 = vmatpush.msra.mxu0 0.0
          %1536 = vmatpush.msra.mxu0 0.0
          %1537 = vmatpush.msra.mxu0 0.0
          %1538 = vmatpush.msra.mxu0 0.0
          %1539 = vmatpush.msra.mxu0 0.0
          %1540 = vmatpush.msra.mxu0 0.0
          %1541 = vmatpush.msra.mxu0 0.0
          %1542 = vmatpush.msra.mxu0 0.0
          %1543 = vmatpush.msra.mxu0 0.0
          %1544 = vmatpush.msra.mxu0 0.0
          %1545 = vmatpush.msra.mxu0 0.0
          %1546 = vmatpush.msra.mxu0 0.0
          %1547 = vmatpush.msra.mxu0 0.0
          %1548 = vmatpush.msra.mxu0 0.0
          %v1549 = vand.u32 %v413, 4294901760
          %1550 = vmatpush.msra.mxu0 %v1549
          %v1551 = vand.u32 %v308, 4294901760
          %1552 = vmatpush.msra.mxu0 %v1551
          %v1553 = vand.u32 %v313, 4294901760
          %v1554 = vsub.f32 %v313, %v1553
          %v1555 = vand.u32 %v1554, 4294901760
          %v1556 = vsub.f32 %v1554, %v1555
          %v1557 = vand.u32 %v1556, 4294901760
          %1558 = vmatmul.f32.gmra.mxu0 %v1557
          %v1559 = vpop.f32.mrf.mxu0
          %v1560 = vadd.f32 0.0, %v1559
          %v1561 = vand.u32 %v316, 4294901760
          %v1562 = vsub.f32 %v316, %v1561
          %v1563 = vand.u32 %v1562, 4294901760
          %v1564 = vsub.f32 %v1562, %v1563
          %v1565 = vand.u32 %v1564, 4294901760
          %1566 = vmatmul.f32.gmra.mxu0 %v1565
          %v1567 = vpop.f32.mrf.mxu0
          %v1568 = vadd.f32 0.0, %v1567
          %v1569 = vand.u32 %v319, 4294901760
          %v1570 = vsub.f32 %v319, %v1569
          %v1571 = vand.u32 %v1570, 4294901760
          %v1572 = vsub.f32 %v1570, %v1571
          %v1573 = vand.u32 %v1572, 4294901760
          %1574 = vmatmul.f32.gmra.mxu0 %v1573
          %v1575 = vpop.f32.mrf.mxu0
          %v1576 = vadd.f32 0.0, %v1575
          %v1577 = vand.u32 %v322, 4294901760
          %v1578 = vsub.f32 %v322, %v1577
          %v1579 = vand.u32 %v1578, 4294901760
          %v1580 = vsub.f32 %v1578, %v1579
          %v1581 = vand.u32 %v1580, 4294901760
          %1582 = vmatmul.f32.gmra.mxu0 %v1581
          %v1583 = vpop.f32.mrf.mxu0
          %v1584 = vadd.f32 0.0, %v1583
          %v1585 = vand.u32 %v325, 4294901760
          %v1586 = vsub.f32 %v325, %v1585
          %v1587 = vand.u32 %v1586, 4294901760
          %v1588 = vsub.f32 %v1586, %v1587
          %v1589 = vand.u32 %v1588, 4294901760
          %1590 = vmatmul.f32.gmra.mxu0 %v1589
          %v1591 = vpop.f32.mrf.mxu0
          %v1592 = vadd.f32 0.0, %v1591
          %v1593 = vand.u32 %v328, 4294901760
          %v1594 = vsub.f32 %v328, %v1593
          %v1595 = vand.u32 %v1594, 4294901760
          %v1596 = vsub.f32 %v1594, %v1595
          %v1597 = vand.u32 %v1596, 4294901760
          %1598 = vmatmul.f32.gmra.mxu0 %v1597
          %v1599 = vpop.f32.mrf.mxu0
          %v1600 = vadd.f32 0.0, %v1599
          %v1601 = vand.u32 %v331, 4294901760
          %v1602 = vsub.f32 %v331, %v1601
          %v1603 = vand.u32 %v1602, 4294901760
          %v1604 = vsub.f32 %v1602, %v1603
          %v1605 = vand.u32 %v1604, 4294901760
          %1606 = vmatmul.f32.gmra.mxu0 %v1605
          %v1607 = vpop.f32.mrf.mxu0
          %v1608 = vadd.f32 0.0, %v1607
          %v1609 = vand.u32 %v334, 4294901760
          %v1610 = vsub.f32 %v334, %v1609
          %v1611 = vand.u32 %v1610, 4294901760
          %v1612 = vsub.f32 %v1610, %v1611
          %v1613 = vand.u32 %v1612, 4294901760
          %1614 = vmatmul.f32.gmra.mxu0 %v1613
          %v1615 = vpop.f32.mrf.mxu0
          %v1616 = vadd.f32 0.0, %v1615
          %v1617 = vand.u32 %v337, 4294901760
          %v1618 = vsub.f32 %v337, %v1617
          %v1619 = vand.u32 %v1618, 4294901760
          %v1620 = vsub.f32 %v1618, %v1619
          %v1621 = vand.u32 %v1620, 4294901760
          %1622 = vmatmul.f32.gmra.mxu0 %v1621
          %v1623 = vpop.f32.mrf.mxu0
          %v1624 = vadd.f32 0.0, %v1623
          %v1625 = vand.u32 %v340, 4294901760
          %v1626 = vsub.f32 %v340, %v1625
          %v1627 = vand.u32 %v1626, 4294901760
          %v1628 = vsub.f32 %v1626, %v1627
          %v1629 = vand.u32 %v1628, 4294901760
          %1630 = vmatmul.f32.gmra.mxu0 %v1629
          %v1631 = vpop.f32.mrf.mxu0
          %v1632 = vadd.f32 0.0, %v1631
          %v1633 = vand.u32 %v343, 4294901760
          %v1634 = vsub.f32 %v343, %v1633
          %v1635 = vand.u32 %v1634, 4294901760
          %v1636 = vsub.f32 %v1634, %v1635
          %v1637 = vand.u32 %v1636, 4294901760
          %1638 = vmatmul.f32.gmra.mxu0 %v1637
          %v1639 = vpop.f32.mrf.mxu0
          %v1640 = vadd.f32 0.0, %v1639
          %v1641 = vand.u32 %v346, 4294901760
          %v1642 = vsub.f32 %v346, %v1641
          %v1643 = vand.u32 %v1642, 4294901760
          %v1644 = vsub.f32 %v1642, %v1643
          %v1645 = vand.u32 %v1644, 4294901760
          %1646 = vmatmul.f32.gmra.mxu0 %v1645
          %v1647 = vpop.f32.mrf.mxu0
          %v1648 = vadd.f32 0.0, %v1647
          %v1649 = vand.u32 %v349, 4294901760
          %v1650 = vsub.f32 %v349, %v1649
          %v1651 = vand.u32 %v1650, 4294901760
          %v1652 = vsub.f32 %v1650, %v1651
          %v1653 = vand.u32 %v1652, 4294901760
          %1654 = vmatmul.f32.gmra.mxu0 %v1653
          %v1655 = vpop.f32.mrf.mxu0
          %v1656 = vadd.f32 0.0, %v1655
          %v1657 = vand.u32 %v352, 4294901760
          %v1658 = vsub.f32 %v352, %v1657
          %v1659 = vand.u32 %v1658, 4294901760
          %v1660 = vsub.f32 %v1658, %v1659
          %v1661 = vand.u32 %v1660, 4294901760
          %1662 = vmatmul.f32.gmra.mxu0 %v1661
          %v1663 = vpop.f32.mrf.mxu0
          %v1664 = vadd.f32 0.0, %v1663
          %v1665 = vand.u32 %v355, 4294901760
          %v1666 = vsub.f32 %v355, %v1665
          %v1667 = vand.u32 %v1666, 4294901760
          %v1668 = vsub.f32 %v1666, %v1667
          %v1669 = vand.u32 %v1668, 4294901760
          %1670 = vmatmul.f32.gmra.mxu0 %v1669
          %v1671 = vpop.f32.mrf.mxu0
          %v1672 = vadd.f32 0.0, %v1671
          %v1673 = vand.u32 %v358, 4294901760
          %v1674 = vsub.f32 %v358, %v1673
          %v1675 = vand.u32 %v1674, 4294901760
          %v1676 = vsub.f32 %v1674, %v1675
          %v1677 = vand.u32 %v1676, 4294901760
          %1678 = vmatmul.f32.gmra.mxu0 %v1677
          %v1679 = vpop.f32.mrf.mxu0
          %v1680 = vadd.f32 0.0, %v1679
          %v1681 = vand.u32 %v361, 4294901760
          %v1682 = vsub.f32 %v361, %v1681
          %v1683 = vand.u32 %v1682, 4294901760
          %v1684 = vsub.f32 %v1682, %v1683
          %v1685 = vand.u32 %v1684, 4294901760
          %1686 = vmatmul.f32.gmra.mxu0 %v1685
          %v1687 = vpop.f32.mrf.mxu0
          %v1688 = vadd.f32 0.0, %v1687
          %v1689 = vand.u32 %v364, 4294901760
          %v1690 = vsub.f32 %v364, %v1689
          %v1691 = vand.u32 %v1690, 4294901760
          %v1692 = vsub.f32 %v1690, %v1691
          %v1693 = vand.u32 %v1692, 4294901760
          %1694 = vmatmul.f32.gmra.mxu0 %v1693
          %v1695 = vpop.f32.mrf.mxu0
          %v1696 = vadd.f32 0.0, %v1695
          %v1697 = vand.u32 %v367, 4294901760
          %v1698 = vsub.f32 %v367, %v1697
          %v1699 = vand.u32 %v1698, 4294901760
          %v1700 = vsub.f32 %v1698, %v1699
          %v1701 = vand.u32 %v1700, 4294901760
          %1702 = vmatmul.f32.gmra.mxu0 %v1701
          %v1703 = vpop.f32.mrf.mxu0
          %v1704 = vadd.f32 0.0, %v1703
          %v1705 = vand.u32 %v370, 4294901760
          %v1706 = vsub.f32 %v370, %v1705
          %v1707 = vand.u32 %v1706, 4294901760
          %v1708 = vsub.f32 %v1706, %v1707
          %v1709 = vand.u32 %v1708, 4294901760
          %1710 = vmatmul.f32.gmra.mxu0 %v1709
          %v1711 = vpop.f32.mrf.mxu0
          %v1712 = vadd.f32 0.0, %v1711
          %v1713 = vand.u32 %v373, 4294901760
          %v1714 = vsub.f32 %v373, %v1713
          %v1715 = vand.u32 %v1714, 4294901760
          %v1716 = vsub.f32 %v1714, %v1715
          %v1717 = vand.u32 %v1716, 4294901760
          %1718 = vmatmul.f32.gmra.mxu0 %v1717
          %v1719 = vpop.f32.mrf.mxu0
          %v1720 = vadd.f32 0.0, %v1719
          %v1721 = vand.u32 %v376, 4294901760
          %v1722 = vsub.f32 %v376, %v1721
          %v1723 = vand.u32 %v1722, 4294901760
          %v1724 = vsub.f32 %v1722, %v1723
          %v1725 = vand.u32 %v1724, 4294901760
          %1726 = vmatmul.f32.gmra.mxu0 %v1725
          %v1727 = vpop.f32.mrf.mxu0
          %v1728 = vadd.f32 0.0, %v1727
          %v1729 = vand.u32 %v379, 4294901760
          %v1730 = vsub.f32 %v379, %v1729
          %v1731 = vand.u32 %v1730, 4294901760
          %v1732 = vsub.f32 %v1730, %v1731
          %v1733 = vand.u32 %v1732, 4294901760
          %1734 = vmatmul.f32.gmra.mxu0 %v1733
          %v1735 = vpop.f32.mrf.mxu0
          %v1736 = vadd.f32 0.0, %v1735
          %v1737 = vand.u32 %v382, 4294901760
          %v1738 = vsub.f32 %v382, %v1737
          %v1739 = vand.u32 %v1738, 4294901760
          %v1740 = vsub.f32 %v1738, %v1739
          %v1741 = vand.u32 %v1740, 4294901760
          %1742 = vmatmul.f32.gmra.mxu0 %v1741
          %v1743 = vpop.f32.mrf.mxu0
          %v1744 = vadd.f32 0.0, %v1743
          %v1745 = vand.u32 %v385, 4294901760
          %v1746 = vsub.f32 %v385, %v1745
          %v1747 = vand.u32 %v1746, 4294901760
          %v1748 = vsub.f32 %v1746, %v1747
          %v1749 = vand.u32 %v1748, 4294901760
          %1750 = vmatmul.f32.gmra.mxu0 %v1749
          %v1751 = vpop.f32.mrf.mxu0
          %v1752 = vadd.f32 0.0, %v1751
          %v1753 = vand.u32 %v388, 4294901760
          %v1754 = vsub.f32 %v388, %v1753
          %v1755 = vand.u32 %v1754, 4294901760
          %v1756 = vsub.f32 %v1754, %v1755
          %v1757 = vand.u32 %v1756, 4294901760
          %1758 = vmatmul.f32.gmra.mxu0 %v1757
          %v1759 = vpop.f32.mrf.mxu0
          %v1760 = vadd.f32 0.0, %v1759
          %v1761 = vand.u32 %v391, 4294901760
          %v1762 = vsub.f32 %v391, %v1761
          %v1763 = vand.u32 %v1762, 4294901760
          %v1764 = vsub.f32 %v1762, %v1763
          %v1765 = vand.u32 %v1764, 4294901760
          %1766 = vmatmul.f32.gmra.mxu0 %v1765
          %v1767 = vpop.f32.mrf.mxu0
          %v1768 = vadd.f32 0.0, %v1767
          %v1769 = vand.u32 %v394, 4294901760
          %v1770 = vsub.f32 %v394, %v1769
          %v1771 = vand.u32 %v1770, 4294901760
          %v1772 = vsub.f32 %v1770, %v1771
          %v1773 = vand.u32 %v1772, 4294901760
          %1774 = vmatmul.f32.gmra.mxu0 %v1773
          %v1775 = vpop.f32.mrf.mxu0
          %v1776 = vadd.f32 0.0, %v1775
          %v1777 = vand.u32 %v397, 4294901760
          %v1778 = vsub.f32 %v397, %v1777
          %v1779 = vand.u32 %v1778, 4294901760
          %v1780 = vsub.f32 %v1778, %v1779
          %v1781 = vand.u32 %v1780, 4294901760
          %1782 = vmatmul.f32.gmra.mxu0 %v1781
          %v1783 = vpop.f32.mrf.mxu0
          %v1784 = vadd.f32 0.0, %v1783
          %v1785 = vand.u32 %v400, 4294901760
          %v1786 = vsub.f32 %v400, %v1785
          %v1787 = vand.u32 %v1786, 4294901760
          %v1788 = vsub.f32 %v1786, %v1787
          %v1789 = vand.u32 %v1788, 4294901760
          %1790 = vmatmul.f32.gmra.mxu0 %v1789
          %v1791 = vpop.f32.mrf.mxu0
          %v1792 = vadd.f32 0.0, %v1791
          %v1793 = vand.u32 %v403, 4294901760
          %v1794 = vsub.f32 %v403, %v1793
          %v1795 = vand.u32 %v1794, 4294901760
          %v1796 = vsub.f32 %v1794, %v1795
          %v1797 = vand.u32 %v1796, 4294901760
          %1798 = vmatmul.f32.gmra.mxu0 %v1797
          %v1799 = vpop.f32.mrf.mxu0
          %v1800 = vadd.f32 0.0, %v1799
          %v1801 = vand.u32 %v406, 4294901760
          %v1802 = vsub.f32 %v406, %v1801
          %v1803 = vand.u32 %v1802, 4294901760
          %v1804 = vsub.f32 %v1802, %v1803
          %v1805 = vand.u32 %v1804, 4294901760
          %1806 = vmatmul.f32.gmra.mxu0 %v1805
          %v1807 = vpop.f32.mrf.mxu0
          %v1808 = vadd.f32 0.0, %v1807
          %1809 = vdwg.mxu0
          %1810 = vmatpush.msra.mxu0 0.0
          %1811 = vmatpush.msra.mxu0 0.0
          %1812 = vmatpush.msra.mxu0 0.0
          %1813 = vmatpush.msra.mxu0 0.0
          %1814 = vmatpush.msra.mxu0 0.0
          %1815 = vmatpush.msra.mxu0 0.0
          %1816 = vmatpush.msra.mxu0 0.0
          %1817 = vmatpush.msra.mxu0 0.0
          %1818 = vmatpush.msra.mxu0 0.0
          %1819 = vmatpush.msra.mxu0 0.0
          %1820 = vmatpush.msra.mxu0 0.0
          %1821 = vmatpush.msra.mxu0 0.0
          %1822 = vmatpush.msra.mxu0 0.0
          %1823 = vmatpush.msra.mxu0 0.0
          %v1824 = vand.u32 %v413, 4294901760
          %v1825 = vsub.f32 %v413, %v1824
          %v1826 = vand.u32 %v1825, 4294901760
          %v1827 = vsub.f32 %v1825, %v1826
          %v1828 = vand.u32 %v1827, 4294901760
          %1829 = vmatpush.msra.mxu0 %v1828
          %v1830 = vand.u32 %v308, 4294901760
          %v1831 = vsub.f32 %v308, %v1830
          %v1832 = vand.u32 %v1831, 4294901760
          %v1833 = vsub.f32 %v1831, %v1832
          %v1834 = vand.u32 %v1833, 4294901760
          %1835 = vmatpush.msra.mxu0 %v1834
          %v1836 = vand.u32 %v313, 4294901760
          %1837 = vmatmul.f32.gmra.mxu0 %v1836
          %v1838 = vpop.f32.mrf.mxu0
          %v1839 = vadd.f32 %v1560, %v1838
          %v1840 = vand.u32 %v316, 4294901760
          %1841 = vmatmul.f32.gmra.mxu0 %v1840
          %v1842 = vpop.f32.mrf.mxu0
          %v1843 = vadd.f32 %v1568, %v1842
          %v1844 = vand.u32 %v319, 4294901760
          %1845 = vmatmul.f32.gmra.mxu0 %v1844
          %v1846 = vpop.f32.mrf.mxu0
          %v1847 = vadd.f32 %v1576, %v1846
          %v1848 = vand.u32 %v322, 4294901760
          %1849 = vmatmul.f32.gmra.mxu0 %v1848
          %v1850 = vpop.f32.mrf.mxu0
          %v1851 = vadd.f32 %v1584, %v1850
          %v1852 = vand.u32 %v325, 4294901760
          %1853 = vmatmul.f32.gmra.mxu0 %v1852
          %v1854 = vpop.f32.mrf.mxu0
          %v1855 = vadd.f32 %v1592, %v1854
          %v1856 = vand.u32 %v328, 4294901760
          %1857 = vmatmul.f32.gmra.mxu0 %v1856
          %v1858 = vpop.f32.mrf.mxu0
          %v1859 = vadd.f32 %v1600, %v1858
          %v1860 = vand.u32 %v331, 4294901760
          %1861 = vmatmul.f32.gmra.mxu0 %v1860
          %v1862 = vpop.f32.mrf.mxu0
          %v1863 = vadd.f32 %v1608, %v1862
          %v1864 = vand.u32 %v334, 4294901760
          %1865 = vmatmul.f32.gmra.mxu0 %v1864
          %v1866 = vpop.f32.mrf.mxu0
          %v1867 = vadd.f32 %v1616, %v1866
          %v1868 = vand.u32 %v337, 4294901760
          %1869 = vmatmul.f32.gmra.mxu0 %v1868
          %v1870 = vpop.f32.mrf.mxu0
          %v1871 = vadd.f32 %v1624, %v1870
          %v1872 = vand.u32 %v340, 4294901760
          %1873 = vmatmul.f32.gmra.mxu0 %v1872
          %v1874 = vpop.f32.mrf.mxu0
          %v1875 = vadd.f32 %v1632, %v1874
          %v1876 = vand.u32 %v343, 4294901760
          %1877 = vmatmul.f32.gmra.mxu0 %v1876
          %v1878 = vpop.f32.mrf.mxu0
          %v1879 = vadd.f32 %v1640, %v1878
          %v1880 = vand.u32 %v346, 4294901760
          %1881 = vmatmul.f32.gmra.mxu0 %v1880
          %v1882 = vpop.f32.mrf.mxu0
          %v1883 = vadd.f32 %v1648, %v1882
          %v1884 = vand.u32 %v349, 4294901760
          %1885 = vmatmul.f32.gmra.mxu0 %v1884
          %v1886 = vpop.f32.mrf.mxu0
          %v1887 = vadd.f32 %v1656, %v1886
          %v1888 = vand.u32 %v352, 4294901760
          %1889 = vmatmul.f32.gmra.mxu0 %v1888
          %v1890 = vpop.f32.mrf.mxu0
          %v1891 = vadd.f32 %v1664, %v1890
          %v1892 = vand.u32 %v355, 4294901760
          %1893 = vmatmul.f32.gmra.mxu0 %v1892
          %v1894 = vpop.f32.mrf.mxu0
          %v1895 = vadd.f32 %v1672, %v1894
          %v1896 = vand.u32 %v358, 4294901760
          %1897 = vmatmul.f32.gmra.mxu0 %v1896
          %v1898 = vpop.f32.mrf.mxu0
          %v1899 = vadd.f32 %v1680, %v1898
          %v1900 = vand.u32 %v361, 4294901760
          %1901 = vmatmul.f32.gmra.mxu0 %v1900
          %v1902 = vpop.f32.mrf.mxu0
          %v1903 = vadd.f32 %v1688, %v1902
          %v1904 = vand.u32 %v364, 4294901760
          %1905 = vmatmul.f32.gmra.mxu0 %v1904
          %v1906 = vpop.f32.mrf.mxu0
          %v1907 = vadd.f32 %v1696, %v1906
          %v1908 = vand.u32 %v367, 4294901760
          %1909 = vmatmul.f32.gmra.mxu0 %v1908
          %v1910 = vpop.f32.mrf.mxu0
          %v1911 = vadd.f32 %v1704, %v1910
          %v1912 = vand.u32 %v370, 4294901760
          %1913 = vmatmul.f32.gmra.mxu0 %v1912
          %v1914 = vpop.f32.mrf.mxu0
          %v1915 = vadd.f32 %v1712, %v1914
          %v1916 = vand.u32 %v373, 4294901760
          %1917 = vmatmul.f32.gmra.mxu0 %v1916
          %v1918 = vpop.f32.mrf.mxu0
          %v1919 = vadd.f32 %v1720, %v1918
          %v1920 = vand.u32 %v376, 4294901760
          %1921 = vmatmul.f32.gmra.mxu0 %v1920
          %v1922 = vpop.f32.mrf.mxu0
          %v1923 = vadd.f32 %v1728, %v1922
          %v1924 = vand.u32 %v379, 4294901760
          %1925 = vmatmul.f32.gmra.mxu0 %v1924
          %v1926 = vpop.f32.mrf.mxu0
          %v1927 = vadd.f32 %v1736, %v1926
          %v1928 = vand.u32 %v382, 4294901760
          %1929 = vmatmul.f32.gmra.mxu0 %v1928
          %v1930 = vpop.f32.mrf.mxu0
          %v1931 = vadd.f32 %v1744, %v1930
          %v1932 = vand.u32 %v385, 4294901760
          %1933 = vmatmul.f32.gmra.mxu0 %v1932
          %v1934 = vpop.f32.mrf.mxu0
          %v1935 = vadd.f32 %v1752, %v1934
          %v1936 = vand.u32 %v388, 4294901760
          %1937 = vmatmul.f32.gmra.mxu0 %v1936
          %v1938 = vpop.f32.mrf.mxu0
          %v1939 = vadd.f32 %v1760, %v1938
          %v1940 = vand.u32 %v391, 4294901760
          %1941 = vmatmul.f32.gmra.mxu0 %v1940
          %v1942 = vpop.f32.mrf.mxu0
          %v1943 = vadd.f32 %v1768, %v1942
          %v1944 = vand.u32 %v394, 4294901760
          %1945 = vmatmul.f32.gmra.mxu0 %v1944
          %v1946 = vpop.f32.mrf.mxu0
          %v1947 = vadd.f32 %v1776, %v1946
          %v1948 = vand.u32 %v397, 4294901760
          %1949 = vmatmul.f32.gmra.mxu0 %v1948
          %v1950 = vpop.f32.mrf.mxu0
          %v1951 = vadd.f32 %v1784, %v1950
          %v1952 = vand.u32 %v400, 4294901760
          %1953 = vmatmul.f32.gmra.mxu0 %v1952
          %v1954 = vpop.f32.mrf.mxu0
          %v1955 = vadd.f32 %v1792, %v1954
          %v1956 = vand.u32 %v403, 4294901760
          %1957 = vmatmul.f32.gmra.mxu0 %v1956
          %v1958 = vpop.f32.mrf.mxu0
          %v1959 = vadd.f32 %v1800, %v1958
          %v1960 = vand.u32 %v406, 4294901760
          %1961 = vmatmul.f32.gmra.mxu0 %v1960
          %v1962 = vpop.f32.mrf.mxu0
          %v1963 = vadd.f32 %v1808, %v1962
          %1964 = vdwg.mxu0
          %1965 = vmatpush.msra.mxu0 0.0
          %1966 = vmatpush.msra.mxu0 0.0
          %1967 = vmatpush.msra.mxu0 0.0
          %1968 = vmatpush.msra.mxu0 0.0
          %1969 = vmatpush.msra.mxu0 0.0
          %1970 = vmatpush.msra.mxu0 0.0
          %1971 = vmatpush.msra.mxu0 0.0
          %1972 = vmatpush.msra.mxu0 0.0
          %1973 = vmatpush.msra.mxu0 0.0
          %1974 = vmatpush.msra.mxu0 0.0
          %1975 = vmatpush.msra.mxu0 0.0
          %1976 = vmatpush.msra.mxu0 0.0
          %1977 = vmatpush.msra.mxu0 0.0
          %1978 = vmatpush.msra.mxu0 0.0
          %v1979 = vand.u32 %v413, 4294901760
          %v1980 = vsub.f32 %v413, %v1979
          %1981 = vmatpush.msra.mxu0 %v1980
          %v1982 = vand.u32 %v308, 4294901760
          %v1983 = vsub.f32 %v308, %v1982
          %1984 = vmatpush.msra.mxu0 %v1983
          %v1985 = vand.u32 %v313, 4294901760
          %v1986 = vsub.f32 %v313, %v1985
          %1987 = vmatmul.f32.gmra.mxu0 %v1986
          %v1988 = vpop.f32.mrf.mxu0
          %v1989 = vadd.f32 %v1839, %v1988
          %v1990 = vand.u32 %v316, 4294901760
          %v1991 = vsub.f32 %v316, %v1990
          %1992 = vmatmul.f32.gmra.mxu0 %v1991
          %v1993 = vpop.f32.mrf.mxu0
          %v1994 = vadd.f32 %v1843, %v1993
          %v1995 = vand.u32 %v319, 4294901760
          %v1996 = vsub.f32 %v319, %v1995
          %1997 = vmatmul.f32.gmra.mxu0 %v1996
          %v1998 = vpop.f32.mrf.mxu0
          %v1999 = vadd.f32 %v1847, %v1998
          %v2000 = vand.u32 %v322, 4294901760
          %v2001 = vsub.f32 %v322, %v2000
          %2002 = vmatmul.f32.gmra.mxu0 %v2001
          %v2003 = vpop.f32.mrf.mxu0
          %v2004 = vadd.f32 %v1851, %v2003
          %v2005 = vand.u32 %v325, 4294901760
          %v2006 = vsub.f32 %v325, %v2005
          %2007 = vmatmul.f32.gmra.mxu0 %v2006
          %v2008 = vpop.f32.mrf.mxu0
          %v2009 = vadd.f32 %v1855, %v2008
          %v2010 = vand.u32 %v328, 4294901760
          %v2011 = vsub.f32 %v328, %v2010
          %2012 = vmatmul.f32.gmra.mxu0 %v2011
          %v2013 = vpop.f32.mrf.mxu0
          %v2014 = vadd.f32 %v1859, %v2013
          %v2015 = vand.u32 %v331, 4294901760
          %v2016 = vsub.f32 %v331, %v2015
          %2017 = vmatmul.f32.gmra.mxu0 %v2016
          %v2018 = vpop.f32.mrf.mxu0
          %v2019 = vadd.f32 %v1863, %v2018
          %v2020 = vand.u32 %v334, 4294901760
          %v2021 = vsub.f32 %v334, %v2020
          %2022 = vmatmul.f32.gmra.mxu0 %v2021
          %v2023 = vpop.f32.mrf.mxu0
          %v2024 = vadd.f32 %v1867, %v2023
          %v2025 = vand.u32 %v337, 4294901760
          %v2026 = vsub.f32 %v337, %v2025
          %2027 = vmatmul.f32.gmra.mxu0 %v2026
          %v2028 = vpop.f32.mrf.mxu0
          %v2029 = vadd.f32 %v1871, %v2028
          %v2030 = vand.u32 %v340, 4294901760
          %v2031 = vsub.f32 %v340, %v2030
          %2032 = vmatmul.f32.gmra.mxu0 %v2031
          %v2033 = vpop.f32.mrf.mxu0
          %v2034 = vadd.f32 %v1875, %v2033
          %v2035 = vand.u32 %v343, 4294901760
          %v2036 = vsub.f32 %v343, %v2035
          %2037 = vmatmul.f32.gmra.mxu0 %v2036
          %v2038 = vpop.f32.mrf.mxu0
          %v2039 = vadd.f32 %v1879, %v2038
          %v2040 = vand.u32 %v346, 4294901760
          %v2041 = vsub.f32 %v346, %v2040
          %2042 = vmatmul.f32.gmra.mxu0 %v2041
          %v2043 = vpop.f32.mrf.mxu0
          %v2044 = vadd.f32 %v1883, %v2043
          %v2045 = vand.u32 %v349, 4294901760
          %v2046 = vsub.f32 %v349, %v2045
          %2047 = vmatmul.f32.gmra.mxu0 %v2046
          %v2048 = vpop.f32.mrf.mxu0
          %v2049 = vadd.f32 %v1887, %v2048
          %v2050 = vand.u32 %v352, 4294901760
          %v2051 = vsub.f32 %v352, %v2050
          %2052 = vmatmul.f32.gmra.mxu0 %v2051
          %v2053 = vpop.f32.mrf.mxu0
          %v2054 = vadd.f32 %v1891, %v2053
          %v2055 = vand.u32 %v355, 4294901760
          %v2056 = vsub.f32 %v355, %v2055
          %2057 = vmatmul.f32.gmra.mxu0 %v2056
          %v2058 = vpop.f32.mrf.mxu0
          %v2059 = vadd.f32 %v1895, %v2058
          %v2060 = vand.u32 %v358, 4294901760
          %v2061 = vsub.f32 %v358, %v2060
          %2062 = vmatmul.f32.gmra.mxu0 %v2061
          %v2063 = vpop.f32.mrf.mxu0
          %v2064 = vadd.f32 %v1899, %v2063
          %v2065 = vand.u32 %v361, 4294901760
          %v2066 = vsub.f32 %v361, %v2065
          %2067 = vmatmul.f32.gmra.mxu0 %v2066
          %v2068 = vpop.f32.mrf.mxu0
          %v2069 = vadd.f32 %v1903, %v2068
          %v2070 = vand.u32 %v364, 4294901760
          %v2071 = vsub.f32 %v364, %v2070
          %2072 = vmatmul.f32.gmra.mxu0 %v2071
          %v2073 = vpop.f32.mrf.mxu0
          %v2074 = vadd.f32 %v1907, %v2073
          %v2075 = vand.u32 %v367, 4294901760
          %v2076 = vsub.f32 %v367, %v2075
          %2077 = vmatmul.f32.gmra.mxu0 %v2076
          %v2078 = vpop.f32.mrf.mxu0
          %v2079 = vadd.f32 %v1911, %v2078
          %v2080 = vand.u32 %v370, 4294901760
          %v2081 = vsub.f32 %v370, %v2080
          %2082 = vmatmul.f32.gmra.mxu0 %v2081
          %v2083 = vpop.f32.mrf.mxu0
          %v2084 = vadd.f32 %v1915, %v2083
          %v2085 = vand.u32 %v373, 4294901760
          %v2086 = vsub.f32 %v373, %v2085
          %2087 = vmatmul.f32.gmra.mxu0 %v2086
          %v2088 = vpop.f32.mrf.mxu0
          %v2089 = vadd.f32 %v1919, %v2088
          %v2090 = vand.u32 %v376, 4294901760
          %v2091 = vsub.f32 %v376, %v2090
          %2092 = vmatmul.f32.gmra.mxu0 %v2091
          %v2093 = vpop.f32.mrf.mxu0
          %v2094 = vadd.f32 %v1923, %v2093
          %v2095 = vand.u32 %v379, 4294901760
          %v2096 = vsub.f32 %v379, %v2095
          %2097 = vmatmul.f32.gmra.mxu0 %v2096
          %v2098 = vpop.f32.mrf.mxu0
          %v2099 = vadd.f32 %v1927, %v2098
          %v2100 = vand.u32 %v382, 4294901760
          %v2101 = vsub.f32 %v382, %v2100
          %2102 = vmatmul.f32.gmra.mxu0 %v2101
          %v2103 = vpop.f32.mrf.mxu0
          %v2104 = vadd.f32 %v1931, %v2103
          %v2105 = vand.u32 %v385, 4294901760
          %v2106 = vsub.f32 %v385, %v2105
          %2107 = vmatmul.f32.gmra.mxu0 %v2106
          %v2108 = vpop.f32.mrf.mxu0
          %v2109 = vadd.f32 %v1935, %v2108
          %v2110 = vand.u32 %v388, 4294901760
          %v2111 = vsub.f32 %v388, %v2110
          %2112 = vmatmul.f32.gmra.mxu0 %v2111
          %v2113 = vpop.f32.mrf.mxu0
          %v2114 = vadd.f32 %v1939, %v2113
          %v2115 = vand.u32 %v391, 4294901760
          %v2116 = vsub.f32 %v391, %v2115
          %2117 = vmatmul.f32.gmra.mxu0 %v2116
          %v2118 = vpop.f32.mrf.mxu0
          %v2119 = vadd.f32 %v1943, %v2118
          %v2120 = vand.u32 %v394, 4294901760
          %v2121 = vsub.f32 %v394, %v2120
          %2122 = vmatmul.f32.gmra.mxu0 %v2121
          %v2123 = vpop.f32.mrf.mxu0
          %v2124 = vadd.f32 %v1947, %v2123
          %v2125 = vand.u32 %v397, 4294901760
          %v2126 = vsub.f32 %v397, %v2125
          %2127 = vmatmul.f32.gmra.mxu0 %v2126
          %v2128 = vpop.f32.mrf.mxu0
          %v2129 = vadd.f32 %v1951, %v2128
          %v2130 = vand.u32 %v400, 4294901760
          %v2131 = vsub.f32 %v400, %v2130
          %2132 = vmatmul.f32.gmra.mxu0 %v2131
          %v2133 = vpop.f32.mrf.mxu0
          %v2134 = vadd.f32 %v1955, %v2133
          %v2135 = vand.u32 %v403, 4294901760
          %v2136 = vsub.f32 %v403, %v2135
          %2137 = vmatmul.f32.gmra.mxu0 %v2136
          %v2138 = vpop.f32.mrf.mxu0
          %v2139 = vadd.f32 %v1959, %v2138
          %v2140 = vand.u32 %v406, 4294901760
          %v2141 = vsub.f32 %v406, %v2140
          %2142 = vmatmul.f32.gmra.mxu0 %v2141
          %v2143 = vpop.f32.mrf.mxu0
          %v2144 = vadd.f32 %v1963, %v2143
          %2145 = vdwg.mxu0
          %2146 = vmatpush.msra.mxu0 0.0
          %2147 = vmatpush.msra.mxu0 0.0
          %2148 = vmatpush.msra.mxu0 0.0
          %2149 = vmatpush.msra.mxu0 0.0
          %2150 = vmatpush.msra.mxu0 0.0
          %2151 = vmatpush.msra.mxu0 0.0
          %2152 = vmatpush.msra.mxu0 0.0
          %2153 = vmatpush.msra.mxu0 0.0
          %2154 = vmatpush.msra.mxu0 0.0
          %2155 = vmatpush.msra.mxu0 0.0
          %2156 = vmatpush.msra.mxu0 0.0
          %2157 = vmatpush.msra.mxu0 0.0
          %2158 = vmatpush.msra.mxu0 0.0
          %2159 = vmatpush.msra.mxu0 0.0
          %v2160 = vand.u32 %v413, 4294901760
          %2161 = vmatpush.msra.mxu0 %v2160
          %v2162 = vand.u32 %v308, 4294901760
          %2163 = vmatpush.msra.mxu0 %v2162
          %v2164 = vand.u32 %v313, 4294901760
          %v2165 = vsub.f32 %v313, %v2164
          %v2166 = vand.u32 %v2165, 4294901760
          %2167 = vmatmul.f32.gmra.mxu0 %v2166
          %v2168 = vpop.f32.mrf.mxu0
          %v2169 = vadd.f32 %v1989, %v2168
          %v2170 = vand.u32 %v316, 4294901760
          %v2171 = vsub.f32 %v316, %v2170
          %v2172 = vand.u32 %v2171, 4294901760
          %2173 = vmatmul.f32.gmra.mxu0 %v2172
          %v2174 = vpop.f32.mrf.mxu0
          %v2175 = vadd.f32 %v1994, %v2174
          %v2176 = vand.u32 %v319, 4294901760
          %v2177 = vsub.f32 %v319, %v2176
          %v2178 = vand.u32 %v2177, 4294901760
          %2179 = vmatmul.f32.gmra.mxu0 %v2178
          %v2180 = vpop.f32.mrf.mxu0
          %v2181 = vadd.f32 %v1999, %v2180
          %v2182 = vand.u32 %v322, 4294901760
          %v2183 = vsub.f32 %v322, %v2182
          %v2184 = vand.u32 %v2183, 4294901760
          %2185 = vmatmul.f32.gmra.mxu0 %v2184
          %v2186 = vpop.f32.mrf.mxu0
          %v2187 = vadd.f32 %v2004, %v2186
          %v2188 = vand.u32 %v325, 4294901760
          %v2189 = vsub.f32 %v325, %v2188
          %v2190 = vand.u32 %v2189, 4294901760
          %2191 = vmatmul.f32.gmra.mxu0 %v2190
          %v2192 = vpop.f32.mrf.mxu0
          %v2193 = vadd.f32 %v2009, %v2192
          %v2194 = vand.u32 %v328, 4294901760
          %v2195 = vsub.f32 %v328, %v2194
          %v2196 = vand.u32 %v2195, 4294901760
          %2197 = vmatmul.f32.gmra.mxu0 %v2196
          %v2198 = vpop.f32.mrf.mxu0
          %v2199 = vadd.f32 %v2014, %v2198
          %v2200 = vand.u32 %v331, 4294901760
          %v2201 = vsub.f32 %v331, %v2200
          %v2202 = vand.u32 %v2201, 4294901760
          %2203 = vmatmul.f32.gmra.mxu0 %v2202
          %v2204 = vpop.f32.mrf.mxu0
          %v2205 = vadd.f32 %v2019, %v2204
          %v2206 = vand.u32 %v334, 4294901760
          %v2207 = vsub.f32 %v334, %v2206
          %v2208 = vand.u32 %v2207, 4294901760
          %2209 = vmatmul.f32.gmra.mxu0 %v2208
          %v2210 = vpop.f32.mrf.mxu0
          %v2211 = vadd.f32 %v2024, %v2210
          %v2212 = vand.u32 %v337, 4294901760
          %v2213 = vsub.f32 %v337, %v2212
          %v2214 = vand.u32 %v2213, 4294901760
          %2215 = vmatmul.f32.gmra.mxu0 %v2214
          %v2216 = vpop.f32.mrf.mxu0
          %v2217 = vadd.f32 %v2029, %v2216
          %v2218 = vand.u32 %v340, 4294901760
          %v2219 = vsub.f32 %v340, %v2218
          %v2220 = vand.u32 %v2219, 4294901760
          %2221 = vmatmul.f32.gmra.mxu0 %v2220
          %v2222 = vpop.f32.mrf.mxu0
          %v2223 = vadd.f32 %v2034, %v2222
          %v2224 = vand.u32 %v343, 4294901760
          %v2225 = vsub.f32 %v343, %v2224
          %v2226 = vand.u32 %v2225, 4294901760
          %2227 = vmatmul.f32.gmra.mxu0 %v2226
          %v2228 = vpop.f32.mrf.mxu0
          %v2229 = vadd.f32 %v2039, %v2228
          %v2230 = vand.u32 %v346, 4294901760
          %v2231 = vsub.f32 %v346, %v2230
          %v2232 = vand.u32 %v2231, 4294901760
          %2233 = vmatmul.f32.gmra.mxu0 %v2232
          %v2234 = vpop.f32.mrf.mxu0
          %v2235 = vadd.f32 %v2044, %v2234
          %v2236 = vand.u32 %v349, 4294901760
          %v2237 = vsub.f32 %v349, %v2236
          %v2238 = vand.u32 %v2237, 4294901760
          %2239 = vmatmul.f32.gmra.mxu0 %v2238
          %v2240 = vpop.f32.mrf.mxu0
          %v2241 = vadd.f32 %v2049, %v2240
          %v2242 = vand.u32 %v352, 4294901760
          %v2243 = vsub.f32 %v352, %v2242
          %v2244 = vand.u32 %v2243, 4294901760
          %2245 = vmatmul.f32.gmra.mxu0 %v2244
          %v2246 = vpop.f32.mrf.mxu0
          %v2247 = vadd.f32 %v2054, %v2246
          %v2248 = vand.u32 %v355, 4294901760
          %v2249 = vsub.f32 %v355, %v2248
          %v2250 = vand.u32 %v2249, 4294901760
          %2251 = vmatmul.f32.gmra.mxu0 %v2250
          %v2252 = vpop.f32.mrf.mxu0
          %v2253 = vadd.f32 %v2059, %v2252
          %v2254 = vand.u32 %v358, 4294901760
          %v2255 = vsub.f32 %v358, %v2254
          %v2256 = vand.u32 %v2255, 4294901760
          %2257 = vmatmul.f32.gmra.mxu0 %v2256
          %v2258 = vpop.f32.mrf.mxu0
          %v2259 = vadd.f32 %v2064, %v2258
          %v2260 = vand.u32 %v361, 4294901760
          %v2261 = vsub.f32 %v361, %v2260
          %v2262 = vand.u32 %v2261, 4294901760
          %2263 = vmatmul.f32.gmra.mxu0 %v2262
          %v2264 = vpop.f32.mrf.mxu0
          %v2265 = vadd.f32 %v2069, %v2264
          %v2266 = vand.u32 %v364, 4294901760
          %v2267 = vsub.f32 %v364, %v2266
          %v2268 = vand.u32 %v2267, 4294901760
          %2269 = vmatmul.f32.gmra.mxu0 %v2268
          %v2270 = vpop.f32.mrf.mxu0
          %v2271 = vadd.f32 %v2074, %v2270
          %v2272 = vand.u32 %v367, 4294901760
          %v2273 = vsub.f32 %v367, %v2272
          %v2274 = vand.u32 %v2273, 4294901760
          %2275 = vmatmul.f32.gmra.mxu0 %v2274
          %v2276 = vpop.f32.mrf.mxu0
          %v2277 = vadd.f32 %v2079, %v2276
          %v2278 = vand.u32 %v370, 4294901760
          %v2279 = vsub.f32 %v370, %v2278
          %v2280 = vand.u32 %v2279, 4294901760
          %2281 = vmatmul.f32.gmra.mxu0 %v2280
          %v2282 = vpop.f32.mrf.mxu0
          %v2283 = vadd.f32 %v2084, %v2282
          %v2284 = vand.u32 %v373, 4294901760
          %v2285 = vsub.f32 %v373, %v2284
          %v2286 = vand.u32 %v2285, 4294901760
          %2287 = vmatmul.f32.gmra.mxu0 %v2286
          %v2288 = vpop.f32.mrf.mxu0
          %v2289 = vadd.f32 %v2089, %v2288
          %v2290 = vand.u32 %v376, 4294901760
          %v2291 = vsub.f32 %v376, %v2290
          %v2292 = vand.u32 %v2291, 4294901760
          %2293 = vmatmul.f32.gmra.mxu0 %v2292
          %v2294 = vpop.f32.mrf.mxu0
          %v2295 = vadd.f32 %v2094, %v2294
          %v2296 = vand.u32 %v379, 4294901760
          %v2297 = vsub.f32 %v379, %v2296
          %v2298 = vand.u32 %v2297, 4294901760
          %2299 = vmatmul.f32.gmra.mxu0 %v2298
          %v2300 = vpop.f32.mrf.mxu0
          %v2301 = vadd.f32 %v2099, %v2300
          %v2302 = vand.u32 %v382, 4294901760
          %v2303 = vsub.f32 %v382, %v2302
          %v2304 = vand.u32 %v2303, 4294901760
          %2305 = vmatmul.f32.gmra.mxu0 %v2304
          %v2306 = vpop.f32.mrf.mxu0
          %v2307 = vadd.f32 %v2104, %v2306
          %v2308 = vand.u32 %v385, 4294901760
          %v2309 = vsub.f32 %v385, %v2308
          %v2310 = vand.u32 %v2309, 4294901760
          %2311 = vmatmul.f32.gmra.mxu0 %v2310
          %v2312 = vpop.f32.mrf.mxu0
          %v2313 = vadd.f32 %v2109, %v2312
          %v2314 = vand.u32 %v388, 4294901760
          %v2315 = vsub.f32 %v388, %v2314
          %v2316 = vand.u32 %v2315, 4294901760
          %2317 = vmatmul.f32.gmra.mxu0 %v2316
          %v2318 = vpop.f32.mrf.mxu0
          %v2319 = vadd.f32 %v2114, %v2318
          %v2320 = vand.u32 %v391, 4294901760
          %v2321 = vsub.f32 %v391, %v2320
          %v2322 = vand.u32 %v2321, 4294901760
          %2323 = vmatmul.f32.gmra.mxu0 %v2322
          %v2324 = vpop.f32.mrf.mxu0
          %v2325 = vadd.f32 %v2119, %v2324
          %v2326 = vand.u32 %v394, 4294901760
          %v2327 = vsub.f32 %v394, %v2326
          %v2328 = vand.u32 %v2327, 4294901760
          %2329 = vmatmul.f32.gmra.mxu0 %v2328
          %v2330 = vpop.f32.mrf.mxu0
          %v2331 = vadd.f32 %v2124, %v2330
          %v2332 = vand.u32 %v397, 4294901760
          %v2333 = vsub.f32 %v397, %v2332
          %v2334 = vand.u32 %v2333, 4294901760
          %2335 = vmatmul.f32.gmra.mxu0 %v2334
          %v2336 = vpop.f32.mrf.mxu0
          %v2337 = vadd.f32 %v2129, %v2336
          %v2338 = vand.u32 %v400, 4294901760
          %v2339 = vsub.f32 %v400, %v2338
          %v2340 = vand.u32 %v2339, 4294901760
          %2341 = vmatmul.f32.gmra.mxu0 %v2340
          %v2342 = vpop.f32.mrf.mxu0
          %v2343 = vadd.f32 %v2134, %v2342
          %v2344 = vand.u32 %v403, 4294901760
          %v2345 = vsub.f32 %v403, %v2344
          %v2346 = vand.u32 %v2345, 4294901760
          %2347 = vmatmul.f32.gmra.mxu0 %v2346
          %v2348 = vpop.f32.mrf.mxu0
          %v2349 = vadd.f32 %v2139, %v2348
          %v2350 = vand.u32 %v406, 4294901760
          %v2351 = vsub.f32 %v406, %v2350
          %v2352 = vand.u32 %v2351, 4294901760
          %2353 = vmatmul.f32.gmra.mxu0 %v2352
          %v2354 = vpop.f32.mrf.mxu0
          %v2355 = vadd.f32 %v2144, %v2354
          %2356 = vdwg.mxu0
          %2357 = vmatpush.msra.mxu0 0.0
          %2358 = vmatpush.msra.mxu0 0.0
          %2359 = vmatpush.msra.mxu0 0.0
          %2360 = vmatpush.msra.mxu0 0.0
          %2361 = vmatpush.msra.mxu0 0.0
          %2362 = vmatpush.msra.mxu0 0.0
          %2363 = vmatpush.msra.mxu0 0.0
          %2364 = vmatpush.msra.mxu0 0.0
          %2365 = vmatpush.msra.mxu0 0.0
          %2366 = vmatpush.msra.mxu0 0.0
          %2367 = vmatpush.msra.mxu0 0.0
          %2368 = vmatpush.msra.mxu0 0.0
          %2369 = vmatpush.msra.mxu0 0.0
          %2370 = vmatpush.msra.mxu0 0.0
          %v2371 = vand.u32 %v413, 4294901760
          %v2372 = vsub.f32 %v413, %v2371
          %v2373 = vand.u32 %v2372, 4294901760
          %2374 = vmatpush.msra.mxu0 %v2373
          %v2375 = vand.u32 %v308, 4294901760
          %v2376 = vsub.f32 %v308, %v2375
          %v2377 = vand.u32 %v2376, 4294901760
          %2378 = vmatpush.msra.mxu0 %v2377
          %v2379 = vand.u32 %v313, 4294901760
          %2380 = vmatmul.f32.gmra.mxu0 %v2379
          %v2381 = vpop.f32.mrf.mxu0
          %v2382 = vadd.f32 %v2169, %v2381
          %v2383 = vand.u32 %v316, 4294901760
          %2384 = vmatmul.f32.gmra.mxu0 %v2383
          %v2385 = vpop.f32.mrf.mxu0
          %v2386 = vadd.f32 %v2175, %v2385
          %v2387 = vand.u32 %v319, 4294901760
          %2388 = vmatmul.f32.gmra.mxu0 %v2387
          %v2389 = vpop.f32.mrf.mxu0
          %v2390 = vadd.f32 %v2181, %v2389
          %v2391 = vand.u32 %v322, 4294901760
          %2392 = vmatmul.f32.gmra.mxu0 %v2391
          %v2393 = vpop.f32.mrf.mxu0
          %v2394 = vadd.f32 %v2187, %v2393
          %v2395 = vand.u32 %v325, 4294901760
          %2396 = vmatmul.f32.gmra.mxu0 %v2395
          %v2397 = vpop.f32.mrf.mxu0
          %v2398 = vadd.f32 %v2193, %v2397
          %v2399 = vand.u32 %v328, 4294901760
          %2400 = vmatmul.f32.gmra.mxu0 %v2399
          %v2401 = vpop.f32.mrf.mxu0
          %v2402 = vadd.f32 %v2199, %v2401
          %v2403 = vand.u32 %v331, 4294901760
          %2404 = vmatmul.f32.gmra.mxu0 %v2403
          %v2405 = vpop.f32.mrf.mxu0
          %v2406 = vadd.f32 %v2205, %v2405
          %v2407 = vand.u32 %v334, 4294901760
          %2408 = vmatmul.f32.gmra.mxu0 %v2407
          %v2409 = vpop.f32.mrf.mxu0
          %v2410 = vadd.f32 %v2211, %v2409
          %v2411 = vand.u32 %v337, 4294901760
          %2412 = vmatmul.f32.gmra.mxu0 %v2411
          %v2413 = vpop.f32.mrf.mxu0
          %v2414 = vadd.f32 %v2217, %v2413
          %v2415 = vand.u32 %v340, 4294901760
          %2416 = vmatmul.f32.gmra.mxu0 %v2415
          %v2417 = vpop.f32.mrf.mxu0
          %v2418 = vadd.f32 %v2223, %v2417
          %v2419 = vand.u32 %v343, 4294901760
          %2420 = vmatmul.f32.gmra.mxu0 %v2419
          %v2421 = vpop.f32.mrf.mxu0
          %v2422 = vadd.f32 %v2229, %v2421
          %v2423 = vand.u32 %v346, 4294901760
          %2424 = vmatmul.f32.gmra.mxu0 %v2423
          %v2425 = vpop.f32.mrf.mxu0
          %v2426 = vadd.f32 %v2235, %v2425
          %v2427 = vand.u32 %v349, 4294901760
          %2428 = vmatmul.f32.gmra.mxu0 %v2427
          %v2429 = vpop.f32.mrf.mxu0
          %v2430 = vadd.f32 %v2241, %v2429
          %v2431 = vand.u32 %v352, 4294901760
          %2432 = vmatmul.f32.gmra.mxu0 %v2431
          %v2433 = vpop.f32.mrf.mxu0
          %v2434 = vadd.f32 %v2247, %v2433
          %v2435 = vand.u32 %v355, 4294901760
          %2436 = vmatmul.f32.gmra.mxu0 %v2435
          %v2437 = vpop.f32.mrf.mxu0
          %v2438 = vadd.f32 %v2253, %v2437
          %v2439 = vand.u32 %v358, 4294901760
          %2440 = vmatmul.f32.gmra.mxu0 %v2439
          %v2441 = vpop.f32.mrf.mxu0
          %v2442 = vadd.f32 %v2259, %v2441
          %v2443 = vand.u32 %v361, 4294901760
          %2444 = vmatmul.f32.gmra.mxu0 %v2443
          %v2445 = vpop.f32.mrf.mxu0
          %v2446 = vadd.f32 %v2265, %v2445
          %v2447 = vand.u32 %v364, 4294901760
          %2448 = vmatmul.f32.gmra.mxu0 %v2447
          %v2449 = vpop.f32.mrf.mxu0
          %v2450 = vadd.f32 %v2271, %v2449
          %v2451 = vand.u32 %v367, 4294901760
          %2452 = vmatmul.f32.gmra.mxu0 %v2451
          %v2453 = vpop.f32.mrf.mxu0
          %v2454 = vadd.f32 %v2277, %v2453
          %v2455 = vand.u32 %v370, 4294901760
          %2456 = vmatmul.f32.gmra.mxu0 %v2455
          %v2457 = vpop.f32.mrf.mxu0
          %v2458 = vadd.f32 %v2283, %v2457
          %v2459 = vand.u32 %v373, 4294901760
          %2460 = vmatmul.f32.gmra.mxu0 %v2459
          %v2461 = vpop.f32.mrf.mxu0
          %v2462 = vadd.f32 %v2289, %v2461
          %v2463 = vand.u32 %v376, 4294901760
          %2464 = vmatmul.f32.gmra.mxu0 %v2463
          %v2465 = vpop.f32.mrf.mxu0
          %v2466 = vadd.f32 %v2295, %v2465
          %v2467 = vand.u32 %v379, 4294901760
          %2468 = vmatmul.f32.gmra.mxu0 %v2467
          %v2469 = vpop.f32.mrf.mxu0
          %v2470 = vadd.f32 %v2301, %v2469
          %v2471 = vand.u32 %v382, 4294901760
          %2472 = vmatmul.f32.gmra.mxu0 %v2471
          %v2473 = vpop.f32.mrf.mxu0
          %v2474 = vadd.f32 %v2307, %v2473
          %v2475 = vand.u32 %v385, 4294901760
          %2476 = vmatmul.f32.gmra.mxu0 %v2475
          %v2477 = vpop.f32.mrf.mxu0
          %v2478 = vadd.f32 %v2313, %v2477
          %v2479 = vand.u32 %v388, 4294901760
          %2480 = vmatmul.f32.gmra.mxu0 %v2479
          %v2481 = vpop.f32.mrf.mxu0
          %v2482 = vadd.f32 %v2319, %v2481
          %v2483 = vand.u32 %v391, 4294901760
          %2484 = vmatmul.f32.gmra.mxu0 %v2483
          %v2485 = vpop.f32.mrf.mxu0
          %v2486 = vadd.f32 %v2325, %v2485
          %v2487 = vand.u32 %v394, 4294901760
          %2488 = vmatmul.f32.gmra.mxu0 %v2487
          %v2489 = vpop.f32.mrf.mxu0
          %v2490 = vadd.f32 %v2331, %v2489
          %v2491 = vand.u32 %v397, 4294901760
          %2492 = vmatmul.f32.gmra.mxu0 %v2491
          %v2493 = vpop.f32.mrf.mxu0
          %v2494 = vadd.f32 %v2337, %v2493
          %v2495 = vand.u32 %v400, 4294901760
          %2496 = vmatmul.f32.gmra.mxu0 %v2495
          %v2497 = vpop.f32.mrf.mxu0
          %v2498 = vadd.f32 %v2343, %v2497
          %v2499 = vand.u32 %v403, 4294901760
          %2500 = vmatmul.f32.gmra.mxu0 %v2499
          %v2501 = vpop.f32.mrf.mxu0
          %v2502 = vadd.f32 %v2349, %v2501
          %v2503 = vand.u32 %v406, 4294901760
          %2504 = vmatmul.f32.gmra.mxu0 %v2503
          %v2505 = vpop.f32.mrf.mxu0
          %v2506 = vadd.f32 %v2355, %v2505
          %2507 = vdwg.mxu0
          %2508 = vmatpush.msra.mxu0 0.0
          %2509 = vmatpush.msra.mxu0 0.0
          %2510 = vmatpush.msra.mxu0 0.0
          %2511 = vmatpush.msra.mxu0 0.0
          %2512 = vmatpush.msra.mxu0 0.0
          %2513 = vmatpush.msra.mxu0 0.0
          %2514 = vmatpush.msra.mxu0 0.0
          %2515 = vmatpush.msra.mxu0 0.0
          %2516 = vmatpush.msra.mxu0 0.0
          %2517 = vmatpush.msra.mxu0 0.0
          %2518 = vmatpush.msra.mxu0 0.0
          %2519 = vmatpush.msra.mxu0 0.0
          %2520 = vmatpush.msra.mxu0 0.0
          %2521 = vmatpush.msra.mxu0 0.0
          %v2522 = vand.u32 %v413, 4294901760
          %2523 = vmatpush.msra.mxu0 %v2522
          %v2524 = vand.u32 %v308, 4294901760
          %2525 = vmatpush.msra.mxu0 %v2524
          %v2526 = vand.u32 %v313, 4294901760
          %2527 = vmatmul.f32.gmra.mxu0 %v2526
          %v2528 = vpop.f32.mrf.mxu0
          %v2529 = vadd.f32 %v2382, %v2528
          %v2530 = vand.u32 %v316, 4294901760
          %2531 = vmatmul.f32.gmra.mxu0 %v2530
          %v2532 = vpop.f32.mrf.mxu0
          %v2533 = vadd.f32 %v2386, %v2532
          %v2534 = vand.u32 %v319, 4294901760
          %2535 = vmatmul.f32.gmra.mxu0 %v2534
          %v2536 = vpop.f32.mrf.mxu0
          %v2537 = vadd.f32 %v2390, %v2536
          %v2538 = vand.u32 %v322, 4294901760
          %2539 = vmatmul.f32.gmra.mxu0 %v2538
          %v2540 = vpop.f32.mrf.mxu0
          %v2541 = vadd.f32 %v2394, %v2540
          %v2542 = vand.u32 %v325, 4294901760
          %2543 = vmatmul.f32.gmra.mxu0 %v2542
          %v2544 = vpop.f32.mrf.mxu0
          %v2545 = vadd.f32 %v2398, %v2544
          %v2546 = vand.u32 %v328, 4294901760
          %2547 = vmatmul.f32.gmra.mxu0 %v2546
          %v2548 = vpop.f32.mrf.mxu0
          %v2549 = vadd.f32 %v2402, %v2548
          %v2550 = vand.u32 %v331, 4294901760
          %2551 = vmatmul.f32.gmra.mxu0 %v2550
          %v2552 = vpop.f32.mrf.mxu0
          %v2553 = vadd.f32 %v2406, %v2552
          %v2554 = vand.u32 %v334, 4294901760
          %2555 = vmatmul.f32.gmra.mxu0 %v2554
          %v2556 = vpop.f32.mrf.mxu0
          %v2557 = vadd.f32 %v2410, %v2556
          %v2558 = vand.u32 %v337, 4294901760
          %2559 = vmatmul.f32.gmra.mxu0 %v2558
          %v2560 = vpop.f32.mrf.mxu0
          %v2561 = vadd.f32 %v2414, %v2560
          %v2562 = vand.u32 %v340, 4294901760
          %2563 = vmatmul.f32.gmra.mxu0 %v2562
          %v2564 = vpop.f32.mrf.mxu0
          %v2565 = vadd.f32 %v2418, %v2564
          %v2566 = vand.u32 %v343, 4294901760
          %2567 = vmatmul.f32.gmra.mxu0 %v2566
          %v2568 = vpop.f32.mrf.mxu0
          %v2569 = vadd.f32 %v2422, %v2568
          %v2570 = vand.u32 %v346, 4294901760
          %2571 = vmatmul.f32.gmra.mxu0 %v2570
          %v2572 = vpop.f32.mrf.mxu0
          %v2573 = vadd.f32 %v2426, %v2572
          %v2574 = vand.u32 %v349, 4294901760
          %2575 = vmatmul.f32.gmra.mxu0 %v2574
          %v2576 = vpop.f32.mrf.mxu0
          %v2577 = vadd.f32 %v2430, %v2576
          %v2578 = vand.u32 %v352, 4294901760
          %2579 = vmatmul.f32.gmra.mxu0 %v2578
          %v2580 = vpop.f32.mrf.mxu0
          %v2581 = vadd.f32 %v2434, %v2580
          %v2582 = vand.u32 %v355, 4294901760
          %2583 = vmatmul.f32.gmra.mxu0 %v2582
          %v2584 = vpop.f32.mrf.mxu0
          %v2585 = vadd.f32 %v2438, %v2584
          %v2586 = vand.u32 %v358, 4294901760
          %2587 = vmatmul.f32.gmra.mxu0 %v2586
          %v2588 = vpop.f32.mrf.mxu0
          %v2589 = vadd.f32 %v2442, %v2588
          %v2590 = vand.u32 %v361, 4294901760
          %2591 = vmatmul.f32.gmra.mxu0 %v2590
          %v2592 = vpop.f32.mrf.mxu0
          %v2593 = vadd.f32 %v2446, %v2592
          %v2594 = vand.u32 %v364, 4294901760
          %2595 = vmatmul.f32.gmra.mxu0 %v2594
          %v2596 = vpop.f32.mrf.mxu0
          %v2597 = vadd.f32 %v2450, %v2596
          %v2598 = vand.u32 %v367, 4294901760
          %2599 = vmatmul.f32.gmra.mxu0 %v2598
          %v2600 = vpop.f32.mrf.mxu0
          %v2601 = vadd.f32 %v2454, %v2600
          %v2602 = vand.u32 %v370, 4294901760
          %2603 = vmatmul.f32.gmra.mxu0 %v2602
          %v2604 = vpop.f32.mrf.mxu0
          %v2605 = vadd.f32 %v2458, %v2604
          %v2606 = vand.u32 %v373, 4294901760
          %2607 = vmatmul.f32.gmra.mxu0 %v2606
          %v2608 = vpop.f32.mrf.mxu0
          %v2609 = vadd.f32 %v2462, %v2608
          %v2610 = vand.u32 %v376, 4294901760
          %2611 = vmatmul.f32.gmra.mxu0 %v2610
          %v2612 = vpop.f32.mrf.mxu0
          %v2613 = vadd.f32 %v2466, %v2612
          %v2614 = vand.u32 %v379, 4294901760
          %2615 = vmatmul.f32.gmra.mxu0 %v2614
          %v2616 = vpop.f32.mrf.mxu0
          %v2617 = vadd.f32 %v2470, %v2616
          %v2618 = vand.u32 %v382, 4294901760
          %2619 = vmatmul.f32.gmra.mxu0 %v2618
          %v2620 = vpop.f32.mrf.mxu0
          %v2621 = vadd.f32 %v2474, %v2620
          %v2622 = vand.u32 %v385, 4294901760
          %2623 = vmatmul.f32.gmra.mxu0 %v2622
          %v2624 = vpop.f32.mrf.mxu0
          %v2625 = vadd.f32 %v2478, %v2624
          %v2626 = vand.u32 %v388, 4294901760
          %2627 = vmatmul.f32.gmra.mxu0 %v2626
          %v2628 = vpop.f32.mrf.mxu0
          %v2629 = vadd.f32 %v2482, %v2628
          %v2630 = vand.u32 %v391, 4294901760
          %2631 = vmatmul.f32.gmra.mxu0 %v2630
          %v2632 = vpop.f32.mrf.mxu0
          %v2633 = vadd.f32 %v2486, %v2632
          %v2634 = vand.u32 %v394, 4294901760
          %2635 = vmatmul.f32.gmra.mxu0 %v2634
          %v2636 = vpop.f32.mrf.mxu0
          %v2637 = vadd.f32 %v2490, %v2636
          %v2638 = vand.u32 %v397, 4294901760
          %2639 = vmatmul.f32.gmra.mxu0 %v2638
          %v2640 = vpop.f32.mrf.mxu0
          %v2641 = vadd.f32 %v2494, %v2640
          %v2642 = vand.u32 %v400, 4294901760
          %2643 = vmatmul.f32.gmra.mxu0 %v2642
          %v2644 = vpop.f32.mrf.mxu0
          %v2645 = vadd.f32 %v2498, %v2644
          %v2646 = vand.u32 %v403, 4294901760
          %2647 = vmatmul.f32.gmra.mxu0 %v2646
          %v2648 = vpop.f32.mrf.mxu0
          %v2649 = vadd.f32 %v2502, %v2648
          %v2650 = vand.u32 %v406, 4294901760
          %2651 = vmatmul.f32.gmra.mxu0 %v2650
          %v2652 = vpop.f32.mrf.mxu0
          %v2653 = vadd.f32 %v2506, %v2652
          %2654 = vdwg.mxu0
          %v2655 = vmax.f32 %v1409, %v1425
          %v2656 = vmax.f32 %v2529, %v2545
          %v2657 = vmax.f32 %v1413, %v1429
          %v2658 = vmax.f32 %v2533, %v2549
          %v2659 = vmax.f32 %v1417, %v1433
          %v2660 = vmax.f32 %v2537, %v2553
          %v2661 = vmax.f32 %v1421, %v1437
          %v2662 = vmax.f32 %v2541, %v2557
          %v2663 = vmin.f32 %v1409, %v1425
          %v2664 = vmin.f32 %v2529, %v2545
          %v2665 = vmin.f32 %v1413, %v1429
          %v2666 = vmin.f32 %v2533, %v2549
          %v2667 = vmin.f32 %v1417, %v1433
          %v2668 = vmin.f32 %v2537, %v2553
          %v2669 = vmin.f32 %v1421, %v1437
          %v2670 = vmin.f32 %v2541, %v2557
          %v2671 = vmax.f32 %v2655, %v1441
          %v2672 = vmax.f32 %v2656, %v2561
          %v2673 = vmax.f32 %v2657, %v1445
          %v2674 = vmax.f32 %v2658, %v2565
          %v2675 = vmax.f32 %v2659, %v1449
          %v2676 = vmax.f32 %v2660, %v2569
          %v2677 = vmax.f32 %v2661, %v1453
          %v2678 = vmax.f32 %v2662, %v2573
          %v2679 = vmin.f32 %v2663, %v1441
          %v2680 = vmin.f32 %v2664, %v2561
          %v2681 = vmin.f32 %v2665, %v1445
          %v2682 = vmin.f32 %v2666, %v2565
          %v2683 = vmin.f32 %v2667, %v1449
          %v2684 = vmin.f32 %v2668, %v2569
          %v2685 = vmin.f32 %v2669, %v1453
          %v2686 = vmin.f32 %v2670, %v2573
          %v2687 = vmax.f32 %v2671, %v1457
          %v2688 = vmax.f32 %v2672, %v2577
          %v2689 = vmax.f32 %v2673, %v1461
          %v2690 = vmax.f32 %v2674, %v2581
          %v2691 = vmax.f32 %v2675, %v1465
          %v2692 = vmax.f32 %v2676, %v2585
          %v2693 = vmax.f32 %v2677, %v1469
          %v2694 = vmax.f32 %v2678, %v2589
          %v2695 = vmin.f32 %v2679, %v1457
          %v2696 = vmin.f32 %v2680, %v2577
          %v2697 = vmin.f32 %v2681, %v1461
          %v2698 = vmin.f32 %v2682, %v2581
          %v2699 = vmin.f32 %v2683, %v1465
          %v2700 = vmin.f32 %v2684, %v2585
          %v2701 = vmin.f32 %v2685, %v1469
          %v2702 = vmin.f32 %v2686, %v2589
          %v2703 = vmax.f32 %v2687, %v1473
          %v2704 = vmax.f32 %v2688, %v2593
          %v2705 = vmax.f32 %v2689, %v1477
          %v2706 = vmax.f32 %v2690, %v2597
          %v2707 = vmax.f32 %v2691, %v1481
          %v2708 = vmax.f32 %v2692, %v2601
          %v2709 = vmax.f32 %v2693, %v1485
          %v2710 = vmax.f32 %v2694, %v2605
          %v2711 = vmin.f32 %v2695, %v1473
          %v2712 = vmin.f32 %v2696, %v2593
          %v2713 = vmin.f32 %v2697, %v1477
          %v2714 = vmin.f32 %v2698, %v2597
          %v2715 = vmin.f32 %v2699, %v1481
          %v2716 = vmin.f32 %v2700, %v2601
          %v2717 = vmin.f32 %v2701, %v1485
          %v2718 = vmin.f32 %v2702, %v2605
          %v2719 = vmax.f32 %v2703, %v1489
          %v2720 = vmax.f32 %v2704, %v2609
          %v2721 = vmax.f32 %v2705, %v1493
          %v2722 = vmax.f32 %v2706, %v2613
          %v2723 = vmax.f32 %v2707, %v1497
          %v2724 = vmax.f32 %v2708, %v2617
          %v2725 = vmax.f32 %v2709, %v1501
          %v2726 = vmax.f32 %v2710, %v2621
          %v2727 = vmin.f32 %v2711, %v1489
          %v2728 = vmin.f32 %v2712, %v2609
          %v2729 = vmin.f32 %v2713, %v1493
          %v2730 = vmin.f32 %v2714, %v2613
          %v2731 = vmin.f32 %v2715, %v1497
          %v2732 = vmin.f32 %v2716, %v2617
          %v2733 = vmin.f32 %v2717, %v1501
          %v2734 = vmin.f32 %v2718, %v2621
          %v2735 = vmax.f32 %v2719, %v1505
          %v2736 = vmax.f32 %v2720, %v2625
          %v2737 = vmax.f32 %v2721, %v1509
          %v2738 = vmax.f32 %v2722, %v2629
          %v2739 = vmax.f32 %v2723, %v1513
          %v2740 = vmax.f32 %v2724, %v2633
          %v2741 = vmax.f32 %v2725, %v1517
          %v2742 = vmax.f32 %v2726, %v2637
          %v2743 = vmin.f32 %v2727, %v1505
          %v2744 = vmin.f32 %v2728, %v2625
          %v2745 = vmin.f32 %v2729, %v1509
          %v2746 = vmin.f32 %v2730, %v2629
          %v2747 = vmin.f32 %v2731, %v1513
          %v2748 = vmin.f32 %v2732, %v2633
          %v2749 = vmin.f32 %v2733, %v1517
          %v2750 = vmin.f32 %v2734, %v2637
          %v2751 = vmax.f32 %v2735, %v1521
          %v2752 = vmax.f32 %v2736, %v2641
          %v2753 = vmax.f32 %v2737, %v1525
          %v2754 = vmax.f32 %v2738, %v2645
          %v2755 = vmax.f32 %v2739, %v1529
          %v2756 = vmax.f32 %v2740, %v2649
          %v2757 = vmax.f32 %v2741, %v1533
          %v2758 = vmax.f32 %v2742, %v2653
          %v2759 = vmin.f32 %v2743, %v1521
          %v2760 = vmin.f32 %v2744, %v2641
          %v2761 = vmin.f32 %v2745, %v1525
          %v2762 = vmin.f32 %v2746, %v2645
          %v2763 = vmin.f32 %v2747, %v1529
          %v2764 = vmin.f32 %v2748, %v2649
          %v2765 = vmin.f32 %v2749, %v1533
          %v2766 = vmin.f32 %v2750, %v2653
          %v2767 = vlaneseq
          %v2768 = vand.u32 %v2767, 127
          %v2769 = vadd.s32 %v2768, 128
          %v2770 = vstv %s302
          %v2771 = vadd.s32 %v2770, %v2768
          %v2772 = vadd.s32 %v2770, %v2769
          %v2773 = vstv %s199
          %vm2774 = vcmp.lt.s32.totalorder %v2771, %v2773
          %vm2775 = vcmp.lt.s32.totalorder %v2772, %v2773
          %vm2776 = vcmp.eq.f32.partialorder %v1409, %v2751
          %vm2777 = vcmp.eq.f32.partialorder %v2529, %v2752
          %vm2778 = vcmp.eq.f32.partialorder %v1413, %v2753
          %vm2779 = vcmp.eq.f32.partialorder %v2533, %v2754
          %vm2780 = vcmp.eq.f32.partialorder %v1417, %v2755
          %vm2781 = vcmp.eq.f32.partialorder %v2537, %v2756
          %vm2782 = vcmp.eq.f32.partialorder %v1421, %v2757
          %vm2783 = vcmp.eq.f32.partialorder %v2541, %v2758
          %vm2784 = vcmp.eq.f32.partialorder %v1409, %v2759
          %vm2785 = vcmp.eq.f32.partialorder %v2529, %v2760
          %vm2786 = vcmp.eq.f32.partialorder %v1413, %v2761
          %vm2787 = vcmp.eq.f32.partialorder %v2533, %v2762
          %vm2788 = vcmp.eq.f32.partialorder %v1417, %v2763
          %vm2789 = vcmp.eq.f32.partialorder %v2537, %v2764
          %vm2790 = vcmp.eq.f32.partialorder %v1421, %v2765
          %vm2791 = vcmp.eq.f32.partialorder %v2541, %v2766
          %vm2792 = vmand %vm2776, %vm2774
          %vm2793 = vmand %vm2777, %vm2775
          %vm2794 = vmand %vm2778, %vm2774
          %vm2795 = vmand %vm2779, %vm2775
          %vm2796 = vmand %vm2780, %vm2774
          %vm2797 = vmand %vm2781, %vm2775
          %vm2798 = vmand %vm2782, %vm2774
          %vm2799 = vmand %vm2783, %vm2775
          %v2800 = vsel %vm2792, %v1409, 0.0
          %v2801 = vsel %vm2793, %v2529, 0.0
          %v2802 = vsel %vm2794, %v1413, 0.0
          %v2803 = vsel %vm2795, %v2533, 0.0
          %v2804 = vsel %vm2796, %v1417, 0.0
          %v2805 = vsel %vm2797, %v2537, 0.0
          %v2806 = vsel %vm2798, %v1421, 0.0
          %v2807 = vsel %vm2799, %v2541, 0.0
          %vm2808 = vmand %vm2784, %vm2774
          %vm2809 = vmand %vm2785, %vm2775
          %vm2810 = vmand %vm2786, %vm2774
          %vm2811 = vmand %vm2787, %vm2775
          %vm2812 = vmand %vm2788, %vm2774
          %vm2813 = vmand %vm2789, %vm2775
          %vm2814 = vmand %vm2790, %vm2774
          %vm2815 = vmand %vm2791, %vm2775
          %v2816 = vsel %vm2808, 1.0, 0.0
          %v2817 = vsel %vm2809, 1.0, 0.0
          %v2818 = vsel %vm2810, 1.0, 0.0
          %v2819 = vsel %vm2811, 1.0, 0.0
          %v2820 = vsel %vm2812, 1.0, 0.0
          %v2821 = vsel %vm2813, 1.0, 0.0
          %v2822 = vsel %vm2814, 1.0, 0.0
          %v2823 = vsel %vm2815, 1.0, 0.0
          %vm2824 = vcmp.eq.f32.partialorder %v1425, %v2751
          %vm2825 = vcmp.eq.f32.partialorder %v2545, %v2752
          %vm2826 = vcmp.eq.f32.partialorder %v1429, %v2753
          %vm2827 = vcmp.eq.f32.partialorder %v2549, %v2754
          %vm2828 = vcmp.eq.f32.partialorder %v1433, %v2755
          %vm2829 = vcmp.eq.f32.partialorder %v2553, %v2756
          %vm2830 = vcmp.eq.f32.partialorder %v1437, %v2757
          %vm2831 = vcmp.eq.f32.partialorder %v2557, %v2758
          %vm2832 = vmxor %vm2776, 1
          %vm2833 = vmxor %vm2777, 1
          %vm2834 = vmxor %vm2778, 1
          %vm2835 = vmxor %vm2779, 1
          %vm2836 = vmxor %vm2780, 1
          %vm2837 = vmxor %vm2781, 1
          %vm2838 = vmxor %vm2782, 1
          %vm2839 = vmxor %vm2783, 1
          %vm2840 = vmand %vm2824, %vm2832
          %vm2841 = vmand %vm2825, %vm2833
          %vm2842 = vmand %vm2826, %vm2834
          %vm2843 = vmand %vm2827, %vm2835
          %vm2844 = vmand %vm2828, %vm2836
          %vm2845 = vmand %vm2829, %vm2837
          %vm2846 = vmand %vm2830, %vm2838
          %vm2847 = vmand %vm2831, %vm2839
          %vm2848 = vcmp.eq.f32.partialorder %v1425, %v2759
          %vm2849 = vcmp.eq.f32.partialorder %v2545, %v2760
          %vm2850 = vcmp.eq.f32.partialorder %v1429, %v2761
          %vm2851 = vcmp.eq.f32.partialorder %v2549, %v2762
          %vm2852 = vcmp.eq.f32.partialorder %v1433, %v2763
          %vm2853 = vcmp.eq.f32.partialorder %v2553, %v2764
          %vm2854 = vcmp.eq.f32.partialorder %v1437, %v2765
          %vm2855 = vcmp.eq.f32.partialorder %v2557, %v2766
          %vm2856 = vmxor %vm2784, 1
          %vm2857 = vmxor %vm2785, 1
          %vm2858 = vmxor %vm2786, 1
          %vm2859 = vmxor %vm2787, 1
          %vm2860 = vmxor %vm2788, 1
          %vm2861 = vmxor %vm2789, 1
          %vm2862 = vmxor %vm2790, 1
          %vm2863 = vmxor %vm2791, 1
          %vm2864 = vmand %vm2848, %vm2856
          %vm2865 = vmand %vm2849, %vm2857
          %vm2866 = vmand %vm2850, %vm2858
          %vm2867 = vmand %vm2851, %vm2859
          %vm2868 = vmand %vm2852, %vm2860
          %vm2869 = vmand %vm2853, %vm2861
          %vm2870 = vmand %vm2854, %vm2862
          %vm2871 = vmand %vm2855, %vm2863
          %vm2872 = vmor %vm2776, %vm2840
          %vm2873 = vmor %vm2777, %vm2841
          %vm2874 = vmor %vm2778, %vm2842
          %vm2875 = vmor %vm2779, %vm2843
          %vm2876 = vmor %vm2780, %vm2844
          %vm2877 = vmor %vm2781, %vm2845
          %vm2878 = vmor %vm2782, %vm2846
          %vm2879 = vmor %vm2783, %vm2847
          %vm2880 = vmor %vm2784, %vm2864
          %vm2881 = vmor %vm2785, %vm2865
          %vm2882 = vmor %vm2786, %vm2866
          %vm2883 = vmor %vm2787, %vm2867
          %vm2884 = vmor %vm2788, %vm2868
          %vm2885 = vmor %vm2789, %vm2869
          %vm2886 = vmor %vm2790, %vm2870
          %vm2887 = vmor %vm2791, %vm2871
          %vm2888 = vmand %vm2840, %vm2774
          %vm2889 = vmand %vm2841, %vm2775
          %vm2890 = vmand %vm2842, %vm2774
          %vm2891 = vmand %vm2843, %vm2775
          %vm2892 = vmand %vm2844, %vm2774
          %vm2893 = vmand %vm2845, %vm2775
          %vm2894 = vmand %vm2846, %vm2774
          %vm2895 = vmand %vm2847, %vm2775
          %v2896 = vsel %vm2888, %v1425, 0.0
          %v2897 = vsel %vm2889, %v2545, 0.0
          %v2898 = vsel %vm2890, %v1429, 0.0
          %v2899 = vsel %vm2891, %v2549, 0.0
          %v2900 = vsel %vm2892, %v1433, 0.0
          %v2901 = vsel %vm2893, %v2553, 0.0
          %v2902 = vsel %vm2894, %v1437, 0.0
          %v2903 = vsel %vm2895, %v2557, 0.0
          %vm2904 = vmand %vm2864, %vm2774
          %vm2905 = vmand %vm2865, %vm2775
          %vm2906 = vmand %vm2866, %vm2774
          %vm2907 = vmand %vm2867, %vm2775
          %vm2908 = vmand %vm2868, %vm2774
          %vm2909 = vmand %vm2869, %vm2775
          %vm2910 = vmand %vm2870, %vm2774
          %vm2911 = vmand %vm2871, %vm2775
          %v2912 = vsel %vm2904, 1.0, 0.0
          %v2913 = vsel %vm2905, 1.0, 0.0
          %v2914 = vsel %vm2906, 1.0, 0.0
          %v2915 = vsel %vm2907, 1.0, 0.0
          %v2916 = vsel %vm2908, 1.0, 0.0
          %v2917 = vsel %vm2909, 1.0, 0.0
          %v2918 = vsel %vm2910, 1.0, 0.0
          %v2919 = vsel %vm2911, 1.0, 0.0
          %vm2920 = vcmp.eq.f32.partialorder %v1441, %v2751
          %vm2921 = vcmp.eq.f32.partialorder %v2561, %v2752
          %vm2922 = vcmp.eq.f32.partialorder %v1445, %v2753
          %vm2923 = vcmp.eq.f32.partialorder %v2565, %v2754
          %vm2924 = vcmp.eq.f32.partialorder %v1449, %v2755
          %vm2925 = vcmp.eq.f32.partialorder %v2569, %v2756
          %vm2926 = vcmp.eq.f32.partialorder %v1453, %v2757
          %vm2927 = vcmp.eq.f32.partialorder %v2573, %v2758
          %vm2928 = vmxor %vm2872, 1
          %vm2929 = vmxor %vm2873, 1
          %vm2930 = vmxor %vm2874, 1
          %vm2931 = vmxor %vm2875, 1
          %vm2932 = vmxor %vm2876, 1
          %vm2933 = vmxor %vm2877, 1
          %vm2934 = vmxor %vm2878, 1
          %vm2935 = vmxor %vm2879, 1
          %vm2936 = vmand %vm2920, %vm2928
          %vm2937 = vmand %vm2921, %vm2929
          %vm2938 = vmand %vm2922, %vm2930
          %vm2939 = vmand %vm2923, %vm2931
          %vm2940 = vmand %vm2924, %vm2932
          %vm2941 = vmand %vm2925, %vm2933
          %vm2942 = vmand %vm2926, %vm2934
          %vm2943 = vmand %vm2927, %vm2935
          %vm2944 = vcmp.eq.f32.partialorder %v1441, %v2759
          %vm2945 = vcmp.eq.f32.partialorder %v2561, %v2760
          %vm2946 = vcmp.eq.f32.partialorder %v1445, %v2761
          %vm2947 = vcmp.eq.f32.partialorder %v2565, %v2762
          %vm2948 = vcmp.eq.f32.partialorder %v1449, %v2763
          %vm2949 = vcmp.eq.f32.partialorder %v2569, %v2764
          %vm2950 = vcmp.eq.f32.partialorder %v1453, %v2765
          %vm2951 = vcmp.eq.f32.partialorder %v2573, %v2766
          %vm2952 = vmxor %vm2880, 1
          %vm2953 = vmxor %vm2881, 1
          %vm2954 = vmxor %vm2882, 1
          %vm2955 = vmxor %vm2883, 1
          %vm2956 = vmxor %vm2884, 1
          %vm2957 = vmxor %vm2885, 1
          %vm2958 = vmxor %vm2886, 1
          %vm2959 = vmxor %vm2887, 1
          %vm2960 = vmand %vm2944, %vm2952
          %vm2961 = vmand %vm2945, %vm2953
          %vm2962 = vmand %vm2946, %vm2954
          %vm2963 = vmand %vm2947, %vm2955
          %vm2964 = vmand %vm2948, %vm2956
          %vm2965 = vmand %vm2949, %vm2957
          %vm2966 = vmand %vm2950, %vm2958
          %vm2967 = vmand %vm2951, %vm2959
          %vm2968 = vmor %vm2872, %vm2936
          %vm2969 = vmor %vm2873, %vm2937
          %vm2970 = vmor %vm2874, %vm2938
          %vm2971 = vmor %vm2875, %vm2939
          %vm2972 = vmor %vm2876, %vm2940
          %vm2973 = vmor %vm2877, %vm2941
          %vm2974 = vmor %vm2878, %vm2942
          %vm2975 = vmor %vm2879, %vm2943
          %vm2976 = vmor %vm2880, %vm2960
          %vm2977 = vmor %vm2881, %vm2961
          %vm2978 = vmor %vm2882, %vm2962
          %vm2979 = vmor %vm2883, %vm2963
          %vm2980 = vmor %vm2884, %vm2964
          %vm2981 = vmor %vm2885, %vm2965
          %vm2982 = vmor %vm2886, %vm2966
          %vm2983 = vmor %vm2887, %vm2967
          %vm2984 = vmand %vm2936, %vm2774
          %vm2985 = vmand %vm2937, %vm2775
          %vm2986 = vmand %vm2938, %vm2774
          %vm2987 = vmand %vm2939, %vm2775
          %vm2988 = vmand %vm2940, %vm2774
          %vm2989 = vmand %vm2941, %vm2775
          %vm2990 = vmand %vm2942, %vm2774
          %vm2991 = vmand %vm2943, %vm2775
          %v2992 = vsel %vm2984, %v1441, 0.0
          %v2993 = vsel %vm2985, %v2561, 0.0
          %v2994 = vsel %vm2986, %v1445, 0.0
          %v2995 = vsel %vm2987, %v2565, 0.0
          %v2996 = vsel %vm2988, %v1449, 0.0
          %v2997 = vsel %vm2989, %v2569, 0.0
          %v2998 = vsel %vm2990, %v1453, 0.0
          %v2999 = vsel %vm2991, %v2573, 0.0
          %vm3000 = vmand %vm2960, %vm2774
          %vm3001 = vmand %vm2961, %vm2775
          %vm3002 = vmand %vm2962, %vm2774
          %vm3003 = vmand %vm2963, %vm2775
          %vm3004 = vmand %vm2964, %vm2774
          %vm3005 = vmand %vm2965, %vm2775
          %vm3006 = vmand %vm2966, %vm2774
          %vm3007 = vmand %vm2967, %vm2775
          %v3008 = vsel %vm3000, 1.0, 0.0
          %v3009 = vsel %vm3001, 1.0, 0.0
          %v3010 = vsel %vm3002, 1.0, 0.0
          %v3011 = vsel %vm3003, 1.0, 0.0
          %v3012 = vsel %vm3004, 1.0, 0.0
          %v3013 = vsel %vm3005, 1.0, 0.0
          %v3014 = vsel %vm3006, 1.0, 0.0
          %v3015 = vsel %vm3007, 1.0, 0.0
          %vm3016 = vcmp.eq.f32.partialorder %v1457, %v2751
          %vm3017 = vcmp.eq.f32.partialorder %v2577, %v2752
          %vm3018 = vcmp.eq.f32.partialorder %v1461, %v2753
          %vm3019 = vcmp.eq.f32.partialorder %v2581, %v2754
          %vm3020 = vcmp.eq.f32.partialorder %v1465, %v2755
          %vm3021 = vcmp.eq.f32.partialorder %v2585, %v2756
          %vm3022 = vcmp.eq.f32.partialorder %v1469, %v2757
          %vm3023 = vcmp.eq.f32.partialorder %v2589, %v2758
          %vm3024 = vmxor %vm2968, 1
          %vm3025 = vmxor %vm2969, 1
          %vm3026 = vmxor %vm2970, 1
          %vm3027 = vmxor %vm2971, 1
          %vm3028 = vmxor %vm2972, 1
          %vm3029 = vmxor %vm2973, 1
          %vm3030 = vmxor %vm2974, 1
          %vm3031 = vmxor %vm2975, 1
          %vm3032 = vmand %vm3016, %vm3024
          %vm3033 = vmand %vm3017, %vm3025
          %vm3034 = vmand %vm3018, %vm3026
          %vm3035 = vmand %vm3019, %vm3027
          %vm3036 = vmand %vm3020, %vm3028
          %vm3037 = vmand %vm3021, %vm3029
          %vm3038 = vmand %vm3022, %vm3030
          %vm3039 = vmand %vm3023, %vm3031
          %vm3040 = vcmp.eq.f32.partialorder %v1457, %v2759
          %vm3041 = vcmp.eq.f32.partialorder %v2577, %v2760
          %vm3042 = vcmp.eq.f32.partialorder %v1461, %v2761
          %vm3043 = vcmp.eq.f32.partialorder %v2581, %v2762
          %vm3044 = vcmp.eq.f32.partialorder %v1465, %v2763
          %vm3045 = vcmp.eq.f32.partialorder %v2585, %v2764
          %vm3046 = vcmp.eq.f32.partialorder %v1469, %v2765
          %vm3047 = vcmp.eq.f32.partialorder %v2589, %v2766
          %vm3048 = vmxor %vm2976, 1
          %vm3049 = vmxor %vm2977, 1
          %vm3050 = vmxor %vm2978, 1
          %vm3051 = vmxor %vm2979, 1
          %vm3052 = vmxor %vm2980, 1
          %vm3053 = vmxor %vm2981, 1
          %vm3054 = vmxor %vm2982, 1
          %vm3055 = vmxor %vm2983, 1
          %vm3056 = vmand %vm3040, %vm3048
          %vm3057 = vmand %vm3041, %vm3049
          %vm3058 = vmand %vm3042, %vm3050
          %vm3059 = vmand %vm3043, %vm3051
          %vm3060 = vmand %vm3044, %vm3052
          %vm3061 = vmand %vm3045, %vm3053
          %vm3062 = vmand %vm3046, %vm3054
          %vm3063 = vmand %vm3047, %vm3055
          %vm3064 = vmor %vm2968, %vm3032
          %vm3065 = vmor %vm2969, %vm3033
          %vm3066 = vmor %vm2970, %vm3034
          %vm3067 = vmor %vm2971, %vm3035
          %vm3068 = vmor %vm2972, %vm3036
          %vm3069 = vmor %vm2973, %vm3037
          %vm3070 = vmor %vm2974, %vm3038
          %vm3071 = vmor %vm2975, %vm3039
          %vm3072 = vmor %vm2976, %vm3056
          %vm3073 = vmor %vm2977, %vm3057
          %vm3074 = vmor %vm2978, %vm3058
          %vm3075 = vmor %vm2979, %vm3059
          %vm3076 = vmor %vm2980, %vm3060
          %vm3077 = vmor %vm2981, %vm3061
          %vm3078 = vmor %vm2982, %vm3062
          %vm3079 = vmor %vm2983, %vm3063
          %vm3080 = vmand %vm3032, %vm2774
          %vm3081 = vmand %vm3033, %vm2775
          %vm3082 = vmand %vm3034, %vm2774
          %vm3083 = vmand %vm3035, %vm2775
          %vm3084 = vmand %vm3036, %vm2774
          %vm3085 = vmand %vm3037, %vm2775
          %vm3086 = vmand %vm3038, %vm2774
          %vm3087 = vmand %vm3039, %vm2775
          %v3088 = vsel %vm3080, %v1457, 0.0
          %v3089 = vsel %vm3081, %v2577, 0.0
          %v3090 = vsel %vm3082, %v1461, 0.0
          %v3091 = vsel %vm3083, %v2581, 0.0
          %v3092 = vsel %vm3084, %v1465, 0.0
          %v3093 = vsel %vm3085, %v2585, 0.0
          %v3094 = vsel %vm3086, %v1469, 0.0
          %v3095 = vsel %vm3087, %v2589, 0.0
          %vm3096 = vmand %vm3056, %vm2774
          %vm3097 = vmand %vm3057, %vm2775
          %vm3098 = vmand %vm3058, %vm2774
          %vm3099 = vmand %vm3059, %vm2775
          %vm3100 = vmand %vm3060, %vm2774
          %vm3101 = vmand %vm3061, %vm2775
          %vm3102 = vmand %vm3062, %vm2774
          %vm3103 = vmand %vm3063, %vm2775
          %v3104 = vsel %vm3096, 1.0, 0.0
          %v3105 = vsel %vm3097, 1.0, 0.0
          %v3106 = vsel %vm3098, 1.0, 0.0
          %v3107 = vsel %vm3099, 1.0, 0.0
          %v3108 = vsel %vm3100, 1.0, 0.0
          %v3109 = vsel %vm3101, 1.0, 0.0
          %v3110 = vsel %vm3102, 1.0, 0.0
          %v3111 = vsel %vm3103, 1.0, 0.0
          %vm3112 = vcmp.eq.f32.partialorder %v1473, %v2751
          %vm3113 = vcmp.eq.f32.partialorder %v2593, %v2752
          %vm3114 = vcmp.eq.f32.partialorder %v1477, %v2753
          %vm3115 = vcmp.eq.f32.partialorder %v2597, %v2754
          %vm3116 = vcmp.eq.f32.partialorder %v1481, %v2755
          %vm3117 = vcmp.eq.f32.partialorder %v2601, %v2756
          %vm3118 = vcmp.eq.f32.partialorder %v1485, %v2757
          %vm3119 = vcmp.eq.f32.partialorder %v2605, %v2758
          %vm3120 = vmxor %vm3064, 1
          %vm3121 = vmxor %vm3065, 1
          %vm3122 = vmxor %vm3066, 1
          %vm3123 = vmxor %vm3067, 1
          %vm3124 = vmxor %vm3068, 1
          %vm3125 = vmxor %vm3069, 1
          %vm3126 = vmxor %vm3070, 1
          %vm3127 = vmxor %vm3071, 1
          %vm3128 = vmand %vm3112, %vm3120
          %vm3129 = vmand %vm3113, %vm3121
          %vm3130 = vmand %vm3114, %vm3122
          %vm3131 = vmand %vm3115, %vm3123
          %vm3132 = vmand %vm3116, %vm3124
          %vm3133 = vmand %vm3117, %vm3125
          %vm3134 = vmand %vm3118, %vm3126
          %vm3135 = vmand %vm3119, %vm3127
          %vm3136 = vcmp.eq.f32.partialorder %v1473, %v2759
          %vm3137 = vcmp.eq.f32.partialorder %v2593, %v2760
          %vm3138 = vcmp.eq.f32.partialorder %v1477, %v2761
          %vm3139 = vcmp.eq.f32.partialorder %v2597, %v2762
          %vm3140 = vcmp.eq.f32.partialorder %v1481, %v2763
          %vm3141 = vcmp.eq.f32.partialorder %v2601, %v2764
          %vm3142 = vcmp.eq.f32.partialorder %v1485, %v2765
          %vm3143 = vcmp.eq.f32.partialorder %v2605, %v2766
          %vm3144 = vmxor %vm3072, 1
          %vm3145 = vmxor %vm3073, 1
          %vm3146 = vmxor %vm3074, 1
          %vm3147 = vmxor %vm3075, 1
          %vm3148 = vmxor %vm3076, 1
          %vm3149 = vmxor %vm3077, 1
          %vm3150 = vmxor %vm3078, 1
          %vm3151 = vmxor %vm3079, 1
          %vm3152 = vmand %vm3136, %vm3144
          %vm3153 = vmand %vm3137, %vm3145
          %vm3154 = vmand %vm3138, %vm3146
          %vm3155 = vmand %vm3139, %vm3147
          %vm3156 = vmand %vm3140, %vm3148
          %vm3157 = vmand %vm3141, %vm3149
          %vm3158 = vmand %vm3142, %vm3150
          %vm3159 = vmand %vm3143, %vm3151
          %vm3160 = vmor %vm3064, %vm3128
          %vm3161 = vmor %vm3065, %vm3129
          %vm3162 = vmor %vm3066, %vm3130
          %vm3163 = vmor %vm3067, %vm3131
          %vm3164 = vmor %vm3068, %vm3132
          %vm3165 = vmor %vm3069, %vm3133
          %vm3166 = vmor %vm3070, %vm3134
          %vm3167 = vmor %vm3071, %vm3135
          %vm3168 = vmor %vm3072, %vm3152
          %vm3169 = vmor %vm3073, %vm3153
          %vm3170 = vmor %vm3074, %vm3154
          %vm3171 = vmor %vm3075, %vm3155
          %vm3172 = vmor %vm3076, %vm3156
          %vm3173 = vmor %vm3077, %vm3157
          %vm3174 = vmor %vm3078, %vm3158
          %vm3175 = vmor %vm3079, %vm3159
          %vm3176 = vmand %vm3128, %vm2774
          %vm3177 = vmand %vm3129, %vm2775
          %vm3178 = vmand %vm3130, %vm2774
          %vm3179 = vmand %vm3131, %vm2775
          %vm3180 = vmand %vm3132, %vm2774
          %vm3181 = vmand %vm3133, %vm2775
          %vm3182 = vmand %vm3134, %vm2774
          %vm3183 = vmand %vm3135, %vm2775
          %v3184 = vsel %vm3176, %v1473, 0.0
          %v3185 = vsel %vm3177, %v2593, 0.0
          %v3186 = vsel %vm3178, %v1477, 0.0
          %v3187 = vsel %vm3179, %v2597, 0.0
          %v3188 = vsel %vm3180, %v1481, 0.0
          %v3189 = vsel %vm3181, %v2601, 0.0
          %v3190 = vsel %vm3182, %v1485, 0.0
          %v3191 = vsel %vm3183, %v2605, 0.0
          %vm3192 = vmand %vm3152, %vm2774
          %vm3193 = vmand %vm3153, %vm2775
          %vm3194 = vmand %vm3154, %vm2774
          %vm3195 = vmand %vm3155, %vm2775
          %vm3196 = vmand %vm3156, %vm2774
          %vm3197 = vmand %vm3157, %vm2775
          %vm3198 = vmand %vm3158, %vm2774
          %vm3199 = vmand %vm3159, %vm2775
          %v3200 = vsel %vm3192, 1.0, 0.0
          %v3201 = vsel %vm3193, 1.0, 0.0
          %v3202 = vsel %vm3194, 1.0, 0.0
          %v3203 = vsel %vm3195, 1.0, 0.0
          %v3204 = vsel %vm3196, 1.0, 0.0
          %v3205 = vsel %vm3197, 1.0, 0.0
          %v3206 = vsel %vm3198, 1.0, 0.0
          %v3207 = vsel %vm3199, 1.0, 0.0
          %vm3208 = vcmp.eq.f32.partialorder %v1489, %v2751
          %vm3209 = vcmp.eq.f32.partialorder %v2609, %v2752
          %vm3210 = vcmp.eq.f32.partialorder %v1493, %v2753
          %vm3211 = vcmp.eq.f32.partialorder %v2613, %v2754
          %vm3212 = vcmp.eq.f32.partialorder %v1497, %v2755
          %vm3213 = vcmp.eq.f32.partialorder %v2617, %v2756
          %vm3214 = vcmp.eq.f32.partialorder %v1501, %v2757
          %vm3215 = vcmp.eq.f32.partialorder %v2621, %v2758
          %vm3216 = vmxor %vm3160, 1
          %vm3217 = vmxor %vm3161, 1
          %vm3218 = vmxor %vm3162, 1
          %vm3219 = vmxor %vm3163, 1
          %vm3220 = vmxor %vm3164, 1
          %vm3221 = vmxor %vm3165, 1
          %vm3222 = vmxor %vm3166, 1
          %vm3223 = vmxor %vm3167, 1
          %vm3224 = vmand %vm3208, %vm3216
          %vm3225 = vmand %vm3209, %vm3217
          %vm3226 = vmand %vm3210, %vm3218
          %vm3227 = vmand %vm3211, %vm3219
          %vm3228 = vmand %vm3212, %vm3220
          %vm3229 = vmand %vm3213, %vm3221
          %vm3230 = vmand %vm3214, %vm3222
          %vm3231 = vmand %vm3215, %vm3223
          %vm3232 = vcmp.eq.f32.partialorder %v1489, %v2759
          %vm3233 = vcmp.eq.f32.partialorder %v2609, %v2760
          %vm3234 = vcmp.eq.f32.partialorder %v1493, %v2761
          %vm3235 = vcmp.eq.f32.partialorder %v2613, %v2762
          %vm3236 = vcmp.eq.f32.partialorder %v1497, %v2763
          %vm3237 = vcmp.eq.f32.partialorder %v2617, %v2764
          %vm3238 = vcmp.eq.f32.partialorder %v1501, %v2765
          %vm3239 = vcmp.eq.f32.partialorder %v2621, %v2766
          %vm3240 = vmxor %vm3168, 1
          %vm3241 = vmxor %vm3169, 1
          %vm3242 = vmxor %vm3170, 1
          %vm3243 = vmxor %vm3171, 1
          %vm3244 = vmxor %vm3172, 1
          %vm3245 = vmxor %vm3173, 1
          %vm3246 = vmxor %vm3174, 1
          %vm3247 = vmxor %vm3175, 1
          %vm3248 = vmand %vm3232, %vm3240
          %vm3249 = vmand %vm3233, %vm3241
          %vm3250 = vmand %vm3234, %vm3242
          %vm3251 = vmand %vm3235, %vm3243
          %vm3252 = vmand %vm3236, %vm3244
          %vm3253 = vmand %vm3237, %vm3245
          %vm3254 = vmand %vm3238, %vm3246
          %vm3255 = vmand %vm3239, %vm3247
          %vm3256 = vmor %vm3160, %vm3224
          %vm3257 = vmor %vm3161, %vm3225
          %vm3258 = vmor %vm3162, %vm3226
          %vm3259 = vmor %vm3163, %vm3227
          %vm3260 = vmor %vm3164, %vm3228
          %vm3261 = vmor %vm3165, %vm3229
          %vm3262 = vmor %vm3166, %vm3230
          %vm3263 = vmor %vm3167, %vm3231
          %vm3264 = vmor %vm3168, %vm3248
          %vm3265 = vmor %vm3169, %vm3249
          %vm3266 = vmor %vm3170, %vm3250
          %vm3267 = vmor %vm3171, %vm3251
          %vm3268 = vmor %vm3172, %vm3252
          %vm3269 = vmor %vm3173, %vm3253
          %vm3270 = vmor %vm3174, %vm3254
          %vm3271 = vmor %vm3175, %vm3255
          %vm3272 = vmand %vm3224, %vm2774
          %vm3273 = vmand %vm3225, %vm2775
          %vm3274 = vmand %vm3226, %vm2774
          %vm3275 = vmand %vm3227, %vm2775
          %vm3276 = vmand %vm3228, %vm2774
          %vm3277 = vmand %vm3229, %vm2775
          %vm3278 = vmand %vm3230, %vm2774
          %vm3279 = vmand %vm3231, %vm2775
          %v3280 = vsel %vm3272, %v1489, 0.0
          %v3281 = vsel %vm3273, %v2609, 0.0
          %v3282 = vsel %vm3274, %v1493, 0.0
          %v3283 = vsel %vm3275, %v2613, 0.0
          %v3284 = vsel %vm3276, %v1497, 0.0
          %v3285 = vsel %vm3277, %v2617, 0.0
          %v3286 = vsel %vm3278, %v1501, 0.0
          %v3287 = vsel %vm3279, %v2621, 0.0
          %vm3288 = vmand %vm3248, %vm2774
          %vm3289 = vmand %vm3249, %vm2775
          %vm3290 = vmand %vm3250, %vm2774
          %vm3291 = vmand %vm3251, %vm2775
          %vm3292 = vmand %vm3252, %vm2774
          %vm3293 = vmand %vm3253, %vm2775
          %vm3294 = vmand %vm3254, %vm2774
          %vm3295 = vmand %vm3255, %vm2775
          %v3296 = vsel %vm3288, 1.0, 0.0
          %v3297 = vsel %vm3289, 1.0, 0.0
          %v3298 = vsel %vm3290, 1.0, 0.0
          %v3299 = vsel %vm3291, 1.0, 0.0
          %v3300 = vsel %vm3292, 1.0, 0.0
          %v3301 = vsel %vm3293, 1.0, 0.0
          %v3302 = vsel %vm3294, 1.0, 0.0
          %v3303 = vsel %vm3295, 1.0, 0.0
          %vm3304 = vcmp.eq.f32.partialorder %v1505, %v2751
          %vm3305 = vcmp.eq.f32.partialorder %v2625, %v2752
          %vm3306 = vcmp.eq.f32.partialorder %v1509, %v2753
          %vm3307 = vcmp.eq.f32.partialorder %v2629, %v2754
          %vm3308 = vcmp.eq.f32.partialorder %v1513, %v2755
          %vm3309 = vcmp.eq.f32.partialorder %v2633, %v2756
          %vm3310 = vcmp.eq.f32.partialorder %v1517, %v2757
          %vm3311 = vcmp.eq.f32.partialorder %v2637, %v2758
          %vm3312 = vmxor %vm3256, 1
          %vm3313 = vmxor %vm3257, 1
          %vm3314 = vmxor %vm3258, 1
          %vm3315 = vmxor %vm3259, 1
          %vm3316 = vmxor %vm3260, 1
          %vm3317 = vmxor %vm3261, 1
          %vm3318 = vmxor %vm3262, 1
          %vm3319 = vmxor %vm3263, 1
          %vm3320 = vmand %vm3304, %vm3312
          %vm3321 = vmand %vm3305, %vm3313
          %vm3322 = vmand %vm3306, %vm3314
          %vm3323 = vmand %vm3307, %vm3315
          %vm3324 = vmand %vm3308, %vm3316
          %vm3325 = vmand %vm3309, %vm3317
          %vm3326 = vmand %vm3310, %vm3318
          %vm3327 = vmand %vm3311, %vm3319
          %vm3328 = vcmp.eq.f32.partialorder %v1505, %v2759
          %vm3329 = vcmp.eq.f32.partialorder %v2625, %v2760
          %vm3330 = vcmp.eq.f32.partialorder %v1509, %v2761
          %vm3331 = vcmp.eq.f32.partialorder %v2629, %v2762
          %vm3332 = vcmp.eq.f32.partialorder %v1513, %v2763
          %vm3333 = vcmp.eq.f32.partialorder %v2633, %v2764
          %vm3334 = vcmp.eq.f32.partialorder %v1517, %v2765
          %vm3335 = vcmp.eq.f32.partialorder %v2637, %v2766
          %vm3336 = vmxor %vm3264, 1
          %vm3337 = vmxor %vm3265, 1
          %vm3338 = vmxor %vm3266, 1
          %vm3339 = vmxor %vm3267, 1
          %vm3340 = vmxor %vm3268, 1
          %vm3341 = vmxor %vm3269, 1
          %vm3342 = vmxor %vm3270, 1
          %vm3343 = vmxor %vm3271, 1
          %vm3344 = vmand %vm3328, %vm3336
          %vm3345 = vmand %vm3329, %vm3337
          %vm3346 = vmand %vm3330, %vm3338
          %vm3347 = vmand %vm3331, %vm3339
          %vm3348 = vmand %vm3332, %vm3340
          %vm3349 = vmand %vm3333, %vm3341
          %vm3350 = vmand %vm3334, %vm3342
          %vm3351 = vmand %vm3335, %vm3343
          %vm3352 = vmor %vm3256, %vm3320
          %vm3353 = vmor %vm3257, %vm3321
          %vm3354 = vmor %vm3258, %vm3322
          %vm3355 = vmor %vm3259, %vm3323
          %vm3356 = vmor %vm3260, %vm3324
          %vm3357 = vmor %vm3261, %vm3325
          %vm3358 = vmor %vm3262, %vm3326
          %vm3359 = vmor %vm3263, %vm3327
          %vm3360 = vmor %vm3264, %vm3344
          %vm3361 = vmor %vm3265, %vm3345
          %vm3362 = vmor %vm3266, %vm3346
          %vm3363 = vmor %vm3267, %vm3347
          %vm3364 = vmor %vm3268, %vm3348
          %vm3365 = vmor %vm3269, %vm3349
          %vm3366 = vmor %vm3270, %vm3350
          %vm3367 = vmor %vm3271, %vm3351
          %vm3368 = vmand %vm3320, %vm2774
          %vm3369 = vmand %vm3321, %vm2775
          %vm3370 = vmand %vm3322, %vm2774
          %vm3371 = vmand %vm3323, %vm2775
          %vm3372 = vmand %vm3324, %vm2774
          %vm3373 = vmand %vm3325, %vm2775
          %vm3374 = vmand %vm3326, %vm2774
          %vm3375 = vmand %vm3327, %vm2775
          %v3376 = vsel %vm3368, %v1505, 0.0
          %v3377 = vsel %vm3369, %v2625, 0.0
          %v3378 = vsel %vm3370, %v1509, 0.0
          %v3379 = vsel %vm3371, %v2629, 0.0
          %v3380 = vsel %vm3372, %v1513, 0.0
          %v3381 = vsel %vm3373, %v2633, 0.0
          %v3382 = vsel %vm3374, %v1517, 0.0
          %v3383 = vsel %vm3375, %v2637, 0.0
          %vm3384 = vmand %vm3344, %vm2774
          %vm3385 = vmand %vm3345, %vm2775
          %vm3386 = vmand %vm3346, %vm2774
          %vm3387 = vmand %vm3347, %vm2775
          %vm3388 = vmand %vm3348, %vm2774
          %vm3389 = vmand %vm3349, %vm2775
          %vm3390 = vmand %vm3350, %vm2774
          %vm3391 = vmand %vm3351, %vm2775
          %v3392 = vsel %vm3384, 1.0, 0.0
          %v3393 = vsel %vm3385, 1.0, 0.0
          %v3394 = vsel %vm3386, 1.0, 0.0
          %v3395 = vsel %vm3387, 1.0, 0.0
          %v3396 = vsel %vm3388, 1.0, 0.0
          %v3397 = vsel %vm3389, 1.0, 0.0
          %v3398 = vsel %vm3390, 1.0, 0.0
          %v3399 = vsel %vm3391, 1.0, 0.0
          %vm3400 = vcmp.eq.f32.partialorder %v1521, %v2751
          %vm3401 = vcmp.eq.f32.partialorder %v2641, %v2752
          %vm3402 = vcmp.eq.f32.partialorder %v1525, %v2753
          %vm3403 = vcmp.eq.f32.partialorder %v2645, %v2754
          %vm3404 = vcmp.eq.f32.partialorder %v1529, %v2755
          %vm3405 = vcmp.eq.f32.partialorder %v2649, %v2756
          %vm3406 = vcmp.eq.f32.partialorder %v1533, %v2757
          %vm3407 = vcmp.eq.f32.partialorder %v2653, %v2758
          %vm3408 = vmxor %vm3352, 1
          %vm3409 = vmxor %vm3353, 1
          %vm3410 = vmxor %vm3354, 1
          %vm3411 = vmxor %vm3355, 1
          %vm3412 = vmxor %vm3356, 1
          %vm3413 = vmxor %vm3357, 1
          %vm3414 = vmxor %vm3358, 1
          %vm3415 = vmxor %vm3359, 1
          %vm3416 = vmand %vm3400, %vm3408
          %vm3417 = vmand %vm3401, %vm3409
          %vm3418 = vmand %vm3402, %vm3410
          %vm3419 = vmand %vm3403, %vm3411
          %vm3420 = vmand %vm3404, %vm3412
          %vm3421 = vmand %vm3405, %vm3413
          %vm3422 = vmand %vm3406, %vm3414
          %vm3423 = vmand %vm3407, %vm3415
          %vm3424 = vcmp.eq.f32.partialorder %v1521, %v2759
          %vm3425 = vcmp.eq.f32.partialorder %v2641, %v2760
          %vm3426 = vcmp.eq.f32.partialorder %v1525, %v2761
          %vm3427 = vcmp.eq.f32.partialorder %v2645, %v2762
          %vm3428 = vcmp.eq.f32.partialorder %v1529, %v2763
          %vm3429 = vcmp.eq.f32.partialorder %v2649, %v2764
          %vm3430 = vcmp.eq.f32.partialorder %v1533, %v2765
          %vm3431 = vcmp.eq.f32.partialorder %v2653, %v2766
          %vm3432 = vmxor %vm3360, 1
          %vm3433 = vmxor %vm3361, 1
          %vm3434 = vmxor %vm3362, 1
          %vm3435 = vmxor %vm3363, 1
          %vm3436 = vmxor %vm3364, 1
          %vm3437 = vmxor %vm3365, 1
          %vm3438 = vmxor %vm3366, 1
          %vm3439 = vmxor %vm3367, 1
          %vm3440 = vmand %vm3424, %vm3432
          %vm3441 = vmand %vm3425, %vm3433
          %vm3442 = vmand %vm3426, %vm3434
          %vm3443 = vmand %vm3427, %vm3435
          %vm3444 = vmand %vm3428, %vm3436
          %vm3445 = vmand %vm3429, %vm3437
          %vm3446 = vmand %vm3430, %vm3438
          %vm3447 = vmand %vm3431, %vm3439
          %vm3448 = vmand %vm3416, %vm2774
          %vm3449 = vmand %vm3417, %vm2775
          %vm3450 = vmand %vm3418, %vm2774
          %vm3451 = vmand %vm3419, %vm2775
          %vm3452 = vmand %vm3420, %vm2774
          %vm3453 = vmand %vm3421, %vm2775
          %vm3454 = vmand %vm3422, %vm2774
          %vm3455 = vmand %vm3423, %vm2775
          %v3456 = vsel %vm3448, %v1521, 0.0
          %v3457 = vsel %vm3449, %v2641, 0.0
          %v3458 = vsel %vm3450, %v1525, 0.0
          %v3459 = vsel %vm3451, %v2645, 0.0
          %v3460 = vsel %vm3452, %v1529, 0.0
          %v3461 = vsel %vm3453, %v2649, 0.0
          %v3462 = vsel %vm3454, %v1533, 0.0
          %v3463 = vsel %vm3455, %v2653, 0.0
          %vm3464 = vmand %vm3440, %vm2774
          %vm3465 = vmand %vm3441, %vm2775
          %vm3466 = vmand %vm3442, %vm2774
          %vm3467 = vmand %vm3443, %vm2775
          %vm3468 = vmand %vm3444, %vm2774
          %vm3469 = vmand %vm3445, %vm2775
          %vm3470 = vmand %vm3446, %vm2774
          %vm3471 = vmand %vm3447, %vm2775
          %v3472 = vsel %vm3464, 1.0, 0.0
          %v3473 = vsel %vm3465, 1.0, 0.0
          %v3474 = vsel %vm3466, 1.0, 0.0
          %v3475 = vsel %vm3467, 1.0, 0.0
          %v3476 = vsel %vm3468, 1.0, 0.0
          %v3477 = vsel %vm3469, 1.0, 0.0
          %v3478 = vsel %vm3470, 1.0, 0.0
          %v3479 = vsel %vm3471, 1.0, 0.0
          %v3480 = vadd.f32 %v2800, %v2801
          %3481 = vadd.xlane.f32.xlu0 %v3480
          %v3482 = vpop.xlane.xlu0 %3481
          %v3483 = vadd.f32 %v2802, %v2803
          %3484 = vadd.xlane.f32.xlu0 %v3483
          %v3485 = vpop.xlane.xlu0 %3484
          %v3486 = vadd.f32 %v2804, %v2805
          %3487 = vadd.xlane.f32.xlu0 %v3486
          %v3488 = vpop.xlane.xlu0 %3487
          %v3489 = vadd.f32 %v2806, %v2807
          %3490 = vadd.xlane.f32.xlu0 %v3489
          %v3491 = vpop.xlane.xlu0 %3490
          %v3492 = vadd.f32 %v2896, %v2897
          %3493 = vadd.xlane.f32.xlu0 %v3492
          %v3494 = vpop.xlane.xlu0 %3493
          %v3495 = vadd.f32 %v2898, %v2899
          %3496 = vadd.xlane.f32.xlu0 %v3495
          %v3497 = vpop.xlane.xlu0 %3496
          %v3498 = vadd.f32 %v2900, %v2901
          %3499 = vadd.xlane.f32.xlu0 %v3498
          %v3500 = vpop.xlane.xlu0 %3499
          %v3501 = vadd.f32 %v2902, %v2903
          %3502 = vadd.xlane.f32.xlu0 %v3501
          %v3503 = vpop.xlane.xlu0 %3502
          %v3504 = vadd.f32 %v2992, %v2993
          %3505 = vadd.xlane.f32.xlu0 %v3504
          %v3506 = vpop.xlane.xlu0 %3505
          %v3507 = vadd.f32 %v2994, %v2995
          %3508 = vadd.xlane.f32.xlu0 %v3507
          %v3509 = vpop.xlane.xlu0 %3508
          %v3510 = vadd.f32 %v2996, %v2997
          %3511 = vadd.xlane.f32.xlu0 %v3510
          %v3512 = vpop.xlane.xlu0 %3511
          %v3513 = vadd.f32 %v2998, %v2999
          %3514 = vadd.xlane.f32.xlu0 %v3513
          %v3515 = vpop.xlane.xlu0 %3514
          %v3516 = vadd.f32 %v3088, %v3089
          %3517 = vadd.xlane.f32.xlu0 %v3516
          %v3518 = vpop.xlane.xlu0 %3517
          %v3519 = vadd.f32 %v3090, %v3091
          %3520 = vadd.xlane.f32.xlu0 %v3519
          %v3521 = vpop.xlane.xlu0 %3520
          %v3522 = vadd.f32 %v3092, %v3093
          %3523 = vadd.xlane.f32.xlu0 %v3522
          %v3524 = vpop.xlane.xlu0 %3523
          %v3525 = vadd.f32 %v3094, %v3095
          %3526 = vadd.xlane.f32.xlu0 %v3525
          %v3527 = vpop.xlane.xlu0 %3526
          %v3528 = vadd.f32 %v3184, %v3185
          %3529 = vadd.xlane.f32.xlu0 %v3528
          %v3530 = vpop.xlane.xlu0 %3529
          %v3531 = vadd.f32 %v3186, %v3187
          %3532 = vadd.xlane.f32.xlu0 %v3531
          %v3533 = vpop.xlane.xlu0 %3532
          %v3534 = vadd.f32 %v3188, %v3189
          %3535 = vadd.xlane.f32.xlu0 %v3534
          %v3536 = vpop.xlane.xlu0 %3535
          %v3537 = vadd.f32 %v3190, %v3191
          %3538 = vadd.xlane.f32.xlu0 %v3537
          %v3539 = vpop.xlane.xlu0 %3538
          %v3540 = vadd.f32 %v3280, %v3281
          %3541 = vadd.xlane.f32.xlu0 %v3540
          %v3542 = vpop.xlane.xlu0 %3541
          %v3543 = vadd.f32 %v3282, %v3283
          %3544 = vadd.xlane.f32.xlu0 %v3543
          %v3545 = vpop.xlane.xlu0 %3544
          %v3546 = vadd.f32 %v3284, %v3285
          %3547 = vadd.xlane.f32.xlu0 %v3546
          %v3548 = vpop.xlane.xlu0 %3547
          %v3549 = vadd.f32 %v3286, %v3287
          %3550 = vadd.xlane.f32.xlu0 %v3549
          %v3551 = vpop.xlane.xlu0 %3550
          %v3552 = vadd.f32 %v3376, %v3377
          %3553 = vadd.xlane.f32.xlu0 %v3552
          %v3554 = vpop.xlane.xlu0 %3553
          %v3555 = vadd.f32 %v3378, %v3379
          %3556 = vadd.xlane.f32.xlu0 %v3555
          %v3557 = vpop.xlane.xlu0 %3556
          %v3558 = vadd.f32 %v3380, %v3381
          %3559 = vadd.xlane.f32.xlu0 %v3558
          %v3560 = vpop.xlane.xlu0 %3559
          %v3561 = vadd.f32 %v3382, %v3383
          %3562 = vadd.xlane.f32.xlu0 %v3561
          %v3563 = vpop.xlane.xlu0 %3562
          %v3564 = vadd.f32 %v3456, %v3457
          %3565 = vadd.xlane.f32.xlu0 %v3564
          %v3566 = vpop.xlane.xlu0 %3565
          %v3567 = vadd.f32 %v3458, %v3459
          %3568 = vadd.xlane.f32.xlu0 %v3567
          %v3569 = vpop.xlane.xlu0 %3568
          %v3570 = vadd.f32 %v3460, %v3461
          %3571 = vadd.xlane.f32.xlu0 %v3570
          %v3572 = vpop.xlane.xlu0 %3571
          %v3573 = vadd.f32 %v3462, %v3463
          %3574 = vadd.xlane.f32.xlu0 %v3573
          %v3575 = vpop.xlane.xlu0 %3574
          %v3576 = vadd.f32 %v2816, %v2817
          %3577 = vadd.xlane.f32.xlu0 %v3576
          %v3578 = vpop.xlane.xlu0 %3577
          %v3579 = vadd.f32 %v2818, %v2819
          %3580 = vadd.xlane.f32.xlu0 %v3579
          %v3581 = vpop.xlane.xlu0 %3580
          %v3582 = vadd.f32 %v2820, %v2821
          %3583 = vadd.xlane.f32.xlu0 %v3582
          %v3584 = vpop.xlane.xlu0 %3583
          %v3585 = vadd.f32 %v2822, %v2823
          %3586 = vadd.xlane.f32.xlu0 %v3585
          %v3587 = vpop.xlane.xlu0 %3586
          %v3588 = vadd.f32 %v2912, %v2913
          %3589 = vadd.xlane.f32.xlu0 %v3588
          %v3590 = vpop.xlane.xlu0 %3589
          %v3591 = vadd.f32 %v2914, %v2915
          %3592 = vadd.xlane.f32.xlu0 %v3591
          %v3593 = vpop.xlane.xlu0 %3592
          %v3594 = vadd.f32 %v2916, %v2917
          %3595 = vadd.xlane.f32.xlu0 %v3594
          %v3596 = vpop.xlane.xlu0 %3595
          %v3597 = vadd.f32 %v2918, %v2919
          %3598 = vadd.xlane.f32.xlu0 %v3597
          %v3599 = vpop.xlane.xlu0 %3598
          %v3600 = vadd.f32 %v3008, %v3009
          %3601 = vadd.xlane.f32.xlu0 %v3600
          %v3602 = vpop.xlane.xlu0 %3601
          %v3603 = vadd.f32 %v3010, %v3011
          %3604 = vadd.xlane.f32.xlu0 %v3603
          %v3605 = vpop.xlane.xlu0 %3604
          %v3606 = vadd.f32 %v3012, %v3013
          %3607 = vadd.xlane.f32.xlu0 %v3606
          %v3608 = vpop.xlane.xlu0 %3607
          %v3609 = vadd.f32 %v3014, %v3015
          %3610 = vadd.xlane.f32.xlu0 %v3609
          %v3611 = vpop.xlane.xlu0 %3610
          %v3612 = vadd.f32 %v3104, %v3105
          %3613 = vadd.xlane.f32.xlu0 %v3612
          %v3614 = vpop.xlane.xlu0 %3613
          %v3615 = vadd.f32 %v3106, %v3107
          %3616 = vadd.xlane.f32.xlu0 %v3615
          %v3617 = vpop.xlane.xlu0 %3616
          %v3618 = vadd.f32 %v3108, %v3109
          %3619 = vadd.xlane.f32.xlu0 %v3618
          %v3620 = vpop.xlane.xlu0 %3619
          %v3621 = vadd.f32 %v3110, %v3111
          %3622 = vadd.xlane.f32.xlu0 %v3621
          %v3623 = vpop.xlane.xlu0 %3622
          %v3624 = vadd.f32 %v3200, %v3201
          %3625 = vadd.xlane.f32.xlu0 %v3624
          %v3626 = vpop.xlane.xlu0 %3625
          %v3627 = vadd.f32 %v3202, %v3203
          %3628 = vadd.xlane.f32.xlu0 %v3627
          %v3629 = vpop.xlane.xlu0 %3628
          %v3630 = vadd.f32 %v3204, %v3205
          %3631 = vadd.xlane.f32.xlu0 %v3630
          %v3632 = vpop.xlane.xlu0 %3631
          %v3633 = vadd.f32 %v3206, %v3207
          %3634 = vadd.xlane.f32.xlu0 %v3633
          %v3635 = vpop.xlane.xlu0 %3634
          %v3636 = vadd.f32 %v3296, %v3297
          %3637 = vadd.xlane.f32.xlu0 %v3636
          %v3638 = vpop.xlane.xlu0 %3637
          %v3639 = vadd.f32 %v3298, %v3299
          %3640 = vadd.xlane.f32.xlu0 %v3639
          %v3641 = vpop.xlane.xlu0 %3640
          %v3642 = vadd.f32 %v3300, %v3301
          %3643 = vadd.xlane.f32.xlu0 %v3642
          %v3644 = vpop.xlane.xlu0 %3643
          %v3645 = vadd.f32 %v3302, %v3303
          %3646 = vadd.xlane.f32.xlu0 %v3645
          %v3647 = vpop.xlane.xlu0 %3646
          %v3648 = vadd.f32 %v3392, %v3393
          %3649 = vadd.xlane.f32.xlu0 %v3648
          %v3650 = vpop.xlane.xlu0 %3649
          %v3651 = vadd.f32 %v3394, %v3395
          %3652 = vadd.xlane.f32.xlu0 %v3651
          %v3653 = vpop.xlane.xlu0 %3652
          %v3654 = vadd.f32 %v3396, %v3397
          %3655 = vadd.xlane.f32.xlu0 %v3654
          %v3656 = vpop.xlane.xlu0 %3655
          %v3657 = vadd.f32 %v3398, %v3399
          %3658 = vadd.xlane.f32.xlu0 %v3657
          %v3659 = vpop.xlane.xlu0 %3658
          %v3660 = vadd.f32 %v3472, %v3473
          %3661 = vadd.xlane.f32.xlu0 %v3660
          %v3662 = vpop.xlane.xlu0 %3661
          %v3663 = vadd.f32 %v3474, %v3475
          %3664 = vadd.xlane.f32.xlu0 %v3663
          %v3665 = vpop.xlane.xlu0 %3664
          %v3666 = vadd.f32 %v3476, %v3477
          %3667 = vadd.xlane.f32.xlu0 %v3666
          %v3668 = vpop.xlane.xlu0 %3667
          %v3669 = vadd.f32 %v3478, %v3479
          %3670 = vadd.xlane.f32.xlu0 %v3669
          %v3671 = vpop.xlane.xlu0 %3670
          %v3672 = vadd.f32 %v238, %v3482
          %v3673 = vadd.f32 %v239, %v3485
          %v3674 = vadd.f32 %v240, %v3488
          %v3675 = vadd.f32 %v241, %v3491
          %v3676 = vadd.f32 %v242, %v3494
          %v3677 = vadd.f32 %v243, %v3497
          %v3678 = vadd.f32 %v244, %v3500
          %v3679 = vadd.f32 %v245, %v3503
          %v3680 = vadd.f32 %v246, %v3506
          %v3681 = vadd.f32 %v247, %v3509
          %v3682 = vadd.f32 %v248, %v3512
          %v3683 = vadd.f32 %v249, %v3515
          %v3684 = vadd.f32 %v250, %v3518
          %v3685 = vadd.f32 %v251, %v3521
          %v3686 = vadd.f32 %v252, %v3524
          %v3687 = vadd.f32 %v253, %v3527
          %v3688 = vadd.f32 %v254, %v3530
          %v3689 = vadd.f32 %v255, %v3533
          %v3690 = vadd.f32 %v256, %v3536
          %v3691 = vadd.f32 %v257, %v3539
          %v3692 = vadd.f32 %v258, %v3542
          %v3693 = vadd.f32 %v259, %v3545
          %v3694 = vadd.f32 %v260, %v3548
          %v3695 = vadd.f32 %v261, %v3551
          %v3696 = vadd.f32 %v262, %v3554
          %v3697 = vadd.f32 %v263, %v3557
          %v3698 = vadd.f32 %v264, %v3560
          %v3699 = vadd.f32 %v265, %v3563
          %v3700 = vadd.f32 %v266, %v3566
          %v3701 = vadd.f32 %v267, %v3569
          %v3702 = vadd.f32 %v268, %v3572
          %v3703 = vadd.f32 %v269, %v3575
          %v3704 = vadd.f32 %v270, %v3578
          %v3705 = vadd.f32 %v271, %v3581
          %v3706 = vadd.f32 %v272, %v3584
          %v3707 = vadd.f32 %v273, %v3587
          %v3708 = vadd.f32 %v274, %v3590
          %v3709 = vadd.f32 %v275, %v3593
          %v3710 = vadd.f32 %v276, %v3596
          %v3711 = vadd.f32 %v277, %v3599
          %v3712 = vadd.f32 %v278, %v3602
          %v3713 = vadd.f32 %v279, %v3605
          %v3714 = vadd.f32 %v280, %v3608
          %v3715 = vadd.f32 %v281, %v3611
          %v3716 = vadd.f32 %v282, %v3614
          %v3717 = vadd.f32 %v283, %v3617
          %v3718 = vadd.f32 %v284, %v3620
          %v3719 = vadd.f32 %v285, %v3623
          %v3720 = vadd.f32 %v286, %v3626
          %v3721 = vadd.f32 %v287, %v3629
          %v3722 = vadd.f32 %v288, %v3632
          %v3723 = vadd.f32 %v289, %v3635
          %v3724 = vadd.f32 %v290, %v3638
          %v3725 = vadd.f32 %v291, %v3641
          %v3726 = vadd.f32 %v292, %v3644
          %v3727 = vadd.f32 %v293, %v3647
          %v3728 = vadd.f32 %v294, %v3650
          %v3729 = vadd.f32 %v295, %v3653
          %v3730 = vadd.f32 %v296, %v3656
          %v3731 = vadd.f32 %v297, %v3659
          %v3732 = vadd.f32 %v298, %v3662
          %v3733 = vadd.f32 %v299, %v3665
          %v3734 = vadd.f32 %v300, %v3668
          %v3735 = vadd.f32 %v301, %v3671
        $region33: #{tpu_custom_call.1} parent=27 // loop_footer
          %s237 = sadd.s32 1, %s233
        $region34: #{tpu_custom_call.1} parent=27 // loop_footer_branch
          %232 = sbr.rel target = $region30
        $region35: #{tpu_custom_call.1} parent=27 // loop_exit
          _
        %v3768 = vperm.slane %v238, 0
        %v3769 = vperm.slane %v238, 1
        %v3770 = vperm.slane %v238, 2
        %v3771 = vperm.slane %v238, 3
        %v3772 = vperm.slane %v238, 4
        %v3773 = vperm.slane %v238, 5
        %v3774 = vperm.slane %v238, 6
        %v3775 = vperm.slane %v238, 7
        %v3776 = vperm.slane %v239, 0
        %v3777 = vperm.slane %v239, 1
        %v3778 = vperm.slane %v239, 2
        %v3779 = vperm.slane %v239, 3
        %v3780 = vperm.slane %v239, 4
        %v3781 = vperm.slane %v239, 5
        %v3782 = vperm.slane %v239, 6
        %v3783 = vperm.slane %v239, 7
        %v3784 = vperm.slane %v240, 0
        %v3785 = vperm.slane %v240, 1
        %v3786 = vperm.slane %v240, 2
        %v3787 = vperm.slane %v240, 3
        %v3788 = vperm.slane %v240, 4
        %v3789 = vperm.slane %v240, 5
        %v3790 = vperm.slane %v240, 6
        %v3791 = vperm.slane %v240, 7
        %v3792 = vperm.slane %v241, 0
        %v3793 = vperm.slane %v241, 1
        %v3794 = vperm.slane %v241, 2
        %v3795 = vperm.slane %v241, 3
        %v3796 = vperm.slane %v241, 4
        %v3797 = vperm.slane %v241, 5
        %v3798 = vperm.slane %v241, 6
        %v3799 = vperm.slane %v241, 7
        %v3800 = vperm.slane %v242, 0
        %v3801 = vperm.slane %v242, 1
        %v3802 = vperm.slane %v242, 2
        %v3803 = vperm.slane %v242, 3
        %v3804 = vperm.slane %v242, 4
        %v3805 = vperm.slane %v242, 5
        %v3806 = vperm.slane %v242, 6
        %v3807 = vperm.slane %v242, 7
        %v3808 = vperm.slane %v243, 0
        %v3809 = vperm.slane %v243, 1
        %v3810 = vperm.slane %v243, 2
        %v3811 = vperm.slane %v243, 3
        %v3812 = vperm.slane %v243, 4
        %v3813 = vperm.slane %v243, 5
        %v3814 = vperm.slane %v243, 6
        %v3815 = vperm.slane %v243, 7
        %v3816 = vperm.slane %v244, 0
        %v3817 = vperm.slane %v244, 1
        %v3818 = vperm.slane %v244, 2
        %v3819 = vperm.slane %v244, 3
        %v3820 = vperm.slane %v244, 4
        %v3821 = vperm.slane %v244, 5
        %v3822 = vperm.slane %v244, 6
        %v3823 = vperm.slane %v244, 7
        %v3824 = vperm.slane %v245, 0
        %v3825 = vperm.slane %v245, 1
        %v3826 = vperm.slane %v245, 2
        %v3827 = vperm.slane %v245, 3
        %v3828 = vperm.slane %v245, 4
        %v3829 = vperm.slane %v245, 5
        %v3830 = vperm.slane %v245, 6
        %v3831 = vperm.slane %v245, 7
        %v3832 = vperm.slane %v246, 0
        %v3833 = vperm.slane %v246, 1
        %v3834 = vperm.slane %v246, 2
        %v3835 = vperm.slane %v246, 3
        %v3836 = vperm.slane %v246, 4
        %v3837 = vperm.slane %v246, 5
        %v3838 = vperm.slane %v246, 6
        %v3839 = vperm.slane %v246, 7
        %v3840 = vperm.slane %v247, 0
        %v3841 = vperm.slane %v247, 1
        %v3842 = vperm.slane %v247, 2
        %v3843 = vperm.slane %v247, 3
        %v3844 = vperm.slane %v247, 4
        %v3845 = vperm.slane %v247, 5
        %v3846 = vperm.slane %v247, 6
        %v3847 = vperm.slane %v247, 7
        %v3848 = vperm.slane %v248, 0
        %v3849 = vperm.slane %v248, 1
        %v3850 = vperm.slane %v248, 2
        %v3851 = vperm.slane %v248, 3
        %v3852 = vperm.slane %v248, 4
        %v3853 = vperm.slane %v248, 5
        %v3854 = vperm.slane %v248, 6
        %v3855 = vperm.slane %v248, 7
        %v3856 = vperm.slane %v249, 0
        %v3857 = vperm.slane %v249, 1
        %v3858 = vperm.slane %v249, 2
        %v3859 = vperm.slane %v249, 3
        %v3860 = vperm.slane %v249, 4
        %v3861 = vperm.slane %v249, 5
        %v3862 = vperm.slane %v249, 6
        %v3863 = vperm.slane %v249, 7
        %v3864 = vperm.slane %v250, 0
        %v3865 = vperm.slane %v250, 1
        %v3866 = vperm.slane %v250, 2
        %v3867 = vperm.slane %v250, 3
        %v3868 = vperm.slane %v250, 4
        %v3869 = vperm.slane %v250, 5
        %v3870 = vperm.slane %v250, 6
        %v3871 = vperm.slane %v250, 7
        %v3872 = vperm.slane %v251, 0
        %v3873 = vperm.slane %v251, 1
        %v3874 = vperm.slane %v251, 2
        %v3875 = vperm.slane %v251, 3
        %v3876 = vperm.slane %v251, 4
        %v3877 = vperm.slane %v251, 5
        %v3878 = vperm.slane %v251, 6
        %v3879 = vperm.slane %v251, 7
        %v3880 = vperm.slane %v252, 0
        %v3881 = vperm.slane %v252, 1
        %v3882 = vperm.slane %v252, 2
        %v3883 = vperm.slane %v252, 3
        %v3884 = vperm.slane %v252, 4
        %v3885 = vperm.slane %v252, 5
        %v3886 = vperm.slane %v252, 6
        %v3887 = vperm.slane %v252, 7
        %v3888 = vperm.slane %v253, 0
        %v3889 = vperm.slane %v253, 1
        %v3890 = vperm.slane %v253, 2
        %v3891 = vperm.slane %v253, 3
        %v3892 = vperm.slane %v253, 4
        %v3893 = vperm.slane %v253, 5
        %v3894 = vperm.slane %v253, 6
        %v3895 = vperm.slane %v253, 7
        %v3896 = vperm.slane %v254, 0
        %v3897 = vperm.slane %v254, 1
        %v3898 = vperm.slane %v254, 2
        %v3899 = vperm.slane %v254, 3
        %v3900 = vperm.slane %v254, 4
        %v3901 = vperm.slane %v254, 5
        %v3902 = vperm.slane %v254, 6
        %v3903 = vperm.slane %v254, 7
        %v3904 = vperm.slane %v255, 0
        %v3905 = vperm.slane %v255, 1
        %v3906 = vperm.slane %v255, 2
        %v3907 = vperm.slane %v255, 3
        %v3908 = vperm.slane %v255, 4
        %v3909 = vperm.slane %v255, 5
        %v3910 = vperm.slane %v255, 6
        %v3911 = vperm.slane %v255, 7
        %v3912 = vperm.slane %v256, 0
        %v3913 = vperm.slane %v256, 1
        %v3914 = vperm.slane %v256, 2
        %v3915 = vperm.slane %v256, 3
        %v3916 = vperm.slane %v256, 4
        %v3917 = vperm.slane %v256, 5
        %v3918 = vperm.slane %v256, 6
        %v3919 = vperm.slane %v256, 7
        %v3920 = vperm.slane %v257, 0
        %v3921 = vperm.slane %v257, 1
        %v3922 = vperm.slane %v257, 2
        %v3923 = vperm.slane %v257, 3
        %v3924 = vperm.slane %v257, 4
        %v3925 = vperm.slane %v257, 5
        %v3926 = vperm.slane %v257, 6
        %v3927 = vperm.slane %v257, 7
        %v3928 = vperm.slane %v258, 0
        %v3929 = vperm.slane %v258, 1
        %v3930 = vperm.slane %v258, 2
        %v3931 = vperm.slane %v258, 3
        %v3932 = vperm.slane %v258, 4
        %v3933 = vperm.slane %v258, 5
        %v3934 = vperm.slane %v258, 6
        %v3935 = vperm.slane %v258, 7
        %v3936 = vperm.slane %v259, 0
        %v3937 = vperm.slane %v259, 1
        %v3938 = vperm.slane %v259, 2
        %v3939 = vperm.slane %v259, 3
        %v3940 = vperm.slane %v259, 4
        %v3941 = vperm.slane %v259, 5
        %v3942 = vperm.slane %v259, 6
        %v3943 = vperm.slane %v259, 7
        %v3944 = vperm.slane %v260, 0
        %v3945 = vperm.slane %v260, 1
        %v3946 = vperm.slane %v260, 2
        %v3947 = vperm.slane %v260, 3
        %v3948 = vperm.slane %v260, 4
        %v3949 = vperm.slane %v260, 5
        %v3950 = vperm.slane %v260, 6
        %v3951 = vperm.slane %v260, 7
        %v3952 = vperm.slane %v261, 0
        %v3953 = vperm.slane %v261, 1
        %v3954 = vperm.slane %v261, 2
        %v3955 = vperm.slane %v261, 3
        %v3956 = vperm.slane %v261, 4
        %v3957 = vperm.slane %v261, 5
        %v3958 = vperm.slane %v261, 6
        %v3959 = vperm.slane %v261, 7
        %v3960 = vperm.slane %v262, 0
        %v3961 = vperm.slane %v262, 1
        %v3962 = vperm.slane %v262, 2
        %v3963 = vperm.slane %v262, 3
        %v3964 = vperm.slane %v262, 4
        %v3965 = vperm.slane %v262, 5
        %v3966 = vperm.slane %v262, 6
        %v3967 = vperm.slane %v262, 7
        %v3968 = vperm.slane %v263, 0
        %v3969 = vperm.slane %v263, 1
        %v3970 = vperm.slane %v263, 2
        %v3971 = vperm.slane %v263, 3
        %v3972 = vperm.slane %v263, 4
        %v3973 = vperm.slane %v263, 5
        %v3974 = vperm.slane %v263, 6
        %v3975 = vperm.slane %v263, 7
        %v3976 = vperm.slane %v264, 0
        %v3977 = vperm.slane %v264, 1
        %v3978 = vperm.slane %v264, 2
        %v3979 = vperm.slane %v264, 3
        %v3980 = vperm.slane %v264, 4
        %v3981 = vperm.slane %v264, 5
        %v3982 = vperm.slane %v264, 6
        %v3983 = vperm.slane %v264, 7
        %v3984 = vperm.slane %v265, 0
        %v3985 = vperm.slane %v265, 1
        %v3986 = vperm.slane %v265, 2
        %v3987 = vperm.slane %v265, 3
        %v3988 = vperm.slane %v265, 4
        %v3989 = vperm.slane %v265, 5
        %v3990 = vperm.slane %v265, 6
        %v3991 = vperm.slane %v265, 7
        %v3992 = vperm.slane %v266, 0
        %v3993 = vperm.slane %v266, 1
        %v3994 = vperm.slane %v266, 2
        %v3995 = vperm.slane %v266, 3
        %v3996 = vperm.slane %v266, 4
        %v3997 = vperm.slane %v266, 5
        %v3998 = vperm.slane %v266, 6
        %v3999 = vperm.slane %v266, 7
        %v4000 = vperm.slane %v267, 0
        %v4001 = vperm.slane %v267, 1
        %v4002 = vperm.slane %v267, 2
        %v4003 = vperm.slane %v267, 3
        %v4004 = vperm.slane %v267, 4
        %v4005 = vperm.slane %v267, 5
        %v4006 = vperm.slane %v267, 6
        %v4007 = vperm.slane %v267, 7
        %v4008 = vperm.slane %v268, 0
        %v4009 = vperm.slane %v268, 1
        %v4010 = vperm.slane %v268, 2
        %v4011 = vperm.slane %v268, 3
        %v4012 = vperm.slane %v268, 4
        %v4013 = vperm.slane %v268, 5
        %v4014 = vperm.slane %v268, 6
        %v4015 = vperm.slane %v268, 7
        %v4016 = vperm.slane %v269, 0
        %v4017 = vperm.slane %v269, 1
        %v4018 = vperm.slane %v269, 2
        %v4019 = vperm.slane %v269, 3
        %v4020 = vperm.slane %v269, 4
        %v4021 = vperm.slane %v269, 5
        %v4022 = vperm.slane %v269, 6
        %v4023 = vperm.slane %v269, 7
        %4024 = vst [vmem:[#allocation1] ss:$9 sm:$0xff] %v3768
        %s4025 = scalar_lea.vmem [#allocation1], 1
        %4026 = vst [vmem:[%s4025] ss:$9 sm:$0xff] %v3769
        %s4027 = scalar_lea.vmem [#allocation1], 2
        %4028 = vst [vmem:[%s4027] ss:$9 sm:$0xff] %v3770
        %s4029 = scalar_lea.vmem [#allocation1], 3
        %4030 = vst [vmem:[%s4029] ss:$9 sm:$0xff] %v3771
        %s4031 = scalar_lea.vmem [#allocation1], 4
        %4032 = vst [vmem:[%s4031] ss:$9 sm:$0xff] %v3772
        %s4033 = scalar_lea.vmem [#allocation1], 5
        %4034 = vst [vmem:[%s4033] ss:$9 sm:$0xff] %v3773
        %s4035 = scalar_lea.vmem [#allocation1], 6
        %4036 = vst [vmem:[%s4035] ss:$9 sm:$0xff] %v3774
        %s4037 = scalar_lea.vmem [#allocation1], 7
        %4038 = vst [vmem:[%s4037] ss:$9 sm:$0xff] %v3775
        %v4039 = vld [vmem:[#allocation1] sm:$0xff]
        %4040 = vst [vmem:[#allocation1] ss:$9 sm:$0xff] %v3776
        %4041 = vst [vmem:[%s4025] ss:$9 sm:$0xff] %v3777
        %4042 = vst [vmem:[%s4027] ss:$9 sm:$0xff] %v3778
        %4043 = vst [vmem:[%s4029] ss:$9 sm:$0xff] %v3779
        %4044 = vst [vmem:[%s4031] ss:$9 sm:$0xff] %v3780
        %4045 = vst [vmem:[%s4033] ss:$9 sm:$0xff] %v3781
        %4046 = vst [vmem:[%s4035] ss:$9 sm:$0xff] %v3782
        %4047 = vst [vmem:[%s4037] ss:$9 sm:$0xff] %v3783
        %v4048 = vld [vmem:[#allocation1] sm:$0xff]
        %4049 = vst [vmem:[#allocation1] ss:$9 sm:$0xff] %v3784
        %4050 = vst [vmem:[%s4025] ss:$9 sm:$0xff] %v3785
        %4051 = vst [vmem:[%s4027] ss:$9 sm:$0xff] %v3786
        %4052 = vst [vmem:[%s4029] ss:$9 sm:$0xff] %v3787
        %4053 = vst [vmem:[%s4031] ss:$9 sm:$0xff] %v3788
        %4054 = vst [vmem:[%s4033] ss:$9 sm:$0xff] %v3789
        %4055 = vst [vmem:[%s4035] ss:$9 sm:$0xff] %v3790
        %4056 = vst [vmem:[%s4037] ss:$9 sm:$0xff] %v3791
        %v4057 = vld [vmem:[#allocation1] sm:$0xff]
        %4058 = vst [vmem:[#allocation1] ss:$9 sm:$0xff] %v3792
        %4059 = vst [vmem:[%s4025] ss:$9 sm:$0xff] %v3793
        %4060 = vst [vmem:[%s4027] ss:$9 sm:$0xff] %v3794
        %4061 = vst [vmem:[%s4029] ss:$9 sm:$0xff] %v3795
        %4062 = vst [vmem:[%s4031] ss:$9 sm:$0xff] %v3796
        %4063 = vst [vmem:[%s4033] ss:$9 sm:$0xff] %v3797
        %4064 = vst [vmem:[%s4035] ss:$9 sm:$0xff] %v3798
        %4065 = vst [vmem:[%s4037] ss:$9 sm:$0xff] %v3799
        %v4066 = vld [vmem:[#allocation1] sm:$0xff]
        %4067 = vst [vmem:[#allocation1] ss:$9 sm:$0xff] %v3800
        %4068 = vst [vmem:[%s4025] ss:$9 sm:$0xff] %v3801
        %4069 = vst [vmem:[%s4027] ss:$9 sm:$0xff] %v3802
        %4070 = vst [vmem:[%s4029] ss:$9 sm:$0xff] %v3803
        %4071 = vst [vmem:[%s4031] ss:$9 sm:$0xff] %v3804
        %4072 = vst [vmem:[%s4033] ss:$9 sm:$0xff] %v3805
        %4073 = vst [vmem:[%s4035] ss:$9 sm:$0xff] %v3806
        %4074 = vst [vmem:[%s4037] ss:$9 sm:$0xff] %v3807
        %v4075 = vld [vmem:[#allocation1] sm:$0xff]
        %4076 = vst [vmem:[#allocation1] ss:$9 sm:$0xff] %v3808
        %4077 = vst [vmem:[%s4025] ss:$9 sm:$0xff] %v3809
        %4078 = vst [vmem:[%s4027] ss:$9 sm:$0xff] %v3810
        %4079 = vst [vmem:[%s4029] ss:$9 sm:$0xff] %v3811
        %4080 = vst [vmem:[%s4031] ss:$9 sm:$0xff] %v3812
        %4081 = vst [vmem:[%s4033] ss:$9 sm:$0xff] %v3813
        %4082 = vst [vmem:[%s4035] ss:$9 sm:$0xff] %v3814
        %4083 = vst [vmem:[%s4037] ss:$9 sm:$0xff] %v3815
        %v4084 = vld [vmem:[#allocation1] sm:$0xff]
        %4085 = vst [vmem:[#allocation1] ss:$9 sm:$0xff] %v3816
        %4086 = vst [vmem:[%s4025] ss:$9 sm:$0xff] %v3817
        %4087 = vst [vmem:[%s4027] ss:$9 sm:$0xff] %v3818
        %4088 = vst [vmem:[%s4029] ss:$9 sm:$0xff] %v3819
        %4089 = vst [vmem:[%s4031] ss:$9 sm:$0xff] %v3820
        %4090 = vst [vmem:[%s4033] ss:$9 sm:$0xff] %v3821
        %4091 = vst [vmem:[%s4035] ss:$9 sm:$0xff] %v3822
        %4092 = vst [vmem:[%s4037] ss:$9 sm:$0xff] %v3823
        %v4093 = vld [vmem:[#allocation1] sm:$0xff]
        %4094 = vst [vmem:[#allocation1] ss:$9 sm:$0xff] %v3824
        %4095 = vst [vmem:[%s4025] ss:$9 sm:$0xff] %v3825
        %4096 = vst [vmem:[%s4027] ss:$9 sm:$0xff] %v3826
        %4097 = vst [vmem:[%s4029] ss:$9 sm:$0xff] %v3827
        %4098 = vst [vmem:[%s4031] ss:$9 sm:$0xff] %v3828
        %4099 = vst [vmem:[%s4033] ss:$9 sm:$0xff] %v3829
        %4100 = vst [vmem:[%s4035] ss:$9 sm:$0xff] %v3830
        %4101 = vst [vmem:[%s4037] ss:$9 sm:$0xff] %v3831
        %v4102 = vld [vmem:[#allocation1] sm:$0xff]
        %4103 = vst [vmem:[#allocation1] ss:$9 sm:$0xff] %v3832
        %4104 = vst [vmem:[%s4025] ss:$9 sm:$0xff] %v3833
        %4105 = vst [vmem:[%s4027] ss:$9 sm:$0xff] %v3834
        %4106 = vst [vmem:[%s4029] ss:$9 sm:$0xff] %v3835
        %4107 = vst [vmem:[%s4031] ss:$9 sm:$0xff] %v3836
        %4108 = vst [vmem:[%s4033] ss:$9 sm:$0xff] %v3837
        %4109 = vst [vmem:[%s4035] ss:$9 sm:$0xff] %v3838
        %4110 = vst [vmem:[%s4037] ss:$9 sm:$0xff] %v3839
        %v4111 = vld [vmem:[#allocation1] sm:$0xff]
        %4112 = vst [vmem:[#allocation1] ss:$9 sm:$0xff] %v3840
        %4113 = vst [vmem:[%s4025] ss:$9 sm:$0xff] %v3841
        %4114 = vst [vmem:[%s4027] ss:$9 sm:$0xff] %v3842
        %4115 = vst [vmem:[%s4029] ss:$9 sm:$0xff] %v3843
        %4116 = vst [vmem:[%s4031] ss:$9 sm:$0xff] %v3844
        %4117 = vst [vmem:[%s4033] ss:$9 sm:$0xff] %v3845
        %4118 = vst [vmem:[%s4035] ss:$9 sm:$0xff] %v3846
        %4119 = vst [vmem:[%s4037] ss:$9 sm:$0xff] %v3847
        %v4120 = vld [vmem:[#allocation1] sm:$0xff]
        %4121 = vst [vmem:[#allocation1] ss:$9 sm:$0xff] %v3848
        %4122 = vst [vmem:[%s4025] ss:$9 sm:$0xff] %v3849
        %4123 = vst [vmem:[%s4027] ss:$9 sm:$0xff] %v3850
        %4124 = vst [vmem:[%s4029] ss:$9 sm:$0xff] %v3851
        %4125 = vst [vmem:[%s4031] ss:$9 sm:$0xff] %v3852
        %4126 = vst [vmem:[%s4033] ss:$9 sm:$0xff] %v3853
        %4127 = vst [vmem:[%s4035] ss:$9 sm:$0xff] %v3854
        %4128 = vst [vmem:[%s4037] ss:$9 sm:$0xff] %v3855
        %v4129 = vld [vmem:[#allocation1] sm:$0xff]
        %4130 = vst [vmem:[#allocation1] ss:$9 sm:$0xff] %v3856
        %4131 = vst [vmem:[%s4025] ss:$9 sm:$0xff] %v3857
        %4132 = vst [vmem:[%s4027] ss:$9 sm:$0xff] %v3858
        %4133 = vst [vmem:[%s4029] ss:$9 sm:$0xff] %v3859
        %4134 = vst [vmem:[%s4031] ss:$9 sm:$0xff] %v3860
        %4135 = vst [vmem:[%s4033] ss:$9 sm:$0xff] %v3861
        %4136 = vst [vmem:[%s4035] ss:$9 sm:$0xff] %v3862
        %4137 = vst [vmem:[%s4037] ss:$9 sm:$0xff] %v3863
        %v4138 = vld [vmem:[#allocation1] sm:$0xff]
        %4139 = vst [vmem:[#allocation1] ss:$9 sm:$0xff] %v3864
        %4140 = vst [vmem:[%s4025] ss:$9 sm:$0xff] %v3865
        %4141 = vst [vmem:[%s4027] ss:$9 sm:$0xff] %v3866
        %4142 = vst [vmem:[%s4029] ss:$9 sm:$0xff] %v3867
        %4143 = vst [vmem:[%s4031] ss:$9 sm:$0xff] %v3868
        %4144 = vst [vmem:[%s4033] ss:$9 sm:$0xff] %v3869
        %4145 = vst [vmem:[%s4035] ss:$9 sm:$0xff] %v3870
        %4146 = vst [vmem:[%s4037] ss:$9 sm:$0xff] %v3871
        %v4147 = vld [vmem:[#allocation1] sm:$0xff]
        %4148 = vst [vmem:[#allocation1] ss:$9 sm:$0xff] %v3872
        %4149 = vst [vmem:[%s4025] ss:$9 sm:$0xff] %v3873
        %4150 = vst [vmem:[%s4027] ss:$9 sm:$0xff] %v3874
        %4151 = vst [vmem:[%s4029] ss:$9 sm:$0xff] %v3875
        %4152 = vst [vmem:[%s4031] ss:$9 sm:$0xff] %v3876
        %4153 = vst [vmem:[%s4033] ss:$9 sm:$0xff] %v3877
        %4154 = vst [vmem:[%s4035] ss:$9 sm:$0xff] %v3878
        %4155 = vst [vmem:[%s4037] ss:$9 sm:$0xff] %v3879
        %v4156 = vld [vmem:[#allocation1] sm:$0xff]
        %4157 = vst [vmem:[#allocation1] ss:$9 sm:$0xff] %v3880
        %4158 = vst [vmem:[%s4025] ss:$9 sm:$0xff] %v3881
        %4159 = vst [vmem:[%s4027] ss:$9 sm:$0xff] %v3882
        %4160 = vst [vmem:[%s4029] ss:$9 sm:$0xff] %v3883
        %4161 = vst [vmem:[%s4031] ss:$9 sm:$0xff] %v3884
        %4162 = vst [vmem:[%s4033] ss:$9 sm:$0xff] %v3885
        %4163 = vst [vmem:[%s4035] ss:$9 sm:$0xff] %v3886
        %4164 = vst [vmem:[%s4037] ss:$9 sm:$0xff] %v3887
        %v4165 = vld [vmem:[#allocation1] sm:$0xff]
        %4166 = vst [vmem:[#allocation1] ss:$9 sm:$0xff] %v3888
        %4167 = vst [vmem:[%s4025] ss:$9 sm:$0xff] %v3889
        %4168 = vst [vmem:[%s4027] ss:$9 sm:$0xff] %v3890
        %4169 = vst [vmem:[%s4029] ss:$9 sm:$0xff] %v3891
        %4170 = vst [vmem:[%s4031] ss:$9 sm:$0xff] %v3892
        %4171 = vst [vmem:[%s4033] ss:$9 sm:$0xff] %v3893
        %4172 = vst [vmem:[%s4035] ss:$9 sm:$0xff] %v3894
        %4173 = vst [vmem:[%s4037] ss:$9 sm:$0xff] %v3895
        %v4174 = vld [vmem:[#allocation1] sm:$0xff]
        %4175 = vst [vmem:[#allocation1] ss:$9 sm:$0xff] %v3896
        %4176 = vst [vmem:[%s4025] ss:$9 sm:$0xff] %v3897
        %4177 = vst [vmem:[%s4027] ss:$9 sm:$0xff] %v3898
        %4178 = vst [vmem:[%s4029] ss:$9 sm:$0xff] %v3899
        %4179 = vst [vmem:[%s4031] ss:$9 sm:$0xff] %v3900
        %4180 = vst [vmem:[%s4033] ss:$9 sm:$0xff] %v3901
        %4181 = vst [vmem:[%s4035] ss:$9 sm:$0xff] %v3902
        %4182 = vst [vmem:[%s4037] ss:$9 sm:$0xff] %v3903
        %v4183 = vld [vmem:[#allocation1] sm:$0xff]
        %4184 = vst [vmem:[#allocation1] ss:$9 sm:$0xff] %v3904
        %4185 = vst [vmem:[%s4025] ss:$9 sm:$0xff] %v3905
        %4186 = vst [vmem:[%s4027] ss:$9 sm:$0xff] %v3906
        %4187 = vst [vmem:[%s4029] ss:$9 sm:$0xff] %v3907
        %4188 = vst [vmem:[%s4031] ss:$9 sm:$0xff] %v3908
        %4189 = vst [vmem:[%s4033] ss:$9 sm:$0xff] %v3909
        %4190 = vst [vmem:[%s4035] ss:$9 sm:$0xff] %v3910
        %4191 = vst [vmem:[%s4037] ss:$9 sm:$0xff] %v3911
        %v4192 = vld [vmem:[#allocation1] sm:$0xff]
        %4193 = vst [vmem:[#allocation1] ss:$9 sm:$0xff] %v3912
        %4194 = vst [vmem:[%s4025] ss:$9 sm:$0xff] %v3913
        %4195 = vst [vmem:[%s4027] ss:$9 sm:$0xff] %v3914
        %4196 = vst [vmem:[%s4029] ss:$9 sm:$0xff] %v3915
        %4197 = vst [vmem:[%s4031] ss:$9 sm:$0xff] %v3916
        %4198 = vst [vmem:[%s4033] ss:$9 sm:$0xff] %v3917
        %4199 = vst [vmem:[%s4035] ss:$9 sm:$0xff] %v3918
        %4200 = vst [vmem:[%s4037] ss:$9 sm:$0xff] %v3919
        %v4201 = vld [vmem:[#allocation1] sm:$0xff]
        %4202 = vst [vmem:[#allocation1] ss:$9 sm:$0xff] %v3920
        %4203 = vst [vmem:[%s4025] ss:$9 sm:$0xff] %v3921
        %4204 = vst [vmem:[%s4027] ss:$9 sm:$0xff] %v3922
        %4205 = vst [vmem:[%s4029] ss:$9 sm:$0xff] %v3923
        %4206 = vst [vmem:[%s4031] ss:$9 sm:$0xff] %v3924
        %4207 = vst [vmem:[%s4033] ss:$9 sm:$0xff] %v3925
        %4208 = vst [vmem:[%s4035] ss:$9 sm:$0xff] %v3926
        %4209 = vst [vmem:[%s4037] ss:$9 sm:$0xff] %v3927
        %v4210 = vld [vmem:[#allocation1] sm:$0xff]
        %4211 = vst [vmem:[#allocation1] ss:$9 sm:$0xff] %v3928
        %4212 = vst [vmem:[%s4025] ss:$9 sm:$0xff] %v3929
        %4213 = vst [vmem:[%s4027] ss:$9 sm:$0xff] %v3930
        %4214 = vst [vmem:[%s4029] ss:$9 sm:$0xff] %v3931
        %4215 = vst [vmem:[%s4031] ss:$9 sm:$0xff] %v3932
        %4216 = vst [vmem:[%s4033] ss:$9 sm:$0xff] %v3933
        %4217 = vst [vmem:[%s4035] ss:$9 sm:$0xff] %v3934
        %4218 = vst [vmem:[%s4037] ss:$9 sm:$0xff] %v3935
        %v4219 = vld [vmem:[#allocation1] sm:$0xff]
        %4220 = vst [vmem:[#allocation1] ss:$9 sm:$0xff] %v3936
        %4221 = vst [vmem:[%s4025] ss:$9 sm:$0xff] %v3937
        %4222 = vst [vmem:[%s4027] ss:$9 sm:$0xff] %v3938
        %4223 = vst [vmem:[%s4029] ss:$9 sm:$0xff] %v3939
        %4224 = vst [vmem:[%s4031] ss:$9 sm:$0xff] %v3940
        %4225 = vst [vmem:[%s4033] ss:$9 sm:$0xff] %v3941
        %4226 = vst [vmem:[%s4035] ss:$9 sm:$0xff] %v3942
        %4227 = vst [vmem:[%s4037] ss:$9 sm:$0xff] %v3943
        %v4228 = vld [vmem:[#allocation1] sm:$0xff]
        %4229 = vst [vmem:[#allocation1] ss:$9 sm:$0xff] %v3944
        %4230 = vst [vmem:[%s4025] ss:$9 sm:$0xff] %v3945
        %4231 = vst [vmem:[%s4027] ss:$9 sm:$0xff] %v3946
        %4232 = vst [vmem:[%s4029] ss:$9 sm:$0xff] %v3947
        %4233 = vst [vmem:[%s4031] ss:$9 sm:$0xff] %v3948
        %4234 = vst [vmem:[%s4033] ss:$9 sm:$0xff] %v3949
        %4235 = vst [vmem:[%s4035] ss:$9 sm:$0xff] %v3950
        %4236 = vst [vmem:[%s4037] ss:$9 sm:$0xff] %v3951
        %v4237 = vld [vmem:[#allocation1] sm:$0xff]
        %4238 = vst [vmem:[#allocation1] ss:$9 sm:$0xff] %v3952
        %4239 = vst [vmem:[%s4025] ss:$9 sm:$0xff] %v3953
        %4240 = vst [vmem:[%s4027] ss:$9 sm:$0xff] %v3954
        %4241 = vst [vmem:[%s4029] ss:$9 sm:$0xff] %v3955
        %4242 = vst [vmem:[%s4031] ss:$9 sm:$0xff] %v3956
        %4243 = vst [vmem:[%s4033] ss:$9 sm:$0xff] %v3957
        %4244 = vst [vmem:[%s4035] ss:$9 sm:$0xff] %v3958
        %4245 = vst [vmem:[%s4037] ss:$9 sm:$0xff] %v3959
        %v4246 = vld [vmem:[#allocation1] sm:$0xff]
        %4247 = vst [vmem:[#allocation1] ss:$9 sm:$0xff] %v3960
        %4248 = vst [vmem:[%s4025] ss:$9 sm:$0xff] %v3961
        %4249 = vst [vmem:[%s4027] ss:$9 sm:$0xff] %v3962
        %4250 = vst [vmem:[%s4029] ss:$9 sm:$0xff] %v3963
        %4251 = vst [vmem:[%s4031] ss:$9 sm:$0xff] %v3964
        %4252 = vst [vmem:[%s4033] ss:$9 sm:$0xff] %v3965
        %4253 = vst [vmem:[%s4035] ss:$9 sm:$0xff] %v3966
        %4254 = vst [vmem:[%s4037] ss:$9 sm:$0xff] %v3967
        %v4255 = vld [vmem:[#allocation1] sm:$0xff]
        %4256 = vst [vmem:[#allocation1] ss:$9 sm:$0xff] %v3968
        %4257 = vst [vmem:[%s4025] ss:$9 sm:$0xff] %v3969
        %4258 = vst [vmem:[%s4027] ss:$9 sm:$0xff] %v3970
        %4259 = vst [vmem:[%s4029] ss:$9 sm:$0xff] %v3971
        %4260 = vst [vmem:[%s4031] ss:$9 sm:$0xff] %v3972
        %4261 = vst [vmem:[%s4033] ss:$9 sm:$0xff] %v3973
        %4262 = vst [vmem:[%s4035] ss:$9 sm:$0xff] %v3974
        %4263 = vst [vmem:[%s4037] ss:$9 sm:$0xff] %v3975
        %v4264 = vld [vmem:[#allocation1] sm:$0xff]
        %4265 = vst [vmem:[#allocation1] ss:$9 sm:$0xff] %v3976
        %4266 = vst [vmem:[%s4025] ss:$9 sm:$0xff] %v3977
        %4267 = vst [vmem:[%s4027] ss:$9 sm:$0xff] %v3978
        %4268 = vst [vmem:[%s4029] ss:$9 sm:$0xff] %v3979
        %4269 = vst [vmem:[%s4031] ss:$9 sm:$0xff] %v3980
        %4270 = vst [vmem:[%s4033] ss:$9 sm:$0xff] %v3981
        %4271 = vst [vmem:[%s4035] ss:$9 sm:$0xff] %v3982
        %4272 = vst [vmem:[%s4037] ss:$9 sm:$0xff] %v3983
        %v4273 = vld [vmem:[#allocation1] sm:$0xff]
        %4274 = vst [vmem:[#allocation1] ss:$9 sm:$0xff] %v3984
        %4275 = vst [vmem:[%s4025] ss:$9 sm:$0xff] %v3985
        %4276 = vst [vmem:[%s4027] ss:$9 sm:$0xff] %v3986
        %4277 = vst [vmem:[%s4029] ss:$9 sm:$0xff] %v3987
        %4278 = vst [vmem:[%s4031] ss:$9 sm:$0xff] %v3988
        %4279 = vst [vmem:[%s4033] ss:$9 sm:$0xff] %v3989
        %4280 = vst [vmem:[%s4035] ss:$9 sm:$0xff] %v3990
        %4281 = vst [vmem:[%s4037] ss:$9 sm:$0xff] %v3991
        %v4282 = vld [vmem:[#allocation1] sm:$0xff]
        %4283 = vst [vmem:[#allocation1] ss:$9 sm:$0xff] %v3992
        %4284 = vst [vmem:[%s4025] ss:$9 sm:$0xff] %v3993
        %4285 = vst [vmem:[%s4027] ss:$9 sm:$0xff] %v3994
        %4286 = vst [vmem:[%s4029] ss:$9 sm:$0xff] %v3995
        %4287 = vst [vmem:[%s4031] ss:$9 sm:$0xff] %v3996
        %4288 = vst [vmem:[%s4033] ss:$9 sm:$0xff] %v3997
        %4289 = vst [vmem:[%s4035] ss:$9 sm:$0xff] %v3998
        %4290 = vst [vmem:[%s4037] ss:$9 sm:$0xff] %v3999
        %v4291 = vld [vmem:[#allocation1] sm:$0xff]
        %4292 = vst [vmem:[#allocation1] ss:$9 sm:$0xff] %v4000
        %4293 = vst [vmem:[%s4025] ss:$9 sm:$0xff] %v4001
        %4294 = vst [vmem:[%s4027] ss:$9 sm:$0xff] %v4002
        %4295 = vst [vmem:[%s4029] ss:$9 sm:$0xff] %v4003
        %4296 = vst [vmem:[%s4031] ss:$9 sm:$0xff] %v4004
        %4297 = vst [vmem:[%s4033] ss:$9 sm:$0xff] %v4005
        %4298 = vst [vmem:[%s4035] ss:$9 sm:$0xff] %v4006
        %4299 = vst [vmem:[%s4037] ss:$9 sm:$0xff] %v4007
        %v4300 = vld [vmem:[#allocation1] sm:$0xff]
        %4301 = vst [vmem:[#allocation1] ss:$9 sm:$0xff] %v4008
        %4302 = vst [vmem:[%s4025] ss:$9 sm:$0xff] %v4009
        %4303 = vst [vmem:[%s4027] ss:$9 sm:$0xff] %v4010
        %4304 = vst [vmem:[%s4029] ss:$9 sm:$0xff] %v4011
        %4305 = vst [vmem:[%s4031] ss:$9 sm:$0xff] %v4012
        %4306 = vst [vmem:[%s4033] ss:$9 sm:$0xff] %v4013
        %4307 = vst [vmem:[%s4035] ss:$9 sm:$0xff] %v4014
        %4308 = vst [vmem:[%s4037] ss:$9 sm:$0xff] %v4015
        %v4309 = vld [vmem:[#allocation1] sm:$0xff]
        %4310 = vst [vmem:[#allocation1] ss:$9 sm:$0xff] %v4016
        %4311 = vst [vmem:[%s4025] ss:$9 sm:$0xff] %v4017
        %4312 = vst [vmem:[%s4027] ss:$9 sm:$0xff] %v4018
        %4313 = vst [vmem:[%s4029] ss:$9 sm:$0xff] %v4019
        %4314 = vst [vmem:[%s4031] ss:$9 sm:$0xff] %v4020
        %4315 = vst [vmem:[%s4033] ss:$9 sm:$0xff] %v4021
        %4316 = vst [vmem:[%s4035] ss:$9 sm:$0xff] %v4022
        %4317 = vst [vmem:[%s4037] ss:$9 sm:$0xff] %v4023
        %v4318 = vld [vmem:[#allocation1] sm:$0xff]
        %4319 = vset.pattern.permute.xlu0 0
        %4320 = vperm.xlu0 %4319, %v4039
        %v4321 = vpop.permute.xlu0 %4320
        %4322 = vset.pattern.permute.xlu0 0
        %4323 = vperm.xlu0 %4322, %v4048
        %v4324 = vpop.permute.xlu0 %4323
        %4325 = vset.pattern.permute.xlu0 0
        %4326 = vperm.xlu0 %4325, %v4057
        %v4327 = vpop.permute.xlu0 %4326
        %4328 = vset.pattern.permute.xlu0 0
        %4329 = vperm.xlu0 %4328, %v4066
        %v4330 = vpop.permute.xlu0 %4329
        %4331 = vset.pattern.permute.xlu0 0
        %4332 = vperm.xlu0 %4331, %v4075
        %v4333 = vpop.permute.xlu0 %4332
        %4334 = vset.pattern.permute.xlu0 0
        %4335 = vperm.xlu0 %4334, %v4084
        %v4336 = vpop.permute.xlu0 %4335
        %4337 = vset.pattern.permute.xlu0 0
        %4338 = vperm.xlu0 %4337, %v4093
        %v4339 = vpop.permute.xlu0 %4338
        %4340 = vset.pattern.permute.xlu0 0
        %4341 = vperm.xlu0 %4340, %v4102
        %v4342 = vpop.permute.xlu0 %4341
        %4343 = vset.pattern.permute.xlu0 0
        %4344 = vperm.xlu0 %4343, %v4111
        %v4345 = vpop.permute.xlu0 %4344
        %4346 = vset.pattern.permute.xlu0 0
        %4347 = vperm.xlu0 %4346, %v4120
        %v4348 = vpop.permute.xlu0 %4347
        %4349 = vset.pattern.permute.xlu0 0
        %4350 = vperm.xlu0 %4349, %v4129
        %v4351 = vpop.permute.xlu0 %4350
        %4352 = vset.pattern.permute.xlu0 0
        %4353 = vperm.xlu0 %4352, %v4138
        %v4354 = vpop.permute.xlu0 %4353
        %4355 = vset.pattern.permute.xlu0 0
        %4356 = vperm.xlu0 %4355, %v4147
        %v4357 = vpop.permute.xlu0 %4356
        %4358 = vset.pattern.permute.xlu0 0
        %4359 = vperm.xlu0 %4358, %v4156
        %v4360 = vpop.permute.xlu0 %4359
        %4361 = vset.pattern.permute.xlu0 0
        %4362 = vperm.xlu0 %4361, %v4165
        %v4363 = vpop.permute.xlu0 %4362
        %4364 = vset.pattern.permute.xlu0 0
        %4365 = vperm.xlu0 %4364, %v4174
        %v4366 = vpop.permute.xlu0 %4365
        %4367 = vset.pattern.permute.xlu0 0
        %4368 = vperm.xlu0 %4367, %v4183
        %v4369 = vpop.permute.xlu0 %4368
        %4370 = vset.pattern.permute.xlu0 0
        %4371 = vperm.xlu0 %4370, %v4192
        %v4372 = vpop.permute.xlu0 %4371
        %4373 = vset.pattern.permute.xlu0 0
        %4374 = vperm.xlu0 %4373, %v4201
        %v4375 = vpop.permute.xlu0 %4374
        %4376 = vset.pattern.permute.xlu0 0
        %4377 = vperm.xlu0 %4376, %v4210
        %v4378 = vpop.permute.xlu0 %4377
        %4379 = vset.pattern.permute.xlu0 0
        %4380 = vperm.xlu0 %4379, %v4219
        %v4381 = vpop.permute.xlu0 %4380
        %4382 = vset.pattern.permute.xlu0 0
        %4383 = vperm.xlu0 %4382, %v4228
        %v4384 = vpop.permute.xlu0 %4383
        %4385 = vset.pattern.permute.xlu0 0
        %4386 = vperm.xlu0 %4385, %v4237
        %v4387 = vpop.permute.xlu0 %4386
        %4388 = vset.pattern.permute.xlu0 0
        %4389 = vperm.xlu0 %4388, %v4246
        %v4390 = vpop.permute.xlu0 %4389
        %4391 = vset.pattern.permute.xlu0 0
        %4392 = vperm.xlu0 %4391, %v4255
        %v4393 = vpop.permute.xlu0 %4392
        %4394 = vset.pattern.permute.xlu0 0
        %4395 = vperm.xlu0 %4394, %v4264
        %v4396 = vpop.permute.xlu0 %4395
        %4397 = vset.pattern.permute.xlu0 0
        %4398 = vperm.xlu0 %4397, %v4273
        %v4399 = vpop.permute.xlu0 %4398
        %4400 = vset.pattern.permute.xlu0 0
        %4401 = vperm.xlu0 %4400, %v4282
        %v4402 = vpop.permute.xlu0 %4401
        %4403 = vset.pattern.permute.xlu0 0
        %4404 = vperm.xlu0 %4403, %v4291
        %v4405 = vpop.permute.xlu0 %4404
        %4406 = vset.pattern.permute.xlu0 0
        %4407 = vperm.xlu0 %4406, %v4300
        %v4408 = vpop.permute.xlu0 %4407
        %4409 = vset.pattern.permute.xlu0 0
        %4410 = vperm.xlu0 %4409, %v4309
        %v4411 = vpop.permute.xlu0 %4410
        %4412 = vset.pattern.permute.xlu0 0
        %4413 = vperm.xlu0 %4412, %v4318
        %v4414 = vpop.permute.xlu0 %4413
        %v4415 = vlaneseq
        %v4416 = vand.u32 %v4415, 127
        %v4417 = vperm.slane %v4321, %v4416
        %v4418 = vadd.s32 %v4416, 4294967288
        %v4419 = vperm.slane %v4324, %v4418
        %vm4420 = vcmask 130112
        %v4421 = vsel %vm4420, %v4419, %v4417
        %v4422 = vadd.s32 %v4416, 4294967280
        %v4423 = vperm.slane %v4327, %v4422
        %vm4424 = vcmask 195712
        %v4425 = vsel %vm4424, %v4423, %v4421
        %v4426 = vadd.s32 %v4416, 4294967272
        %v4427 = vperm.slane %v4330, %v4426
        %vm4428 = vcmask 261312
        %v4429 = vsel %vm4428, %v4427, %v4425
        %v4430 = vadd.s32 %v4416, 4294967264
        %v4431 = vperm.slane %v4333, %v4430
        %vm4432 = vcmask 326912
        %v4433 = vsel %vm4432, %v4431, %v4429
        %v4434 = vadd.s32 %v4416, 4294967256
        %v4435 = vperm.slane %v4336, %v4434
        %vm4436 = vcmask 392512
        %v4437 = vsel %vm4436, %v4435, %v4433
        %v4438 = vadd.s32 %v4416, 4294967248
        %v4439 = vperm.slane %v4339, %v4438
        %vm4440 = vcmask 458112
        %v4441 = vsel %vm4440, %v4439, %v4437
        %v4442 = vadd.s32 %v4416, 4294967240
        %v4443 = vperm.slane %v4342, %v4442
        %vm4444 = vcmask 523712
        %v4445 = vsel %vm4444, %v4443, %v4441
        %v4446 = vadd.s32 %v4416, 4294967232
        %v4447 = vperm.slane %v4345, %v4446
        %vm4448 = vcmask 589312
        %v4449 = vsel %vm4448, %v4447, %v4445
        %v4450 = vadd.s32 %v4416, 4294967224
        %v4451 = vperm.slane %v4348, %v4450
        %vm4452 = vcmask 654912
        %v4453 = vsel %vm4452, %v4451, %v4449
        %v4454 = vadd.s32 %v4416, 4294967216
        %v4455 = vperm.slane %v4351, %v4454
        %vm4456 = vcmask 720512
        %v4457 = vsel %vm4456, %v4455, %v4453
        %v4458 = vadd.s32 %v4416, 4294967208
        %v4459 = vperm.slane %v4354, %v4458
        %vm4460 = vcmask 786112
        %v4461 = vsel %vm4460, %v4459, %v4457
        %v4462 = vadd.s32 %v4416, 4294967200
        %v4463 = vperm.slane %v4357, %v4462
        %vm4464 = vcmask 851712
        %v4465 = vsel %vm4464, %v4463, %v4461
        %v4466 = vadd.s32 %v4416, 4294967192
        %v4467 = vperm.slane %v4360, %v4466
        %vm4468 = vcmask 917312
        %v4469 = vsel %vm4468, %v4467, %v4465
        %v4470 = vadd.s32 %v4416, 4294967184
        %v4471 = vperm.slane %v4363, %v4470
        %vm4472 = vcmask 982912
        %v4473 = vsel %vm4472, %v4471, %v4469
        %v4474 = vadd.s32 %v4416, 4294967176
        %v4475 = vperm.slane %v4366, %v4474
        %vm4476 = vcmask 1048512
        %v4477 = vsel %vm4476, %v4475, %v4473
        %v4478 = vperm.slane %v4369, %v4416
        %v4479 = vperm.slane %v4372, %v4418
        %v4480 = vsel %vm4420, %v4479, %v4478
        %v4481 = vperm.slane %v4375, %v4422
        %v4482 = vsel %vm4424, %v4481, %v4480
        %v4483 = vperm.slane %v4378, %v4426
        %v4484 = vsel %vm4428, %v4483, %v4482
        %v4485 = vperm.slane %v4381, %v4430
        %v4486 = vsel %vm4432, %v4485, %v4484
        %v4487 = vperm.slane %v4384, %v4434
        %v4488 = vsel %vm4436, %v4487, %v4486
        %v4489 = vperm.slane %v4387, %v4438
        %v4490 = vsel %vm4440, %v4489, %v4488
        %v4491 = vperm.slane %v4390, %v4442
        %v4492 = vsel %vm4444, %v4491, %v4490
        %v4493 = vperm.slane %v4393, %v4446
        %v4494 = vsel %vm4448, %v4493, %v4492
        %v4495 = vperm.slane %v4396, %v4450
        %v4496 = vsel %vm4452, %v4495, %v4494
        %v4497 = vperm.slane %v4399, %v4454
        %v4498 = vsel %vm4456, %v4497, %v4496
        %v4499 = vperm.slane %v4402, %v4458
        %v4500 = vsel %vm4460, %v4499, %v4498
        %v4501 = vperm.slane %v4405, %v4462
        %v4502 = vsel %vm4464, %v4501, %v4500
        %v4503 = vperm.slane %v4408, %v4466
        %v4504 = vsel %vm4468, %v4503, %v4502
        %v4505 = vperm.slane %v4411, %v4470
        %v4506 = vsel %vm4472, %v4505, %v4504
        %v4507 = vperm.slane %v4414, %v4474
        %v4508 = vsel %vm4476, %v4507, %v4506
        %v4509 = vrot.slane %v4508, 7
        %vm4510 = vcmask 1040384
        %v4511 = vsel %vm4510, %v4477, %v4509
        %v4545 = vperm.slane %v270, 0
        %v4546 = vperm.slane %v270, 1
        %v4547 = vperm.slane %v270, 2
        %v4548 = vperm.slane %v270, 3
        %v4549 = vperm.slane %v270, 4
        %v4550 = vperm.slane %v270, 5
        %v4551 = vperm.slane %v270, 6
        %v4552 = vperm.slane %v270, 7
        %v4553 = vperm.slane %v271, 0
        %v4554 = vperm.slane %v271, 1
        %v4555 = vperm.slane %v271, 2
        %v4556 = vperm.slane %v271, 3
        %v4557 = vperm.slane %v271, 4
        %v4558 = vperm.slane %v271, 5
        %v4559 = vperm.slane %v271, 6
        %v4560 = vperm.slane %v271, 7
        %v4561 = vperm.slane %v272, 0
        %v4562 = vperm.slane %v272, 1
        %v4563 = vperm.slane %v272, 2
        %v4564 = vperm.slane %v272, 3
        %v4565 = vperm.slane %v272, 4
        %v4566 = vperm.slane %v272, 5
        %v4567 = vperm.slane %v272, 6
        %v4568 = vperm.slane %v272, 7
        %v4569 = vperm.slane %v273, 0
        %v4570 = vperm.slane %v273, 1
        %v4571 = vperm.slane %v273, 2
        %v4572 = vperm.slane %v273, 3
        %v4573 = vperm.slane %v273, 4
        %v4574 = vperm.slane %v273, 5
        %v4575 = vperm.slane %v273, 6
        %v4576 = vperm.slane %v273, 7
        %v4577 = vperm.slane %v274, 0
        %v4578 = vperm.slane %v274, 1
        %v4579 = vperm.slane %v274, 2
        %v4580 = vperm.slane %v274, 3
        %v4581 = vperm.slane %v274, 4
        %v4582 = vperm.slane %v274, 5
        %v4583 = vperm.slane %v274, 6
        %v4584 = vperm.slane %v274, 7
        %v4585 = vperm.slane %v275, 0
        %v4586 = vperm.slane %v275, 1
        %v4587 = vperm.slane %v275, 2
        %v4588 = vperm.slane %v275, 3
        %v4589 = vperm.slane %v275, 4
        %v4590 = vperm.slane %v275, 5
        %v4591 = vperm.slane %v275, 6
        %v4592 = vperm.slane %v275, 7
        %v4593 = vperm.slane %v276, 0
        %v4594 = vperm.slane %v276, 1
        %v4595 = vperm.slane %v276, 2
        %v4596 = vperm.slane %v276, 3
        %v4597 = vperm.slane %v276, 4
        %v4598 = vperm.slane %v276, 5
        %v4599 = vperm.slane %v276, 6
        %v4600 = vperm.slane %v276, 7
        %v4601 = vperm.slane %v277, 0
        %v4602 = vperm.slane %v277, 1
        %v4603 = vperm.slane %v277, 2
        %v4604 = vperm.slane %v277, 3
        %v4605 = vperm.slane %v277, 4
        %v4606 = vperm.slane %v277, 5
        %v4607 = vperm.slane %v277, 6
        %v4608 = vperm.slane %v277, 7
        %v4609 = vperm.slane %v278, 0
        %v4610 = vperm.slane %v278, 1
        %v4611 = vperm.slane %v278, 2
        %v4612 = vperm.slane %v278, 3
        %v4613 = vperm.slane %v278, 4
        %v4614 = vperm.slane %v278, 5
        %v4615 = vperm.slane %v278, 6
        %v4616 = vperm.slane %v278, 7
        %v4617 = vperm.slane %v279, 0
        %v4618 = vperm.slane %v279, 1
        %v4619 = vperm.slane %v279, 2
        %v4620 = vperm.slane %v279, 3
        %v4621 = vperm.slane %v279, 4
        %v4622 = vperm.slane %v279, 5
        %v4623 = vperm.slane %v279, 6
        %v4624 = vperm.slane %v279, 7
        %v4625 = vperm.slane %v280, 0
        %v4626 = vperm.slane %v280, 1
        %v4627 = vperm.slane %v280, 2
        %v4628 = vperm.slane %v280, 3
        %v4629 = vperm.slane %v280, 4
        %v4630 = vperm.slane %v280, 5
        %v4631 = vperm.slane %v280, 6
        %v4632 = vperm.slane %v280, 7
        %v4633 = vperm.slane %v281, 0
        %v4634 = vperm.slane %v281, 1
        %v4635 = vperm.slane %v281, 2
        %v4636 = vperm.slane %v281, 3
        %v4637 = vperm.slane %v281, 4
        %v4638 = vperm.slane %v281, 5
        %v4639 = vperm.slane %v281, 6
        %v4640 = vperm.slane %v281, 7
        %v4641 = vperm.slane %v282, 0
        %v4642 = vperm.slane %v282, 1
        %v4643 = vperm.slane %v282, 2
        %v4644 = vperm.slane %v282, 3
        %v4645 = vperm.slane %v282, 4
        %v4646 = vperm.slane %v282, 5
        %v4647 = vperm.slane %v282, 6
        %v4648 = vperm.slane %v282, 7
        %v4649 = vperm.slane %v283, 0
        %v4650 = vperm.slane %v283, 1
        %v4651 = vperm.slane %v283, 2
        %v4652 = vperm.slane %v283, 3
        %v4653 = vperm.slane %v283, 4
        %v4654 = vperm.slane %v283, 5
        %v4655 = vperm.slane %v283, 6
        %v4656 = vperm.slane %v283, 7
        %v4657 = vperm.slane %v284, 0
        %v4658 = vperm.slane %v284, 1
        %v4659 = vperm.slane %v284, 2
        %v4660 = vperm.slane %v284, 3
        %v4661 = vperm.slane %v284, 4
        %v4662 = vperm.slane %v284, 5
        %v4663 = vperm.slane %v284, 6
        %v4664 = vperm.slane %v284, 7
        %v4665 = vperm.slane %v285, 0
        %v4666 = vperm.slane %v285, 1
        %v4667 = vperm.slane %v285, 2
        %v4668 = vperm.slane %v285, 3
        %v4669 = vperm.slane %v285, 4
        %v4670 = vperm.slane %v285, 5
        %v4671 = vperm.slane %v285, 6
        %v4672 = vperm.slane %v285, 7
        %v4673 = vperm.slane %v286, 0
        %v4674 = vperm.slane %v286, 1
        %v4675 = vperm.slane %v286, 2
        %v4676 = vperm.slane %v286, 3
        %v4677 = vperm.slane %v286, 4
        %v4678 = vperm.slane %v286, 5
        %v4679 = vperm.slane %v286, 6
        %v4680 = vperm.slane %v286, 7
        %v4681 = vperm.slane %v287, 0
        %v4682 = vperm.slane %v287, 1
        %v4683 = vperm.slane %v287, 2
        %v4684 = vperm.slane %v287, 3
        %v4685 = vperm.slane %v287, 4
        %v4686 = vperm.slane %v287, 5
        %v4687 = vperm.slane %v287, 6
        %v4688 = vperm.slane %v287, 7
        %v4689 = vperm.slane %v288, 0
        %v4690 = vperm.slane %v288, 1
        %v4691 = vperm.slane %v288, 2
        %v4692 = vperm.slane %v288, 3
        %v4693 = vperm.slane %v288, 4
        %v4694 = vperm.slane %v288, 5
        %v4695 = vperm.slane %v288, 6
        %v4696 = vperm.slane %v288, 7
        %v4697 = vperm.slane %v289, 0
        %v4698 = vperm.slane %v289, 1
        %v4699 = vperm.slane %v289, 2
        %v4700 = vperm.slane %v289, 3
        %v4701 = vperm.slane %v289, 4
        %v4702 = vperm.slane %v289, 5
        %v4703 = vperm.slane %v289, 6
        %v4704 = vperm.slane %v289, 7
        %v4705 = vperm.slane %v290, 0
        %v4706 = vperm.slane %v290, 1
        %v4707 = vperm.slane %v290, 2
        %v4708 = vperm.slane %v290, 3
        %v4709 = vperm.slane %v290, 4
        %v4710 = vperm.slane %v290, 5
        %v4711 = vperm.slane %v290, 6
        %v4712 = vperm.slane %v290, 7
        %v4713 = vperm.slane %v291, 0
        %v4714 = vperm.slane %v291, 1
        %v4715 = vperm.slane %v291, 2
        %v4716 = vperm.slane %v291, 3
        %v4717 = vperm.slane %v291, 4
        %v4718 = vperm.slane %v291, 5
        %v4719 = vperm.slane %v291, 6
        %v4720 = vperm.slane %v291, 7
        %v4721 = vperm.slane %v292, 0
        %v4722 = vperm.slane %v292, 1
        %v4723 = vperm.slane %v292, 2
        %v4724 = vperm.slane %v292, 3
        %v4725 = vperm.slane %v292, 4
        %v4726 = vperm.slane %v292, 5
        %v4727 = vperm.slane %v292, 6
        %v4728 = vperm.slane %v292, 7
        %v4729 = vperm.slane %v293, 0
        %v4730 = vperm.slane %v293, 1
        %v4731 = vperm.slane %v293, 2
        %v4732 = vperm.slane %v293, 3
        %v4733 = vperm.slane %v293, 4
        %v4734 = vperm.slane %v293, 5
        %v4735 = vperm.slane %v293, 6
        %v4736 = vperm.slane %v293, 7
        %v4737 = vperm.slane %v294, 0
        %v4738 = vperm.slane %v294, 1
        %v4739 = vperm.slane %v294, 2
        %v4740 = vperm.slane %v294, 3
        %v4741 = vperm.slane %v294, 4
        %v4742 = vperm.slane %v294, 5
        %v4743 = vperm.slane %v294, 6
        %v4744 = vperm.slane %v294, 7
        %v4745 = vperm.slane %v295, 0
        %v4746 = vperm.slane %v295, 1
        %v4747 = vperm.slane %v295, 2
        %v4748 = vperm.slane %v295, 3
        %v4749 = vperm.slane %v295, 4
        %v4750 = vperm.slane %v295, 5
        %v4751 = vperm.slane %v295, 6
        %v4752 = vperm.slane %v295, 7
        %v4753 = vperm.slane %v296, 0
        %v4754 = vperm.slane %v296, 1
        %v4755 = vperm.slane %v296, 2
        %v4756 = vperm.slane %v296, 3
        %v4757 = vperm.slane %v296, 4
        %v4758 = vperm.slane %v296, 5
        %v4759 = vperm.slane %v296, 6
        %v4760 = vperm.slane %v296, 7
        %v4761 = vperm.slane %v297, 0
        %v4762 = vperm.slane %v297, 1
        %v4763 = vperm.slane %v297, 2
        %v4764 = vperm.slane %v297, 3
        %v4765 = vperm.slane %v297, 4
        %v4766 = vperm.slane %v297, 5
        %v4767 = vperm.slane %v297, 6
        %v4768 = vperm.slane %v297, 7
        %v4769 = vperm.slane %v298, 0
        %v4770 = vperm.slane %v298, 1
        %v4771 = vperm.slane %v298, 2
        %v4772 = vperm.slane %v298, 3
        %v4773 = vperm.slane %v298, 4
        %v4774 = vperm.slane %v298, 5
        %v4775 = vperm.slane %v298, 6
        %v4776 = vperm.slane %v298, 7
        %v4777 = vperm.slane %v299, 0
        %v4778 = vperm.slane %v299, 1
        %v4779 = vperm.slane %v299, 2
        %v4780 = vperm.slane %v299, 3
        %v4781 = vperm.slane %v299, 4
        %v4782 = vperm.slane %v299, 5
        %v4783 = vperm.slane %v299, 6
        %v4784 = vperm.slane %v299, 7
        %v4785 = vperm.slane %v300, 0
        %v4786 = vperm.slane %v300, 1
        %v4787 = vperm.slane %v300, 2
        %v4788 = vperm.slane %v300, 3
        %v4789 = vperm.slane %v300, 4
        %v4790 = vperm.slane %v300, 5
        %v4791 = vperm.slane %v300, 6
        %v4792 = vperm.slane %v300, 7
        %v4793 = vperm.slane %v301, 0
        %v4794 = vperm.slane %v301, 1
        %v4795 = vperm.slane %v301, 2
        %v4796 = vperm.slane %v301, 3
        %v4797 = vperm.slane %v301, 4
        %v4798 = vperm.slane %v301, 5
        %v4799 = vperm.slane %v301, 6
        %v4800 = vperm.slane %v301, 7
        %4801 = vst [vmem:[#allocation1] ss:$9 sm:$0xff] %v4545
        %s4802 = scalar_lea.vmem [#allocation1], 1
        %4803 = vst [vmem:[%s4802] ss:$9 sm:$0xff] %v4546
        %s4804 = scalar_lea.vmem [#allocation1], 2
        %4805 = vst [vmem:[%s4804] ss:$9 sm:$0xff] %v4547
        %s4806 = scalar_lea.vmem [#allocation1], 3
        %4807 = vst [vmem:[%s4806] ss:$9 sm:$0xff] %v4548
        %s4808 = scalar_lea.vmem [#allocation1], 4
        %4809 = vst [vmem:[%s4808] ss:$9 sm:$0xff] %v4549
        %s4810 = scalar_lea.vmem [#allocation1], 5
        %4811 = vst [vmem:[%s4810] ss:$9 sm:$0xff] %v4550
        %s4812 = scalar_lea.vmem [#allocation1], 6
        %4813 = vst [vmem:[%s4812] ss:$9 sm:$0xff] %v4551
        %s4814 = scalar_lea.vmem [#allocation1], 7
        %4815 = vst [vmem:[%s4814] ss:$9 sm:$0xff] %v4552
        %v4816 = vld [vmem:[#allocation1] sm:$0xff]
        %4817 = vst [vmem:[#allocation1] ss:$9 sm:$0xff] %v4553
        %4818 = vst [vmem:[%s4802] ss:$9 sm:$0xff] %v4554
        %4819 = vst [vmem:[%s4804] ss:$9 sm:$0xff] %v4555
        %4820 = vst [vmem:[%s4806] ss:$9 sm:$0xff] %v4556
        %4821 = vst [vmem:[%s4808] ss:$9 sm:$0xff] %v4557
        %4822 = vst [vmem:[%s4810] ss:$9 sm:$0xff] %v4558
        %4823 = vst [vmem:[%s4812] ss:$9 sm:$0xff] %v4559
        %4824 = vst [vmem:[%s4814] ss:$9 sm:$0xff] %v4560
        %v4825 = vld [vmem:[#allocation1] sm:$0xff]
        %4826 = vst [vmem:[#allocation1] ss:$9 sm:$0xff] %v4561
        %4827 = vst [vmem:[%s4802] ss:$9 sm:$0xff] %v4562
        %4828 = vst [vmem:[%s4804] ss:$9 sm:$0xff] %v4563
        %4829 = vst [vmem:[%s4806] ss:$9 sm:$0xff] %v4564
        %4830 = vst [vmem:[%s4808] ss:$9 sm:$0xff] %v4565
        %4831 = vst [vmem:[%s4810] ss:$9 sm:$0xff] %v4566
        %4832 = vst [vmem:[%s4812] ss:$9 sm:$0xff] %v4567
        %4833 = vst [vmem:[%s4814] ss:$9 sm:$0xff] %v4568
        %v4834 = vld [vmem:[#allocation1] sm:$0xff]
        %4835 = vst [vmem:[#allocation1] ss:$9 sm:$0xff] %v4569
        %4836 = vst [vmem:[%s4802] ss:$9 sm:$0xff] %v4570
        %4837 = vst [vmem:[%s4804] ss:$9 sm:$0xff] %v4571
        %4838 = vst [vmem:[%s4806] ss:$9 sm:$0xff] %v4572
        %4839 = vst [vmem:[%s4808] ss:$9 sm:$0xff] %v4573
        %4840 = vst [vmem:[%s4810] ss:$9 sm:$0xff] %v4574
        %4841 = vst [vmem:[%s4812] ss:$9 sm:$0xff] %v4575
        %4842 = vst [vmem:[%s4814] ss:$9 sm:$0xff] %v4576
        %v4843 = vld [vmem:[#allocation1] sm:$0xff]
        %4844 = vst [vmem:[#allocation1] ss:$9 sm:$0xff] %v4577
        %4845 = vst [vmem:[%s4802] ss:$9 sm:$0xff] %v4578
        %4846 = vst [vmem:[%s4804] ss:$9 sm:$0xff] %v4579
        %4847 = vst [vmem:[%s4806] ss:$9 sm:$0xff] %v4580
        %4848 = vst [vmem:[%s4808] ss:$9 sm:$0xff] %v4581
        %4849 = vst [vmem:[%s4810] ss:$9 sm:$0xff] %v4582
        %4850 = vst [vmem:[%s4812] ss:$9 sm:$0xff] %v4583
        %4851 = vst [vmem:[%s4814] ss:$9 sm:$0xff] %v4584
        %v4852 = vld [vmem:[#allocation1] sm:$0xff]
        %4853 = vst [vmem:[#allocation1] ss:$9 sm:$0xff] %v4585
        %4854 = vst [vmem:[%s4802] ss:$9 sm:$0xff] %v4586
        %4855 = vst [vmem:[%s4804] ss:$9 sm:$0xff] %v4587
        %4856 = vst [vmem:[%s4806] ss:$9 sm:$0xff] %v4588
        %4857 = vst [vmem:[%s4808] ss:$9 sm:$0xff] %v4589
        %4858 = vst [vmem:[%s4810] ss:$9 sm:$0xff] %v4590
        %4859 = vst [vmem:[%s4812] ss:$9 sm:$0xff] %v4591
        %4860 = vst [vmem:[%s4814] ss:$9 sm:$0xff] %v4592
        %v4861 = vld [vmem:[#allocation1] sm:$0xff]
        %4862 = vst [vmem:[#allocation1] ss:$9 sm:$0xff] %v4593
        %4863 = vst [vmem:[%s4802] ss:$9 sm:$0xff] %v4594
        %4864 = vst [vmem:[%s4804] ss:$9 sm:$0xff] %v4595
        %4865 = vst [vmem:[%s4806] ss:$9 sm:$0xff] %v4596
        %4866 = vst [vmem:[%s4808] ss:$9 sm:$0xff] %v4597
        %4867 = vst [vmem:[%s4810] ss:$9 sm:$0xff] %v4598
        %4868 = vst [vmem:[%s4812] ss:$9 sm:$0xff] %v4599
        %4869 = vst [vmem:[%s4814] ss:$9 sm:$0xff] %v4600
        %v4870 = vld [vmem:[#allocation1] sm:$0xff]
        %4871 = vst [vmem:[#allocation1] ss:$9 sm:$0xff] %v4601
        %4872 = vst [vmem:[%s4802] ss:$9 sm:$0xff] %v4602
        %4873 = vst [vmem:[%s4804] ss:$9 sm:$0xff] %v4603
        %4874 = vst [vmem:[%s4806] ss:$9 sm:$0xff] %v4604
        %4875 = vst [vmem:[%s4808] ss:$9 sm:$0xff] %v4605
        %4876 = vst [vmem:[%s4810] ss:$9 sm:$0xff] %v4606
        %4877 = vst [vmem:[%s4812] ss:$9 sm:$0xff] %v4607
        %4878 = vst [vmem:[%s4814] ss:$9 sm:$0xff] %v4608
        %v4879 = vld [vmem:[#allocation1] sm:$0xff]
        %4880 = vst [vmem:[#allocation1] ss:$9 sm:$0xff] %v4609
        %4881 = vst [vmem:[%s4802] ss:$9 sm:$0xff] %v4610
        %4882 = vst [vmem:[%s4804] ss:$9 sm:$0xff] %v4611
        %4883 = vst [vmem:[%s4806] ss:$9 sm:$0xff] %v4612
        %4884 = vst [vmem:[%s4808] ss:$9 sm:$0xff] %v4613
        %4885 = vst [vmem:[%s4810] ss:$9 sm:$0xff] %v4614
        %4886 = vst [vmem:[%s4812] ss:$9 sm:$0xff] %v4615
        %4887 = vst [vmem:[%s4814] ss:$9 sm:$0xff] %v4616
        %v4888 = vld [vmem:[#allocation1] sm:$0xff]
        %4889 = vst [vmem:[#allocation1] ss:$9 sm:$0xff] %v4617
        %4890 = vst [vmem:[%s4802] ss:$9 sm:$0xff] %v4618
        %4891 = vst [vmem:[%s4804] ss:$9 sm:$0xff] %v4619
        %4892 = vst [vmem:[%s4806] ss:$9 sm:$0xff] %v4620
        %4893 = vst [vmem:[%s4808] ss:$9 sm:$0xff] %v4621
        %4894 = vst [vmem:[%s4810] ss:$9 sm:$0xff] %v4622
        %4895 = vst [vmem:[%s4812] ss:$9 sm:$0xff] %v4623
        %4896 = vst [vmem:[%s4814] ss:$9 sm:$0xff] %v4624
        %v4897 = vld [vmem:[#allocation1] sm:$0xff]
        %4898 = vst [vmem:[#allocation1] ss:$9 sm:$0xff] %v4625
        %4899 = vst [vmem:[%s4802] ss:$9 sm:$0xff] %v4626
        %4900 = vst [vmem:[%s4804] ss:$9 sm:$0xff] %v4627
        %4901 = vst [vmem:[%s4806] ss:$9 sm:$0xff] %v4628
        %4902 = vst [vmem:[%s4808] ss:$9 sm:$0xff] %v4629
        %4903 = vst [vmem:[%s4810] ss:$9 sm:$0xff] %v4630
        %4904 = vst [vmem:[%s4812] ss:$9 sm:$0xff] %v4631
        %4905 = vst [vmem:[%s4814] ss:$9 sm:$0xff] %v4632
        %v4906 = vld [vmem:[#allocation1] sm:$0xff]
        %4907 = vst [vmem:[#allocation1] ss:$9 sm:$0xff] %v4633
        %4908 = vst [vmem:[%s4802] ss:$9 sm:$0xff] %v4634
        %4909 = vst [vmem:[%s4804] ss:$9 sm:$0xff] %v4635
        %4910 = vst [vmem:[%s4806] ss:$9 sm:$0xff] %v4636
        %4911 = vst [vmem:[%s4808] ss:$9 sm:$0xff] %v4637
        %4912 = vst [vmem:[%s4810] ss:$9 sm:$0xff] %v4638
        %4913 = vst [vmem:[%s4812] ss:$9 sm:$0xff] %v4639
        %4914 = vst [vmem:[%s4814] ss:$9 sm:$0xff] %v4640
        %v4915 = vld [vmem:[#allocation1] sm:$0xff]
        %4916 = vst [vmem:[#allocation1] ss:$9 sm:$0xff] %v4641
        %4917 = vst [vmem:[%s4802] ss:$9 sm:$0xff] %v4642
        %4918 = vst [vmem:[%s4804] ss:$9 sm:$0xff] %v4643
        %4919 = vst [vmem:[%s4806] ss:$9 sm:$0xff] %v4644
        %4920 = vst [vmem:[%s4808] ss:$9 sm:$0xff] %v4645
        %4921 = vst [vmem:[%s4810] ss:$9 sm:$0xff] %v4646
        %4922 = vst [vmem:[%s4812] ss:$9 sm:$0xff] %v4647
        %4923 = vst [vmem:[%s4814] ss:$9 sm:$0xff] %v4648
        %v4924 = vld [vmem:[#allocation1] sm:$0xff]
        %4925 = vst [vmem:[#allocation1] ss:$9 sm:$0xff] %v4649
        %4926 = vst [vmem:[%s4802] ss:$9 sm:$0xff] %v4650
        %4927 = vst [vmem:[%s4804] ss:$9 sm:$0xff] %v4651
        %4928 = vst [vmem:[%s4806] ss:$9 sm:$0xff] %v4652
        %4929 = vst [vmem:[%s4808] ss:$9 sm:$0xff] %v4653
        %4930 = vst [vmem:[%s4810] ss:$9 sm:$0xff] %v4654
        %4931 = vst [vmem:[%s4812] ss:$9 sm:$0xff] %v4655
        %4932 = vst [vmem:[%s4814] ss:$9 sm:$0xff] %v4656
        %v4933 = vld [vmem:[#allocation1] sm:$0xff]
        %4934 = vst [vmem:[#allocation1] ss:$9 sm:$0xff] %v4657
        %4935 = vst [vmem:[%s4802] ss:$9 sm:$0xff] %v4658
        %4936 = vst [vmem:[%s4804] ss:$9 sm:$0xff] %v4659
        %4937 = vst [vmem:[%s4806] ss:$9 sm:$0xff] %v4660
        %4938 = vst [vmem:[%s4808] ss:$9 sm:$0xff] %v4661
        %4939 = vst [vmem:[%s4810] ss:$9 sm:$0xff] %v4662
        %4940 = vst [vmem:[%s4812] ss:$9 sm:$0xff] %v4663
        %4941 = vst [vmem:[%s4814] ss:$9 sm:$0xff] %v4664
        %v4942 = vld [vmem:[#allocation1] sm:$0xff]
        %4943 = vst [vmem:[#allocation1] ss:$9 sm:$0xff] %v4665
        %4944 = vst [vmem:[%s4802] ss:$9 sm:$0xff] %v4666
        %4945 = vst [vmem:[%s4804] ss:$9 sm:$0xff] %v4667
        %4946 = vst [vmem:[%s4806] ss:$9 sm:$0xff] %v4668
        %4947 = vst [vmem:[%s4808] ss:$9 sm:$0xff] %v4669
        %4948 = vst [vmem:[%s4810] ss:$9 sm:$0xff] %v4670
        %4949 = vst [vmem:[%s4812] ss:$9 sm:$0xff] %v4671
        %4950 = vst [vmem:[%s4814] ss:$9 sm:$0xff] %v4672
        %v4951 = vld [vmem:[#allocation1] sm:$0xff]
        %4952 = vst [vmem:[#allocation1] ss:$9 sm:$0xff] %v4673
        %4953 = vst [vmem:[%s4802] ss:$9 sm:$0xff] %v4674
        %4954 = vst [vmem:[%s4804] ss:$9 sm:$0xff] %v4675
        %4955 = vst [vmem:[%s4806] ss:$9 sm:$0xff] %v4676
        %4956 = vst [vmem:[%s4808] ss:$9 sm:$0xff] %v4677
        %4957 = vst [vmem:[%s4810] ss:$9 sm:$0xff] %v4678
        %4958 = vst [vmem:[%s4812] ss:$9 sm:$0xff] %v4679
        %4959 = vst [vmem:[%s4814] ss:$9 sm:$0xff] %v4680
        %v4960 = vld [vmem:[#allocation1] sm:$0xff]
        %4961 = vst [vmem:[#allocation1] ss:$9 sm:$0xff] %v4681
        %4962 = vst [vmem:[%s4802] ss:$9 sm:$0xff] %v4682
        %4963 = vst [vmem:[%s4804] ss:$9 sm:$0xff] %v4683
        %4964 = vst [vmem:[%s4806] ss:$9 sm:$0xff] %v4684
        %4965 = vst [vmem:[%s4808] ss:$9 sm:$0xff] %v4685
        %4966 = vst [vmem:[%s4810] ss:$9 sm:$0xff] %v4686
        %4967 = vst [vmem:[%s4812] ss:$9 sm:$0xff] %v4687
        %4968 = vst [vmem:[%s4814] ss:$9 sm:$0xff] %v4688
        %v4969 = vld [vmem:[#allocation1] sm:$0xff]
        %4970 = vst [vmem:[#allocation1] ss:$9 sm:$0xff] %v4689
        %4971 = vst [vmem:[%s4802] ss:$9 sm:$0xff] %v4690
        %4972 = vst [vmem:[%s4804] ss:$9 sm:$0xff] %v4691
        %4973 = vst [vmem:[%s4806] ss:$9 sm:$0xff] %v4692
        %4974 = vst [vmem:[%s4808] ss:$9 sm:$0xff] %v4693
        %4975 = vst [vmem:[%s4810] ss:$9 sm:$0xff] %v4694
        %4976 = vst [vmem:[%s4812] ss:$9 sm:$0xff] %v4695
        %4977 = vst [vmem:[%s4814] ss:$9 sm:$0xff] %v4696
        %v4978 = vld [vmem:[#allocation1] sm:$0xff]
        %4979 = vst [vmem:[#allocation1] ss:$9 sm:$0xff] %v4697
        %4980 = vst [vmem:[%s4802] ss:$9 sm:$0xff] %v4698
        %4981 = vst [vmem:[%s4804] ss:$9 sm:$0xff] %v4699
        %4982 = vst [vmem:[%s4806] ss:$9 sm:$0xff] %v4700
        %4983 = vst [vmem:[%s4808] ss:$9 sm:$0xff] %v4701
        %4984 = vst [vmem:[%s4810] ss:$9 sm:$0xff] %v4702
        %4985 = vst [vmem:[%s4812] ss:$9 sm:$0xff] %v4703
        %4986 = vst [vmem:[%s4814] ss:$9 sm:$0xff] %v4704
        %v4987 = vld [vmem:[#allocation1] sm:$0xff]
        %4988 = vst [vmem:[#allocation1] ss:$9 sm:$0xff] %v4705
        %4989 = vst [vmem:[%s4802] ss:$9 sm:$0xff] %v4706
        %4990 = vst [vmem:[%s4804] ss:$9 sm:$0xff] %v4707
        %4991 = vst [vmem:[%s4806] ss:$9 sm:$0xff] %v4708
        %4992 = vst [vmem:[%s4808] ss:$9 sm:$0xff] %v4709
        %4993 = vst [vmem:[%s4810] ss:$9 sm:$0xff] %v4710
        %4994 = vst [vmem:[%s4812] ss:$9 sm:$0xff] %v4711
        %4995 = vst [vmem:[%s4814] ss:$9 sm:$0xff] %v4712
        %v4996 = vld [vmem:[#allocation1] sm:$0xff]
        %4997 = vst [vmem:[#allocation1] ss:$9 sm:$0xff] %v4713
        %4998 = vst [vmem:[%s4802] ss:$9 sm:$0xff] %v4714
        %4999 = vst [vmem:[%s4804] ss:$9 sm:$0xff] %v4715
        %5000 = vst [vmem:[%s4806] ss:$9 sm:$0xff] %v4716
        %5001 = vst [vmem:[%s4808] ss:$9 sm:$0xff] %v4717
        %5002 = vst [vmem:[%s4810] ss:$9 sm:$0xff] %v4718
        %5003 = vst [vmem:[%s4812] ss:$9 sm:$0xff] %v4719
        %5004 = vst [vmem:[%s4814] ss:$9 sm:$0xff] %v4720
        %v5005 = vld [vmem:[#allocation1] sm:$0xff]
        %5006 = vst [vmem:[#allocation1] ss:$9 sm:$0xff] %v4721
        %5007 = vst [vmem:[%s4802] ss:$9 sm:$0xff] %v4722
        %5008 = vst [vmem:[%s4804] ss:$9 sm:$0xff] %v4723
        %5009 = vst [vmem:[%s4806] ss:$9 sm:$0xff] %v4724
        %5010 = vst [vmem:[%s4808] ss:$9 sm:$0xff] %v4725
        %5011 = vst [vmem:[%s4810] ss:$9 sm:$0xff] %v4726
        %5012 = vst [vmem:[%s4812] ss:$9 sm:$0xff] %v4727
        %5013 = vst [vmem:[%s4814] ss:$9 sm:$0xff] %v4728
        %v5014 = vld [vmem:[#allocation1] sm:$0xff]
        %5015 = vst [vmem:[#allocation1] ss:$9 sm:$0xff] %v4729
        %5016 = vst [vmem:[%s4802] ss:$9 sm:$0xff] %v4730
        %5017 = vst [vmem:[%s4804] ss:$9 sm:$0xff] %v4731
        %5018 = vst [vmem:[%s4806] ss:$9 sm:$0xff] %v4732
        %5019 = vst [vmem:[%s4808] ss:$9 sm:$0xff] %v4733
        %5020 = vst [vmem:[%s4810] ss:$9 sm:$0xff] %v4734
        %5021 = vst [vmem:[%s4812] ss:$9 sm:$0xff] %v4735
        %5022 = vst [vmem:[%s4814] ss:$9 sm:$0xff] %v4736
        %v5023 = vld [vmem:[#allocation1] sm:$0xff]
        %5024 = vst [vmem:[#allocation1] ss:$9 sm:$0xff] %v4737
        %5025 = vst [vmem:[%s4802] ss:$9 sm:$0xff] %v4738
        %5026 = vst [vmem:[%s4804] ss:$9 sm:$0xff] %v4739
        %5027 = vst [vmem:[%s4806] ss:$9 sm:$0xff] %v4740
        %5028 = vst [vmem:[%s4808] ss:$9 sm:$0xff] %v4741
        %5029 = vst [vmem:[%s4810] ss:$9 sm:$0xff] %v4742
        %5030 = vst [vmem:[%s4812] ss:$9 sm:$0xff] %v4743
        %5031 = vst [vmem:[%s4814] ss:$9 sm:$0xff] %v4744
        %v5032 = vld [vmem:[#allocation1] sm:$0xff]
        %5033 = vst [vmem:[#allocation1] ss:$9 sm:$0xff] %v4745
        %5034 = vst [vmem:[%s4802] ss:$9 sm:$0xff] %v4746
        %5035 = vst [vmem:[%s4804] ss:$9 sm:$0xff] %v4747
        %5036 = vst [vmem:[%s4806] ss:$9 sm:$0xff] %v4748
        %5037 = vst [vmem:[%s4808] ss:$9 sm:$0xff] %v4749
        %5038 = vst [vmem:[%s4810] ss:$9 sm:$0xff] %v4750
        %5039 = vst [vmem:[%s4812] ss:$9 sm:$0xff] %v4751
        %5040 = vst [vmem:[%s4814] ss:$9 sm:$0xff] %v4752
        %v5041 = vld [vmem:[#allocation1] sm:$0xff]
        %5042 = vst [vmem:[#allocation1] ss:$9 sm:$0xff] %v4753
        %5043 = vst [vmem:[%s4802] ss:$9 sm:$0xff] %v4754
        %5044 = vst [vmem:[%s4804] ss:$9 sm:$0xff] %v4755
        %5045 = vst [vmem:[%s4806] ss:$9 sm:$0xff] %v4756
        %5046 = vst [vmem:[%s4808] ss:$9 sm:$0xff] %v4757
        %5047 = vst [vmem:[%s4810] ss:$9 sm:$0xff] %v4758
        %5048 = vst [vmem:[%s4812] ss:$9 sm:$0xff] %v4759
        %5049 = vst [vmem:[%s4814] ss:$9 sm:$0xff] %v4760
        %v5050 = vld [vmem:[#allocation1] sm:$0xff]
        %5051 = vst [vmem:[#allocation1] ss:$9 sm:$0xff] %v4761
        %5052 = vst [vmem:[%s4802] ss:$9 sm:$0xff] %v4762
        %5053 = vst [vmem:[%s4804] ss:$9 sm:$0xff] %v4763
        %5054 = vst [vmem:[%s4806] ss:$9 sm:$0xff] %v4764
        %5055 = vst [vmem:[%s4808] ss:$9 sm:$0xff] %v4765
        %5056 = vst [vmem:[%s4810] ss:$9 sm:$0xff] %v4766
        %5057 = vst [vmem:[%s4812] ss:$9 sm:$0xff] %v4767
        %5058 = vst [vmem:[%s4814] ss:$9 sm:$0xff] %v4768
        %v5059 = vld [vmem:[#allocation1] sm:$0xff]
        %5060 = vst [vmem:[#allocation1] ss:$9 sm:$0xff] %v4769
        %5061 = vst [vmem:[%s4802] ss:$9 sm:$0xff] %v4770
        %5062 = vst [vmem:[%s4804] ss:$9 sm:$0xff] %v4771
        %5063 = vst [vmem:[%s4806] ss:$9 sm:$0xff] %v4772
        %5064 = vst [vmem:[%s4808] ss:$9 sm:$0xff] %v4773
        %5065 = vst [vmem:[%s4810] ss:$9 sm:$0xff] %v4774
        %5066 = vst [vmem:[%s4812] ss:$9 sm:$0xff] %v4775
        %5067 = vst [vmem:[%s4814] ss:$9 sm:$0xff] %v4776
        %v5068 = vld [vmem:[#allocation1] sm:$0xff]
        %5069 = vst [vmem:[#allocation1] ss:$9 sm:$0xff] %v4777
        %5070 = vst [vmem:[%s4802] ss:$9 sm:$0xff] %v4778
        %5071 = vst [vmem:[%s4804] ss:$9 sm:$0xff] %v4779
        %5072 = vst [vmem:[%s4806] ss:$9 sm:$0xff] %v4780
        %5073 = vst [vmem:[%s4808] ss:$9 sm:$0xff] %v4781
        %5074 = vst [vmem:[%s4810] ss:$9 sm:$0xff] %v4782
        %5075 = vst [vmem:[%s4812] ss:$9 sm:$0xff] %v4783
        %5076 = vst [vmem:[%s4814] ss:$9 sm:$0xff] %v4784
        %v5077 = vld [vmem:[#allocation1] sm:$0xff]
        %5078 = vst [vmem:[#allocation1] ss:$9 sm:$0xff] %v4785
        %5079 = vst [vmem:[%s4802] ss:$9 sm:$0xff] %v4786
        %5080 = vst [vmem:[%s4804] ss:$9 sm:$0xff] %v4787
        %5081 = vst [vmem:[%s4806] ss:$9 sm:$0xff] %v4788
        %5082 = vst [vmem:[%s4808] ss:$9 sm:$0xff] %v4789
        %5083 = vst [vmem:[%s4810] ss:$9 sm:$0xff] %v4790
        %5084 = vst [vmem:[%s4812] ss:$9 sm:$0xff] %v4791
        %5085 = vst [vmem:[%s4814] ss:$9 sm:$0xff] %v4792
        %v5086 = vld [vmem:[#allocation1] sm:$0xff]
        %5087 = vst [vmem:[#allocation1] ss:$9 sm:$0xff] %v4793
        %5088 = vst [vmem:[%s4802] ss:$9 sm:$0xff] %v4794
        %5089 = vst [vmem:[%s4804] ss:$9 sm:$0xff] %v4795
        %5090 = vst [vmem:[%s4806] ss:$9 sm:$0xff] %v4796
        %5091 = vst [vmem:[%s4808] ss:$9 sm:$0xff] %v4797
        %5092 = vst [vmem:[%s4810] ss:$9 sm:$0xff] %v4798
        %5093 = vst [vmem:[%s4812] ss:$9 sm:$0xff] %v4799
        %5094 = vst [vmem:[%s4814] ss:$9 sm:$0xff] %v4800
        %v5095 = vld [vmem:[#allocation1] sm:$0xff]
        %5096 = vset.pattern.permute.xlu0 0
        %5097 = vperm.xlu0 %5096, %v4816
        %v5098 = vpop.permute.xlu0 %5097
        %5099 = vset.pattern.permute.xlu0 0
        %5100 = vperm.xlu0 %5099, %v4825
        %v5101 = vpop.permute.xlu0 %5100
        %5102 = vset.pattern.permute.xlu0 0
        %5103 = vperm.xlu0 %5102, %v4834
        %v5104 = vpop.permute.xlu0 %5103
        %5105 = vset.pattern.permute.xlu0 0
        %5106 = vperm.xlu0 %5105, %v4843
        %v5107 = vpop.permute.xlu0 %5106
        %5108 = vset.pattern.permute.xlu0 0
        %5109 = vperm.xlu0 %5108, %v4852
        %v5110 = vpop.permute.xlu0 %5109
        %5111 = vset.pattern.permute.xlu0 0
        %5112 = vperm.xlu0 %5111, %v4861
        %v5113 = vpop.permute.xlu0 %5112
        %5114 = vset.pattern.permute.xlu0 0
        %5115 = vperm.xlu0 %5114, %v4870
        %v5116 = vpop.permute.xlu0 %5115
        %5117 = vset.pattern.permute.xlu0 0
        %5118 = vperm.xlu0 %5117, %v4879
        %v5119 = vpop.permute.xlu0 %5118
        %5120 = vset.pattern.permute.xlu0 0
        %5121 = vperm.xlu0 %5120, %v4888
        %v5122 = vpop.permute.xlu0 %5121
        %5123 = vset.pattern.permute.xlu0 0
        %5124 = vperm.xlu0 %5123, %v4897
        %v5125 = vpop.permute.xlu0 %5124
        %5126 = vset.pattern.permute.xlu0 0
        %5127 = vperm.xlu0 %5126, %v4906
        %v5128 = vpop.permute.xlu0 %5127
        %5129 = vset.pattern.permute.xlu0 0
        %5130 = vperm.xlu0 %5129, %v4915
        %v5131 = vpop.permute.xlu0 %5130
        %5132 = vset.pattern.permute.xlu0 0
        %5133 = vperm.xlu0 %5132, %v4924
        %v5134 = vpop.permute.xlu0 %5133
        %5135 = vset.pattern.permute.xlu0 0
        %5136 = vperm.xlu0 %5135, %v4933
        %v5137 = vpop.permute.xlu0 %5136
        %5138 = vset.pattern.permute.xlu0 0
        %5139 = vperm.xlu0 %5138, %v4942
        %v5140 = vpop.permute.xlu0 %5139
        %5141 = vset.pattern.permute.xlu0 0
        %5142 = vperm.xlu0 %5141, %v4951
        %v5143 = vpop.permute.xlu0 %5142
        %5144 = vset.pattern.permute.xlu0 0
        %5145 = vperm.xlu0 %5144, %v4960
        %v5146 = vpop.permute.xlu0 %5145
        %5147 = vset.pattern.permute.xlu0 0
        %5148 = vperm.xlu0 %5147, %v4969
        %v5149 = vpop.permute.xlu0 %5148
        %5150 = vset.pattern.permute.xlu0 0
        %5151 = vperm.xlu0 %5150, %v4978
        %v5152 = vpop.permute.xlu0 %5151
        %5153 = vset.pattern.permute.xlu0 0
        %5154 = vperm.xlu0 %5153, %v4987
        %v5155 = vpop.permute.xlu0 %5154
        %5156 = vset.pattern.permute.xlu0 0
        %5157 = vperm.xlu0 %5156, %v4996
        %v5158 = vpop.permute.xlu0 %5157
        %5159 = vset.pattern.permute.xlu0 0
        %5160 = vperm.xlu0 %5159, %v5005
        %v5161 = vpop.permute.xlu0 %5160
        %5162 = vset.pattern.permute.xlu0 0
        %5163 = vperm.xlu0 %5162, %v5014
        %v5164 = vpop.permute.xlu0 %5163
        %5165 = vset.pattern.permute.xlu0 0
        %5166 = vperm.xlu0 %5165, %v5023
        %v5167 = vpop.permute.xlu0 %5166
        %5168 = vset.pattern.permute.xlu0 0
        %5169 = vperm.xlu0 %5168, %v5032
        %v5170 = vpop.permute.xlu0 %5169
        %5171 = vset.pattern.permute.xlu0 0
        %5172 = vperm.xlu0 %5171, %v5041
        %v5173 = vpop.permute.xlu0 %5172
        %5174 = vset.pattern.permute.xlu0 0
        %5175 = vperm.xlu0 %5174, %v5050
        %v5176 = vpop.permute.xlu0 %5175
        %5177 = vset.pattern.permute.xlu0 0
        %5178 = vperm.xlu0 %5177, %v5059
        %v5179 = vpop.permute.xlu0 %5178
        %5180 = vset.pattern.permute.xlu0 0
        %5181 = vperm.xlu0 %5180, %v5068
        %v5182 = vpop.permute.xlu0 %5181
        %5183 = vset.pattern.permute.xlu0 0
        %5184 = vperm.xlu0 %5183, %v5077
        %v5185 = vpop.permute.xlu0 %5184
        %5186 = vset.pattern.permute.xlu0 0
        %5187 = vperm.xlu0 %5186, %v5086
        %v5188 = vpop.permute.xlu0 %5187
        %5189 = vset.pattern.permute.xlu0 0
        %5190 = vperm.xlu0 %5189, %v5095
        %v5191 = vpop.permute.xlu0 %5190
        %v5192 = vperm.slane %v5098, %v4416
        %v5193 = vperm.slane %v5101, %v4418
        %v5194 = vsel %vm4420, %v5193, %v5192
        %v5195 = vperm.slane %v5104, %v4422
        %v5196 = vsel %vm4424, %v5195, %v5194
        %v5197 = vperm.slane %v5107, %v4426
        %v5198 = vsel %vm4428, %v5197, %v5196
        %v5199 = vperm.slane %v5110, %v4430
        %v5200 = vsel %vm4432, %v5199, %v5198
        %v5201 = vperm.slane %v5113, %v4434
        %v5202 = vsel %vm4436, %v5201, %v5200
        %v5203 = vperm.slane %v5116, %v4438
        %v5204 = vsel %vm4440, %v5203, %v5202
        %v5205 = vperm.slane %v5119, %v4442
        %v5206 = vsel %vm4444, %v5205, %v5204
        %v5207 = vperm.slane %v5122, %v4446
        %v5208 = vsel %vm4448, %v5207, %v5206
        %v5209 = vperm.slane %v5125, %v4450
        %v5210 = vsel %vm4452, %v5209, %v5208
        %v5211 = vperm.slane %v5128, %v4454
        %v5212 = vsel %vm4456, %v5211, %v5210
        %v5213 = vperm.slane %v5131, %v4458
        %v5214 = vsel %vm4460, %v5213, %v5212
        %v5215 = vperm.slane %v5134, %v4462
        %v5216 = vsel %vm4464, %v5215, %v5214
        %v5217 = vperm.slane %v5137, %v4466
        %v5218 = vsel %vm4468, %v5217, %v5216
        %v5219 = vperm.slane %v5140, %v4470
        %v5220 = vsel %vm4472, %v5219, %v5218
        %v5221 = vperm.slane %v5143, %v4474
        %v5222 = vsel %vm4476, %v5221, %v5220
        %v5223 = vperm.slane %v5146, %v4416
        %v5224 = vperm.slane %v5149, %v4418
        %v5225 = vsel %vm4420, %v5224, %v5223
        %v5226 = vperm.slane %v5152, %v4422
        %v5227 = vsel %vm4424, %v5226, %v5225
        %v5228 = vperm.slane %v5155, %v4426
        %v5229 = vsel %vm4428, %v5228, %v5227
        %v5230 = vperm.slane %v5158, %v4430
        %v5231 = vsel %vm4432, %v5230, %v5229
        %v5232 = vperm.slane %v5161, %v4434
        %v5233 = vsel %vm4436, %v5232, %v5231
        %v5234 = vperm.slane %v5164, %v4438
        %v5235 = vsel %vm4440, %v5234, %v5233
        %v5236 = vperm.slane %v5167, %v4442
        %v5237 = vsel %vm4444, %v5236, %v5235
        %v5238 = vperm.slane %v5170, %v4446
        %v5239 = vsel %vm4448, %v5238, %v5237
        %v5240 = vperm.slane %v5173, %v4450
        %v5241 = vsel %vm4452, %v5240, %v5239
        %v5242 = vperm.slane %v5176, %v4454
        %v5243 = vsel %vm4456, %v5242, %v5241
        %v5244 = vperm.slane %v5179, %v4458
        %v5245 = vsel %vm4460, %v5244, %v5243
        %v5246 = vperm.slane %v5182, %v4462
        %v5247 = vsel %vm4464, %v5246, %v5245
        %v5248 = vperm.slane %v5185, %v4466
        %v5249 = vsel %vm4468, %v5248, %v5247
        %v5250 = vperm.slane %v5188, %v4470
        %v5251 = vsel %vm4472, %v5250, %v5249
        %v5252 = vperm.slane %v5191, %v4474
        %v5253 = vsel %vm4476, %v5252, %v5251
        %v5254 = vrot.slane %v5253, 7
        %v5255 = vsel %vm4510, %v5222, %v5254
        %v5256 = vrot.slane %v5255, 6
        %v5258 = vlaneseq
        %vm5259 = vcmp.ge.s32.totalorder %v5258, 0
        %vm5260 = vcmp.lt.s32.totalorder %v5258, 256
        %vm5261 = vmand %vm5259, %vm5260
        %v5262 = vsel %vm5261, %v4511, %v5256
        %vm5263 = vcmp.lt.s32.totalorder %v5258, 512
        %vm5264 = vmand %vm5259, %vm5263
        %5265 = vst.msk [vmem:[%s184] sm:$0xf] %vm5264, %v5262
        %s5266 = sand.u32 %s101, 1
        %s5267 = scalar_lea.sflag [#allocation5], %s5266
        %s5268 = sand.u32 %s101, 1
        %s5269 = smul.addr %s5268, 4
        %s5270 = scalar_lea.vmem [#allocation4], %s5269
        // Predicated region
        $region36: #{tpu_custom_call.1} parent=27 // pred_check
          %p5271 = pneg %p111
        $region37: #{tpu_custom_call.1} parent=27 // pred_check_branch
          %5273 = sbr.rel (%p5271) target = $region39
        $region38: #{tpu_custom_call.1} parent=27 // pred_region
          %5275 = vsyncadd %s5267, 0
          %s5276 = smul.addr %s30, 4
          %s5277 = smul.addr %s29, 8
          %s5278 = sadd.s32 %s5276, %s5277
          %s5279 = scalar_lea.hbm %s3, %s5278
          %s5281 = sshll.u32 %s5270, 4
          %s5282 = int_to_ptr.vmem [resolvable:$true] %s5281
          %s5283 = sshll.u32 %s5279, 4
          %s5284 = int_to_ptr.hbm [resolvable:$true] %s5283
          %5286 = dma.vmem_to_hbm [thread:$0]  %s5282, 64, %s5284, %s5267
        $region39: #{tpu_custom_call.1} parent=27 // pred_fallthru
          _
      $region28: #{tpu_custom_call.1} parent=5 // pred_fallthru
        _
      %p5287 = scmp.le.s32.totalorder 2, %s20
      // Predicated region
      $region40: #{tpu_custom_call.1} parent=5 // pred_check
        %p5288 = pneg %p5287
      $region41: #{tpu_custom_call.1} parent=5 // pred_check_branch
        %5290 = sbr.rel (%p5288) target = $region43
      $region42: #{tpu_custom_call.1} parent=5 // pred_region
        %s5291 = ssub.s32 %s20, 2
        // Predicated region
        $region44: #{tpu_custom_call.1} parent=42 // pred_check
          %p5292 = pneg %p117
        $region45: #{tpu_custom_call.1} parent=42 // pred_check_branch
          %5294 = sbr.rel (%p5292) target = $region47
        $region46: #{tpu_custom_call.1} parent=42 // pred_region
          %s5295 = sand.u32 %s102, 1
          %s5296 = scalar_lea.sflag [#allocation5], %s5295
          %s5297 = sand.u32 %s102, 1
          %s5298 = smul.addr %s5297, 4
          %s5299 = scalar_lea.vmem [#allocation4], %s5298
          %5301 = dma.done %s5296, 64
        $region47: #{tpu_custom_call.1} parent=42 // pred_fallthru
          _
      $region43: #{tpu_custom_call.1} parent=5 // pred_fallthru
        _
    $region6: #{tpu_custom_call.1} parent=1 // loop_footer
      %s24 = sadd.s32 1, %s20
    $region7: #{tpu_custom_call.1} parent=1 // loop_footer_branch
      %19 = sbr.rel target = $region3
    $region8: #{tpu_custom_call.1} parent=1 // loop_exit
      _
    %5302 = vsyncpa [#allocation5], 1
    %s5303 = scalar_lea.sflag [#allocation5], 1
    %5304 = vsyncpa %s5303, 1

</llo_original>
